<compile_context>
chip_gen: v6e
topology: v6e:2x2x1
jax: 0.10.0
libtpu: 0.0.40
codegen_flags: <defaults>
</compile_context>

<pallas_src>
import math

import jax
import jax.numpy as jnp
from jax.experimental import pallas as pl
from jax.experimental.pallas import tpu as pltpu

# ---- config (cfg.D, cfg.L, cfg.n_head, cfg.n_layer) -------------------------
B, L, D, N_HEAD, N_LAYER = 2, 8, 32, 4, 2
DH = D // N_HEAD
DFF = 4 * D
BL = B * L
EPS = 1e-5
NEG = -1e30          # large finite negative instead of -inf (NaN-safe)
N_PARAMS_PER_LAYER = 16


# ---- positional encoding table (setup glue, plain JAX) -----------------------
def positional_encoding_table(n, d):
    positions = jnp.arange(n, dtype=jnp.float32) + 1.0
    factors = jnp.exp(jnp.arange(0, d, 2, dtype=jnp.float32) / d * -math.log(10000.0))
    terms = jnp.outer(positions, factors)                      # (n, d//2)
    p = jnp.zeros((n, d), jnp.float32)
    p = p.at[:, 0::2].set(jnp.sin(terms))
    p = p.at[:, 1::2].set(jnp.cos(terms))
    return p


# ---- precomputed additive attention biases (built once, outside the kernel) --
def build_attn_biases():
    idx = jnp.arange(BL, dtype=jnp.int32)
    row = idx[:, None]
    col = idx[None, :]
    same_batch = (row // L) == (col // L)                      # block-diag over batch
    causal = col <= row                                        # tril within a block
    self_bias = jnp.where(same_batch & causal, 0.0, NEG).astype(jnp.float32)
    cross_bias = jnp.where(same_batch, 0.0, NEG).astype(jnp.float32)
    return jnp.stack([self_bias, cross_bias], axis=0)          # (2, BL, BL)


# ---- the single fused kernel --------------------------------------------------
def _decoder_stack_kernel(y_ref, c_ref, pe_ref, bias_ref,
                          wqkv1_ref, wkv2_ref, wmisc_ref, w1_ref, w2_ref, ln_ref,
                          o_ref):
    n = float(L * D)

    def layer_norm(x2d, gain, bias):
        # torch-style LayerNorm((L, D)) with unbiased variance, per batch element.
        x3 = x2d.reshape(B, L, D)
        both = jnp.stack([x3, x3 * x3], axis=0)                          # (2, B, L, D)
        sums = jnp.sum(jnp.sum(both, axis=-1, keepdims=True),
                       axis=-2, keepdims=True)                           # (2, B, 1, 1)
        mu = sums[0] / n                                                 # (B, 1, 1)
        var = (sums[1] - n * mu * mu) / (n - 1.0)
        inv = jax.lax.rsqrt(var + EPS)
        y3 = (x3 - mu) * inv * gain[None] + bias[None]
        return y3.reshape(BL, D)

    def attend(q, k, v, wo, bias):
        # q already carries the 1/sqrt(DH) scale (folded into Wq in the wrapper).
        heads = []
        for h in range(N_HEAD):                                          # static unroll
            sl = slice(h * DH, (h + 1) * DH)
            s = jax.lax.dot_general(q[:, sl], k[:, sl],
                                    dimension_numbers=(((1,), (1,)), ((), ())),
                                    preferred_element_type=jnp.float32)  # (BL, BL)
            s = s + bias
            m = jnp.max(s, axis=-1, keepdims=True)
            p = jnp.exp(s - m)
            inv = pl.reciprocal(jnp.sum(p, axis=-1, keepdims=True), approx=False)
            heads.append(jnp.dot(p, v[:, sl],
                                 preferred_element_type=jnp.float32) * inv)
        attn = jnp.concatenate(heads, axis=-1)                           # (BL, D)
        return jnp.dot(attn, wo, preferred_element_type=jnp.float32)     # single Wo matmul

    self_bias = bias_ref[0]
    cross_bias = bias_ref[1]

    # positional encoding add (dropout = identity at inference)
    a = y_ref[...] + pe_ref[...]                                         # (BL, D)
    c = c_ref[...]                                                       # (BL, D)

    # cross-attn K/V for ALL layers in one lane-dense matmul (c is layer-invariant)
    kv_all = jnp.dot(c, wkv2_ref[...], preferred_element_type=jnp.float32)  # (BL, NL*2D)

    for l in range(N_LAYER):                                             # static unroll
        # --- masked self-attention + residual + LayerNorm((L, D)) ---
        qkv = jnp.dot(a, wqkv1_ref[l], preferred_element_type=jnp.float32)  # (BL, 3D)
        sa = attend(qkv[:, :D], qkv[:, D:2 * D], qkv[:, 2 * D:],
                    wmisc_ref[l, 1], self_bias)
        a = layer_norm(a + sa, ln_ref[l, 0], ln_ref[l, 1])

        # --- cross-attention over encoder context ---
        q2 = jnp.dot(a, wmisc_ref[l, 0], preferred_element_type=jnp.float32)  # pre-scaled Wq2
        off = l * 2 * D
        ca = attend(q2, kv_all[:, off:off + D], kv_all[:, off + D:off + 2 * D],
                    wmisc_ref[l, 2], cross_bias)
        a = layer_norm(a + ca, ln_ref[l, 2], ln_ref[l, 3])

        # --- feedforward: relu(x @ W1) @ W2  (hidden = 4*D = 128 lanes) ---
        hdn = jnp.maximum(jnp.dot(a, w1_ref[l], preferred_element_type=jnp.float32), 0.0)
        ff = jnp.dot(hdn, w2_ref[l], preferred_element_type=jnp.float32)
        a = layer_norm(a + ff, ln_ref[l, 4], ln_ref[l, 5])

    o_ref[...] = a


# ---- weight packing (done once, outside the kernel) ---------------------------
def pack_params(params):
    (wq1, wk1, wv1, wo1, g1, b1,
     wq2, wk2, wv2, wo2, g2, b2,
     w1, w2, g3, b3) = params
    scale = 1.0 / math.sqrt(DH)
    # fused self-attn QKV projection, softmax scale folded into the Q block
    wqkv1 = jnp.concatenate([wq1 * scale, wk1, wv1], axis=-1)            # (NL, D, 3D)
    # cross-attn K/V for all layers packed along lanes: [k0|v0|k1|v1|...]
    kv_cols = []
    for l in range(N_LAYER):
        kv_cols.append(wk2[l])
        kv_cols.append(wv2[l])
    wkv2_all = jnp.concatenate(kv_cols, axis=-1)                         # (D, NL*2D)
    # remaining DxD weights stacked: [Wq2*scale, Wo1, Wo2]
    wmisc = jnp.stack([wq2 * scale, wo1, wo2], axis=1)                   # (NL, 3, D, D)
    # all LayerNorm gains/biases in one array: [g1,b1,g2,b2,g3,b3]
    ln = jnp.stack([g1, b1, g2, b2, g3, b3], axis=1)                     # (NL, 6, L, D)
    return wqkv1, wkv2_all, wmisc, w1, w2, ln


# ---- wrapper ------------------------------------------------------------------
def decoder_stack_forward(y, c, packed):
    pe = positional_encoding_table(L, D)
    pe_tiled = jnp.tile(pe, (B, 1))                                      # (BL, D)
    biases = build_attn_biases()                                         # (2, BL, BL)

    y2 = y.reshape(BL, D)
    c2 = c.reshape(BL, D)

    operands = (y2, c2, pe_tiled, biases) + tuple(packed)
    vmem_spec = pl.BlockSpec(memory_space=pltpu.MemorySpace.VMEM)
    out2 = pl.pallas_call(
        _decoder_stack_kernel,
        out_shape=jax.ShapeDtypeStruct((BL, D), jnp.float32),
        in_specs=[vmem_spec] * len(operands),
        out_specs=vmem_spec,
    )(*operands)
    return out2.reshape(B, L, D)


# ---- deterministic parameter init (canonical, per-kind stacked) ---------------
def init_params(key):
    layers = []
    for _ in range(N_LAYER):
        keys = jax.random.split(key, 7)
        key = keys[0]
        wq1 = jax.random.normal(keys[1], (D, D), jnp.float32) * 0.05
        wk1 = jax.random.normal(keys[2], (D, D), jnp.float32) * 0.05
        wv1 = jax.random.normal(keys[3], (D, D), jnp.float32) * 0.05
        wo1 = jax.random.normal(keys[4], (D, D), jnp.float32) * 0.05
        g1, b1 = jnp.ones((L, D), jnp.float32), jnp.zeros((L, D), jnp.float32)
        keys2 = jax.random.split(key, 7)
        key = keys2[0]
        wq2 = jax.random.normal(keys2[1], (D, D), jnp.float32) * 0.05
        wk2 = jax.random.normal(keys2[2], (D, D), jnp.float32) * 0.05
        wv2 = jax.random.normal(keys2[3], (D, D), jnp.float32) * 0.05
        wo2 = jax.random.normal(keys2[4], (D, D), jnp.float32) * 0.05
        g2, b2 = jnp.ones((L, D), jnp.float32), jnp.zeros((L, D), jnp.float32)
        w1 = jax.random.normal(keys2[5], (D, DFF), jnp.float32) * 0.05
        w2 = jax.random.normal(keys2[6], (DFF, D), jnp.float32) * 0.05
        g3, b3 = jnp.ones((L, D), jnp.float32), jnp.zeros((L, D), jnp.float32)
        layers.append((wq1, wk1, wv1, wo1, g1, b1,
                       wq2, wk2, wv2, wo2, g2, b2,
                       w1, w2, g3, b3))
    return tuple(jnp.stack([layer[i] for layer in layers], axis=0)
                 for i in range(N_PARAMS_PER_LAYER))


# ---- pure-JAX reference (for correctness check) -------------------------------
def ref_forward(y, c, params):
    (wq1, wk1, wv1, wo1, g1, b1,
     wq2, wk2, wv2, wo2, g2, b2,
     w1, w2, g3, b3) = params
    y = y + positional_encoding_table(L, D)[None]

    def mha(xq, xkv, wq_, wk_, wv_, wo_, masked):
        q = (xq @ wq_).reshape(B, L, N_HEAD, DH).transpose(0, 2, 1, 3)
        k = (xkv @ wk_).reshape(B, L, N_HEAD, DH).transpose(0, 2, 1, 3)
        v = (xkv @ wv_).reshape(B, L, N_HEAD, DH).transpose(0, 2, 1, 3)
        s = q @ k.transpose(0, 1, 3, 2)
        if masked:
            mask = jnp.tril(jnp.ones((L, L)))
            s = jnp.where(mask == 0, -jnp.inf, s)
        a = jax.nn.softmax(s / math.sqrt(DH), axis=-1)
        o = (a @ v).transpose(0, 2, 1, 3).reshape(B, L, D)
        return o @ wo_

    def ln(x, g, b):
        mu = jnp.mean(x, axis=(-2, -1), keepdims=True)
        var = jnp.sum((x - mu) ** 2, axis=(-2, -1), keepdims=True) / (L * D - 1)
        return (x - mu) / jnp.sqrt(var + EPS) * g + b

    for l in range(N_LAYER):
        a1 = ln(y + mha(y, y, wq1[l], wk1[l], wv1[l], wo1[l], True), g1[l], b1[l])
        a2 = ln(a1 + mha(a1, c, wq2[l], wk2[l], wv2[l], wo2[l], False), g2[l], b2[l])
        ff = jnp.maximum(a2 @ w1[l], 0.0) @ w2[l]
        y = ln(a2 + ff, g3[l], b3[l])
    return y


if __name__ == "__main__":
    key = jax.random.PRNGKey(0)
    ky, kc, kp = jax.random.split(key, 3)
    y = jax.random.normal(ky, (B, L, D), jnp.float32)
    c = jax.random.normal(kc, (B, L, D), jnp.float32)
    params = init_params(kp)
    packed = pack_params(params)

    out = decoder_stack_forward(y, c, packed)
    out = jax.block_until_ready(out)

    ref = jax.block_until_ready(ref_forward(y, c, params))
    assert out.shape == (B, L, D)
    assert jnp.allclose(out, ref, rtol=1e-3, atol=1e-4), "mismatch vs reference"

    print("KERNEL_OK")
</pallas_src>

<mosaic_0001>
module attributes {stable_mosaic.version = 11 : i64} {
  func.func @_decoder_stack_kernel(%arg0: memref<16x32xf32, #tpu.memory_space<vmem>>, %arg1: memref<16x32xf32, #tpu.memory_space<vmem>>, %arg2: memref<16x32xf32, #tpu.memory_space<vmem>>, %arg3: memref<2x16x16xf32, #tpu.memory_space<vmem>>, %arg4: memref<2x32x96xf32, #tpu.memory_space<vmem>>, %arg5: memref<32x128xf32, #tpu.memory_space<vmem>>, %arg6: memref<2x3x32x32xf32, #tpu.memory_space<vmem>>, %arg7: memref<2x32x128xf32, #tpu.memory_space<vmem>>, %arg8: memref<2x128x32xf32, #tpu.memory_space<vmem>>, %arg9: memref<2x6x8x32xf32, #tpu.memory_space<vmem>>, %arg10: memref<16x32xf32, #tpu.memory_space<vmem>>) attributes {dimension_semantics = [], scalar_prefetch = 0 : i64, scratch_operands = 0 : i64, tpu.core_type = #tpu.core_type<tc>} {
    %c0 = arith.constant 0 : index
    %c0_0 = arith.constant 0 : index
    %c0_1 = arith.constant 0 : index
    %0 = vector.load %arg3[%c0, %c0_0, %c0_1] : memref<2x16x16xf32, #tpu.memory_space<vmem>>, vector<1x16x16xf32>
    %1 = vector.shape_cast %0 : vector<1x16x16xf32> to vector<16x16xf32>
    %c1 = arith.constant 1 : index
    %c0_2 = arith.constant 0 : index
    %c0_3 = arith.constant 0 : index
    %2 = vector.load %arg3[%c1, %c0_2, %c0_3] : memref<2x16x16xf32, #tpu.memory_space<vmem>>, vector<1x16x16xf32>
    %3 = vector.shape_cast %2 : vector<1x16x16xf32> to vector<16x16xf32>
    %c0_4 = arith.constant 0 : index
    %c0_5 = arith.constant 0 : index
    %4 = vector.load %arg0[%c0_4, %c0_5] : memref<16x32xf32, #tpu.memory_space<vmem>>, vector<16x32xf32>
    %c0_6 = arith.constant 0 : index
    %c0_7 = arith.constant 0 : index
    %5 = vector.load %arg2[%c0_6, %c0_7] : memref<16x32xf32, #tpu.memory_space<vmem>>, vector<16x32xf32>
    %6 = arith.addf %4, %5 : vector<16x32xf32>
    %c0_8 = arith.constant 0 : index
    %c0_9 = arith.constant 0 : index
    %7 = vector.load %arg1[%c0_8, %c0_9] : memref<16x32xf32, #tpu.memory_space<vmem>>, vector<16x32xf32>
    %c0_10 = arith.constant 0 : index
    %c0_11 = arith.constant 0 : index
    %8 = vector.load %arg5[%c0_10, %c0_11] : memref<32x128xf32, #tpu.memory_space<vmem>>, vector<32x128xf32>
    %cst = arith.constant dense<0.000000e+00> : vector<16x128xf32>
    %9 = tpu.matmul %7, %8, %cst {dimension_numbers = #tpu.dot_dimension_numbers<[1], [0], [0], [1], [0, 0, 1, 1], [], []>} : vector<16x32xf32>, vector<32x128xf32>, vector<16x128xf32> -> vector<16x128xf32>
    %c0_12 = arith.constant 0 : index
    %c0_13 = arith.constant 0 : index
    %c0_14 = arith.constant 0 : index
    %10 = vector.load %arg4[%c0_12, %c0_13, %c0_14] : memref<2x32x96xf32, #tpu.memory_space<vmem>>, vector<1x32x96xf32>
    %11 = vector.shape_cast %10 : vector<1x32x96xf32> to vector<32x96xf32>
    %cst_15 = arith.constant dense<0.000000e+00> : vector<16x96xf32>
    %12 = tpu.matmul %6, %11, %cst_15 {dimension_numbers = #tpu.dot_dimension_numbers<[1], [0], [0], [1], [0, 0, 1, 1], [], []>} : vector<16x32xf32>, vector<32x96xf32>, vector<16x96xf32> -> vector<16x96xf32>
    %13 = vector.extract_strided_slice %12 {offsets = [0, 0], sizes = [16, 32], strides = [1, 1]} : vector<16x96xf32> to vector<16x32xf32>
    %14 = vector.extract_strided_slice %12 {offsets = [0, 32], sizes = [16, 32], strides = [1, 1]} : vector<16x96xf32> to vector<16x32xf32>
    %15 = vector.extract_strided_slice %12 {offsets = [0, 64], sizes = [16, 32], strides = [1, 1]} : vector<16x96xf32> to vector<16x32xf32>
    %c0_16 = arith.constant 0 : index
    %c1_17 = arith.constant 1 : index
    %c0_18 = arith.constant 0 : index
    %c0_19 = arith.constant 0 : index
    %16 = vector.load %arg6[%c0_16, %c1_17, %c0_18, %c0_19] : memref<2x3x32x32xf32, #tpu.memory_space<vmem>>, vector<1x1x32x32xf32>
    %17 = vector.shape_cast %16 : vector<1x1x32x32xf32> to vector<32x32xf32>
    %18 = vector.extract_strided_slice %13 {offsets = [0, 0], sizes = [16, 8], strides = [1, 1]} : vector<16x32xf32> to vector<16x8xf32>
    %19 = vector.extract_strided_slice %14 {offsets = [0, 0], sizes = [16, 8], strides = [1, 1]} : vector<16x32xf32> to vector<16x8xf32>
    %cst_20 = arith.constant dense<0.000000e+00> : vector<16x16xf32>
    %20 = tpu.matmul %18, %19, %cst_20 {dimension_numbers = #tpu.dot_dimension_numbers<[1], [1], [0], [0], [0, 0, 1, 0], [], []>} : vector<16x8xf32>, vector<16x8xf32>, vector<16x16xf32> -> vector<16x16xf32>
    %21 = arith.addf %20, %1 : vector<16x16xf32>
    %cst_21 = arith.constant dense<0xFF800000> : vector<16xf32>
    %22 = vector.multi_reduction <maximumf>, %21, %cst_21 [1] : vector<16x16xf32> to vector<16xf32>
    %23 = vector.shape_cast %22 : vector<16xf32> to vector<16x1xf32>
    %24 = vector.broadcast %23 : vector<16x1xf32> to vector<16x16xf32>
    %25 = arith.subf %21, %24 : vector<16x16xf32>
    %26 = math.exp %25 : vector<16x16xf32>
    %cst_22 = arith.constant dense<0.000000e+00> : vector<16xf32>
    %27 = vector.multi_reduction <add>, %26, %cst_22 [1] : vector<16x16xf32> to vector<16xf32>
    %28 = vector.shape_cast %27 : vector<16xf32> to vector<16x1xf32>
    %29 = tpu.reciprocal %28 : vector<16x1xf32> -> vector<16x1xf32>
    %30 = vector.extract_strided_slice %15 {offsets = [0, 0], sizes = [16, 8], strides = [1, 1]} : vector<16x32xf32> to vector<16x8xf32>
    %cst_23 = arith.constant dense<0.000000e+00> : vector<16x8xf32>
    %31 = tpu.matmul %26, %30, %cst_23 {dimension_numbers = #tpu.dot_dimension_numbers<[1], [0], [0], [1], [0, 0, 1, 1], [], []>} : vector<16x16xf32>, vector<16x8xf32>, vector<16x8xf32> -> vector<16x8xf32>
    %32 = vector.broadcast %29 : vector<16x1xf32> to vector<16x8xf32>
    %33 = arith.mulf %31, %32 : vector<16x8xf32>
    %34 = vector.extract_strided_slice %13 {offsets = [0, 8], sizes = [16, 8], strides = [1, 1]} : vector<16x32xf32> to vector<16x8xf32>
    %35 = vector.extract_strided_slice %14 {offsets = [0, 8], sizes = [16, 8], strides = [1, 1]} : vector<16x32xf32> to vector<16x8xf32>
    %cst_24 = arith.constant dense<0.000000e+00> : vector<16x16xf32>
    %36 = tpu.matmul %34, %35, %cst_24 {dimension_numbers = #tpu.dot_dimension_numbers<[1], [1], [0], [0], [0, 0, 1, 0], [], []>} : vector<16x8xf32>, vector<16x8xf32>, vector<16x16xf32> -> vector<16x16xf32>
    %37 = arith.addf %36, %1 : vector<16x16xf32>
    %cst_25 = arith.constant dense<0xFF800000> : vector<16xf32>
    %38 = vector.multi_reduction <maximumf>, %37, %cst_25 [1] : vector<16x16xf32> to vector<16xf32>
    %39 = vector.shape_cast %38 : vector<16xf32> to vector<16x1xf32>
    %40 = vector.broadcast %39 : vector<16x1xf32> to vector<16x16xf32>
    %41 = arith.subf %37, %40 : vector<16x16xf32>
    %42 = math.exp %41 : vector<16x16xf32>
    %cst_26 = arith.constant dense<0.000000e+00> : vector<16xf32>
    %43 = vector.multi_reduction <add>, %42, %cst_26 [1] : vector<16x16xf32> to vector<16xf32>
    %44 = vector.shape_cast %43 : vector<16xf32> to vector<16x1xf32>
    %45 = tpu.reciprocal %44 : vector<16x1xf32> -> vector<16x1xf32>
    %46 = vector.extract_strided_slice %15 {offsets = [0, 8], sizes = [16, 8], strides = [1, 1]} : vector<16x32xf32> to vector<16x8xf32>
    %cst_27 = arith.constant dense<0.000000e+00> : vector<16x8xf32>
    %47 = tpu.matmul %42, %46, %cst_27 {dimension_numbers = #tpu.dot_dimension_numbers<[1], [0], [0], [1], [0, 0, 1, 1], [], []>} : vector<16x16xf32>, vector<16x8xf32>, vector<16x8xf32> -> vector<16x8xf32>
    %48 = vector.broadcast %45 : vector<16x1xf32> to vector<16x8xf32>
    %49 = arith.mulf %47, %48 : vector<16x8xf32>
    %50 = vector.extract_strided_slice %13 {offsets = [0, 16], sizes = [16, 8], strides = [1, 1]} : vector<16x32xf32> to vector<16x8xf32>
    %51 = vector.extract_strided_slice %14 {offsets = [0, 16], sizes = [16, 8], strides = [1, 1]} : vector<16x32xf32> to vector<16x8xf32>
    %cst_28 = arith.constant dense<0.000000e+00> : vector<16x16xf32>
    %52 = tpu.matmul %50, %51, %cst_28 {dimension_numbers = #tpu.dot_dimension_numbers<[1], [1], [0], [0], [0, 0, 1, 0], [], []>} : vector<16x8xf32>, vector<16x8xf32>, vector<16x16xf32> -> vector<16x16xf32>
    %53 = arith.addf %52, %1 : vector<16x16xf32>
    %cst_29 = arith.constant dense<0xFF800000> : vector<16xf32>
    %54 = vector.multi_reduction <maximumf>, %53, %cst_29 [1] : vector<16x16xf32> to vector<16xf32>
    %55 = vector.shape_cast %54 : vector<16xf32> to vector<16x1xf32>
    %56 = vector.broadcast %55 : vector<16x1xf32> to vector<16x16xf32>
    %57 = arith.subf %53, %56 : vector<16x16xf32>
    %58 = math.exp %57 : vector<16x16xf32>
    %cst_30 = arith.constant dense<0.000000e+00> : vector<16xf32>
    %59 = vector.multi_reduction <add>, %58, %cst_30 [1] : vector<16x16xf32> to vector<16xf32>
    %60 = vector.shape_cast %59 : vector<16xf32> to vector<16x1xf32>
    %61 = tpu.reciprocal %60 : vector<16x1xf32> -> vector<16x1xf32>
    %62 = vector.extract_strided_slice %15 {offsets = [0, 16], sizes = [16, 8], strides = [1, 1]} : vector<16x32xf32> to vector<16x8xf32>
    %cst_31 = arith.constant dense<0.000000e+00> : vector<16x8xf32>
    %63 = tpu.matmul %58, %62, %cst_31 {dimension_numbers = #tpu.dot_dimension_numbers<[1], [0], [0], [1], [0, 0, 1, 1], [], []>} : vector<16x16xf32>, vector<16x8xf32>, vector<16x8xf32> -> vector<16x8xf32>
    %64 = vector.broadcast %61 : vector<16x1xf32> to vector<16x8xf32>
    %65 = arith.mulf %63, %64 : vector<16x8xf32>
    %66 = vector.extract_strided_slice %13 {offsets = [0, 24], sizes = [16, 8], strides = [1, 1]} : vector<16x32xf32> to vector<16x8xf32>
    %67 = vector.extract_strided_slice %14 {offsets = [0, 24], sizes = [16, 8], strides = [1, 1]} : vector<16x32xf32> to vector<16x8xf32>
    %cst_32 = arith.constant dense<0.000000e+00> : vector<16x16xf32>
    %68 = tpu.matmul %66, %67, %cst_32 {dimension_numbers = #tpu.dot_dimension_numbers<[1], [1], [0], [0], [0, 0, 1, 0], [], []>} : vector<16x8xf32>, vector<16x8xf32>, vector<16x16xf32> -> vector<16x16xf32>
    %69 = arith.addf %68, %1 : vector<16x16xf32>
    %cst_33 = arith.constant dense<0xFF800000> : vector<16xf32>
    %70 = vector.multi_reduction <maximumf>, %69, %cst_33 [1] : vector<16x16xf32> to vector<16xf32>
    %71 = vector.shape_cast %70 : vector<16xf32> to vector<16x1xf32>
    %72 = vector.broadcast %71 : vector<16x1xf32> to vector<16x16xf32>
    %73 = arith.subf %69, %72 : vector<16x16xf32>
    %74 = math.exp %73 : vector<16x16xf32>
    %cst_34 = arith.constant dense<0.000000e+00> : vector<16xf32>
    %75 = vector.multi_reduction <add>, %74, %cst_34 [1] : vector<16x16xf32> to vector<16xf32>
    %76 = vector.shape_cast %75 : vector<16xf32> to vector<16x1xf32>
    %77 = tpu.reciprocal %76 : vector<16x1xf32> -> vector<16x1xf32>
    %78 = vector.extract_strided_slice %15 {offsets = [0, 24], sizes = [16, 8], strides = [1, 1]} : vector<16x32xf32> to vector<16x8xf32>
    %cst_35 = arith.constant dense<0.000000e+00> : vector<16x8xf32>
    %79 = tpu.matmul %74, %78, %cst_35 {dimension_numbers = #tpu.dot_dimension_numbers<[1], [0], [0], [1], [0, 0, 1, 1], [], []>} : vector<16x16xf32>, vector<16x8xf32>, vector<16x8xf32> -> vector<16x8xf32>
    %80 = vector.broadcast %77 : vector<16x1xf32> to vector<16x8xf32>
    %81 = arith.mulf %79, %80 : vector<16x8xf32>
    %82 = tpu.concatenate %33, %49, %65, %81 in 1 : vector<16x8xf32>, vector<16x8xf32>, vector<16x8xf32>, vector<16x8xf32> -> vector<16x32xf32>
    %cst_36 = arith.constant dense<0.000000e+00> : vector<16x32xf32>
    %83 = tpu.matmul %82, %17, %cst_36 {dimension_numbers = #tpu.dot_dimension_numbers<[1], [0], [0], [1], [0, 0, 1, 1], [], []>} : vector<16x32xf32>, vector<32x32xf32>, vector<16x32xf32> -> vector<16x32xf32>
    %84 = arith.addf %6, %83 : vector<16x32xf32>
    %c0_37 = arith.constant 0 : index
    %c0_38 = arith.constant 0 : index
    %c0_39 = arith.constant 0 : index
    %c0_40 = arith.constant 0 : index
    %85 = vector.load %arg9[%c0_37, %c0_38, %c0_39, %c0_40] : memref<2x6x8x32xf32, #tpu.memory_space<vmem>>, vector<1x1x8x32xf32>
    %86 = vector.shape_cast %85 : vector<1x1x8x32xf32> to vector<8x32xf32>
    %c0_41 = arith.constant 0 : index
    %c1_42 = arith.constant 1 : index
    %c0_43 = arith.constant 0 : index
    %c0_44 = arith.constant 0 : index
    %87 = vector.load %arg9[%c0_41, %c1_42, %c0_43, %c0_44] : memref<2x6x8x32xf32, #tpu.memory_space<vmem>>, vector<1x1x8x32xf32>
    %88 = vector.shape_cast %87 : vector<1x1x8x32xf32> to vector<8x32xf32>
    %89 = vector.shape_cast %84 : vector<16x32xf32> to vector<2x8x32xf32>
    %90 = arith.mulf %89, %89 : vector<2x8x32xf32>
    %91 = vector.shape_cast %89 : vector<2x8x32xf32> to vector<1x2x8x32xf32>
    %92 = vector.shape_cast %90 : vector<2x8x32xf32> to vector<1x2x8x32xf32>
    %93 = tpu.concatenate %91, %92 in 0 : vector<1x2x8x32xf32>, vector<1x2x8x32xf32> -> vector<2x2x8x32xf32>
    %cst_45 = arith.constant dense<0.000000e+00> : vector<2x2x8xf32>
    %94 = vector.multi_reduction <add>, %93, %cst_45 [3] : vector<2x2x8x32xf32> to vector<2x2x8xf32>
    %95 = vector.shape_cast %94 : vector<2x2x8xf32> to vector<2x2x8x1xf32>
    %cst_46 = arith.constant dense<0.000000e+00> : vector<2x2x1xf32>
    %96 = vector.multi_reduction <add>, %95, %cst_46 [2] : vector<2x2x8x1xf32> to vector<2x2x1xf32>
    %97 = vector.shape_cast %96 : vector<2x2x1xf32> to vector<2x2x1x1xf32>
    %98 = vector.extract_strided_slice %97 {offsets = [0, 0, 0, 0], sizes = [1, 2, 1, 1], strides = [1, 1, 1, 1]} : vector<2x2x1x1xf32> to vector<1x2x1x1xf32>
    %99 = vector.shape_cast %98 : vector<1x2x1x1xf32> to vector<2x1x1xf32>
    %cst_47 = arith.constant 2.560000e+02 : f32
    %100 = vector.broadcast %cst_47 : f32 to vector<2x1x1xf32>
    %101 = arith.divf %99, %100 : vector<2x1x1xf32>
    %102 = vector.extract_strided_slice %97 {offsets = [1, 0, 0, 0], sizes = [1, 2, 1, 1], strides = [1, 1, 1, 1]} : vector<2x2x1x1xf32> to vector<1x2x1x1xf32>
    %103 = vector.shape_cast %102 : vector<1x2x1x1xf32> to vector<2x1x1xf32>
    %cst_48 = arith.constant 2.560000e+02 : f32
    %104 = vector.broadcast %cst_48 : f32 to vector<2x1x1xf32>
    %105 = arith.mulf %104, %101 : vector<2x1x1xf32>
    %106 = arith.mulf %105, %101 : vector<2x1x1xf32>
    %107 = arith.subf %103, %106 : vector<2x1x1xf32>
    %cst_49 = arith.constant 2.550000e+02 : f32
    %108 = vector.broadcast %cst_49 : f32 to vector<2x1x1xf32>
    %109 = arith.divf %107, %108 : vector<2x1x1xf32>
    %cst_50 = arith.constant 9.99999974E-6 : f32
    %110 = vector.broadcast %cst_50 : f32 to vector<2x1x1xf32>
    %111 = arith.addf %109, %110 : vector<2x1x1xf32>
    %112 = math.rsqrt %111 : vector<2x1x1xf32>
    %113 = vector.broadcast %101 : vector<2x1x1xf32> to vector<2x8x32xf32>
    %114 = arith.subf %89, %113 : vector<2x8x32xf32>
    %115 = vector.broadcast %112 : vector<2x1x1xf32> to vector<2x8x32xf32>
    %116 = arith.mulf %114, %115 : vector<2x8x32xf32>
    %117 = vector.shape_cast %86 : vector<8x32xf32> to vector<1x8x32xf32>
    %118 = vector.broadcast %117 : vector<1x8x32xf32> to vector<2x8x32xf32>
    %119 = arith.mulf %116, %118 : vector<2x8x32xf32>
    %120 = vector.shape_cast %88 : vector<8x32xf32> to vector<1x8x32xf32>
    %121 = vector.broadcast %120 : vector<1x8x32xf32> to vector<2x8x32xf32>
    %122 = arith.addf %119, %121 : vector<2x8x32xf32>
    %123 = vector.shape_cast %122 : vector<2x8x32xf32> to vector<16x32xf32>
    %c0_51 = arith.constant 0 : index
    %c0_52 = arith.constant 0 : index
    %c0_53 = arith.constant 0 : index
    %c0_54 = arith.constant 0 : index
    %124 = vector.load %arg6[%c0_51, %c0_52, %c0_53, %c0_54] : memref<2x3x32x32xf32, #tpu.memory_space<vmem>>, vector<1x1x32x32xf32>
    %125 = vector.shape_cast %124 : vector<1x1x32x32xf32> to vector<32x32xf32>
    %cst_55 = arith.constant dense<0.000000e+00> : vector<16x32xf32>
    %126 = tpu.matmul %123, %125, %cst_55 {dimension_numbers = #tpu.dot_dimension_numbers<[1], [0], [0], [1], [0, 0, 1, 1], [], []>} : vector<16x32xf32>, vector<32x32xf32>, vector<16x32xf32> -> vector<16x32xf32>
    %127 = vector.extract_strided_slice %9 {offsets = [0, 0], sizes = [16, 32], strides = [1, 1]} : vector<16x128xf32> to vector<16x32xf32>
    %128 = vector.extract_strided_slice %9 {offsets = [0, 32], sizes = [16, 32], strides = [1, 1]} : vector<16x128xf32> to vector<16x32xf32>
    %c0_56 = arith.constant 0 : index
    %c2 = arith.constant 2 : index
    %c0_57 = arith.constant 0 : index
    %c0_58 = arith.constant 0 : index
    %129 = vector.load %arg6[%c0_56, %c2, %c0_57, %c0_58] : memref<2x3x32x32xf32, #tpu.memory_space<vmem>>, vector<1x1x32x32xf32>
    %130 = vector.shape_cast %129 : vector<1x1x32x32xf32> to vector<32x32xf32>
    %131 = vector.extract_strided_slice %126 {offsets = [0, 0], sizes = [16, 8], strides = [1, 1]} : vector<16x32xf32> to vector<16x8xf32>
    %132 = vector.extract_strided_slice %127 {offsets = [0, 0], sizes = [16, 8], strides = [1, 1]} : vector<16x32xf32> to vector<16x8xf32>
    %cst_59 = arith.constant dense<0.000000e+00> : vector<16x16xf32>
    %133 = tpu.matmul %131, %132, %cst_59 {dimension_numbers = #tpu.dot_dimension_numbers<[1], [1], [0], [0], [0, 0, 1, 0], [], []>} : vector<16x8xf32>, vector<16x8xf32>, vector<16x16xf32> -> vector<16x16xf32>
    %134 = arith.addf %133, %3 : vector<16x16xf32>
    %cst_60 = arith.constant dense<0xFF800000> : vector<16xf32>
    %135 = vector.multi_reduction <maximumf>, %134, %cst_60 [1] : vector<16x16xf32> to vector<16xf32>
    %136 = vector.shape_cast %135 : vector<16xf32> to vector<16x1xf32>
    %137 = vector.broadcast %136 : vector<16x1xf32> to vector<16x16xf32>
    %138 = arith.subf %134, %137 : vector<16x16xf32>
    %139 = math.exp %138 : vector<16x16xf32>
    %cst_61 = arith.constant dense<0.000000e+00> : vector<16xf32>
    %140 = vector.multi_reduction <add>, %139, %cst_61 [1] : vector<16x16xf32> to vector<16xf32>
    %141 = vector.shape_cast %140 : vector<16xf32> to vector<16x1xf32>
    %142 = tpu.reciprocal %141 : vector<16x1xf32> -> vector<16x1xf32>
    %143 = vector.extract_strided_slice %128 {offsets = [0, 0], sizes = [16, 8], strides = [1, 1]} : vector<16x32xf32> to vector<16x8xf32>
    %cst_62 = arith.constant dense<0.000000e+00> : vector<16x8xf32>
    %144 = tpu.matmul %139, %143, %cst_62 {dimension_numbers = #tpu.dot_dimension_numbers<[1], [0], [0], [1], [0, 0, 1, 1], [], []>} : vector<16x16xf32>, vector<16x8xf32>, vector<16x8xf32> -> vector<16x8xf32>
    %145 = vector.broadcast %142 : vector<16x1xf32> to vector<16x8xf32>
    %146 = arith.mulf %144, %145 : vector<16x8xf32>
    %147 = vector.extract_strided_slice %126 {offsets = [0, 8], sizes = [16, 8], strides = [1, 1]} : vector<16x32xf32> to vector<16x8xf32>
    %148 = vector.extract_strided_slice %127 {offsets = [0, 8], sizes = [16, 8], strides = [1, 1]} : vector<16x32xf32> to vector<16x8xf32>
    %cst_63 = arith.constant dense<0.000000e+00> : vector<16x16xf32>
    %149 = tpu.matmul %147, %148, %cst_63 {dimension_numbers = #tpu.dot_dimension_numbers<[1], [1], [0], [0], [0, 0, 1, 0], [], []>} : vector<16x8xf32>, vector<16x8xf32>, vector<16x16xf32> -> vector<16x16xf32>
    %150 = arith.addf %149, %3 : vector<16x16xf32>
    %cst_64 = arith.constant dense<0xFF800000> : vector<16xf32>
    %151 = vector.multi_reduction <maximumf>, %150, %cst_64 [1] : vector<16x16xf32> to vector<16xf32>
    %152 = vector.shape_cast %151 : vector<16xf32> to vector<16x1xf32>
    %153 = vector.broadcast %152 : vector<16x1xf32> to vector<16x16xf32>
    %154 = arith.subf %150, %153 : vector<16x16xf32>
    %155 = math.exp %154 : vector<16x16xf32>
    %cst_65 = arith.constant dense<0.000000e+00> : vector<16xf32>
    %156 = vector.multi_reduction <add>, %155, %cst_65 [1] : vector<16x16xf32> to vector<16xf32>
    %157 = vector.shape_cast %156 : vector<16xf32> to vector<16x1xf32>
    %158 = tpu.reciprocal %157 : vector<16x1xf32> -> vector<16x1xf32>
    %159 = vector.extract_strided_slice %128 {offsets = [0, 8], sizes = [16, 8], strides = [1, 1]} : vector<16x32xf32> to vector<16x8xf32>
    %cst_66 = arith.constant dense<0.000000e+00> : vector<16x8xf32>
    %160 = tpu.matmul %155, %159, %cst_66 {dimension_numbers = #tpu.dot_dimension_numbers<[1], [0], [0], [1], [0, 0, 1, 1], [], []>} : vector<16x16xf32>, vector<16x8xf32>, vector<16x8xf32> -> vector<16x8xf32>
    %161 = vector.broadcast %158 : vector<16x1xf32> to vector<16x8xf32>
    %162 = arith.mulf %160, %161 : vector<16x8xf32>
    %163 = vector.extract_strided_slice %126 {offsets = [0, 16], sizes = [16, 8], strides = [1, 1]} : vector<16x32xf32> to vector<16x8xf32>
    %164 = vector.extract_strided_slice %127 {offsets = [0, 16], sizes = [16, 8], strides = [1, 1]} : vector<16x32xf32> to vector<16x8xf32>
    %cst_67 = arith.constant dense<0.000000e+00> : vector<16x16xf32>
    %165 = tpu.matmul %163, %164, %cst_67 {dimension_numbers = #tpu.dot_dimension_numbers<[1], [1], [0], [0], [0, 0, 1, 0], [], []>} : vector<16x8xf32>, vector<16x8xf32>, vector<16x16xf32> -> vector<16x16xf32>
    %166 = arith.addf %165, %3 : vector<16x16xf32>
    %cst_68 = arith.constant dense<0xFF800000> : vector<16xf32>
    %167 = vector.multi_reduction <maximumf>, %166, %cst_68 [1] : vector<16x16xf32> to vector<16xf32>
    %168 = vector.shape_cast %167 : vector<16xf32> to vector<16x1xf32>
    %169 = vector.broadcast %168 : vector<16x1xf32> to vector<16x16xf32>
    %170 = arith.subf %166, %169 : vector<16x16xf32>
    %171 = math.exp %170 : vector<16x16xf32>
    %cst_69 = arith.constant dense<0.000000e+00> : vector<16xf32>
    %172 = vector.multi_reduction <add>, %171, %cst_69 [1] : vector<16x16xf32> to vector<16xf32>
    %173 = vector.shape_cast %172 : vector<16xf32> to vector<16x1xf32>
    %174 = tpu.reciprocal %173 : vector<16x1xf32> -> vector<16x1xf32>
    %175 = vector.extract_strided_slice %128 {offsets = [0, 16], sizes = [16, 8], strides = [1, 1]} : vector<16x32xf32> to vector<16x8xf32>
    %cst_70 = arith.constant dense<0.000000e+00> : vector<16x8xf32>
    %176 = tpu.matmul %171, %175, %cst_70 {dimension_numbers = #tpu.dot_dimension_numbers<[1], [0], [0], [1], [0, 0, 1, 1], [], []>} : vector<16x16xf32>, vector<16x8xf32>, vector<16x8xf32> -> vector<16x8xf32>
    %177 = vector.broadcast %174 : vector<16x1xf32> to vector<16x8xf32>
    %178 = arith.mulf %176, %177 : vector<16x8xf32>
    %179 = vector.extract_strided_slice %126 {offsets = [0, 24], sizes = [16, 8], strides = [1, 1]} : vector<16x32xf32> to vector<16x8xf32>
    %180 = vector.extract_strided_slice %127 {offsets = [0, 24], sizes = [16, 8], strides = [1, 1]} : vector<16x32xf32> to vector<16x8xf32>
    %cst_71 = arith.constant dense<0.000000e+00> : vector<16x16xf32>
    %181 = tpu.matmul %179, %180, %cst_71 {dimension_numbers = #tpu.dot_dimension_numbers<[1], [1], [0], [0], [0, 0, 1, 0], [], []>} : vector<16x8xf32>, vector<16x8xf32>, vector<16x16xf32> -> vector<16x16xf32>
    %182 = arith.addf %181, %3 : vector<16x16xf32>
    %cst_72 = arith.constant dense<0xFF800000> : vector<16xf32>
    %183 = vector.multi_reduction <maximumf>, %182, %cst_72 [1] : vector<16x16xf32> to vector<16xf32>
    %184 = vector.shape_cast %183 : vector<16xf32> to vector<16x1xf32>
    %185 = vector.broadcast %184 : vector<16x1xf32> to vector<16x16xf32>
    %186 = arith.subf %182, %185 : vector<16x16xf32>
    %187 = math.exp %186 : vector<16x16xf32>
    %cst_73 = arith.constant dense<0.000000e+00> : vector<16xf32>
    %188 = vector.multi_reduction <add>, %187, %cst_73 [1] : vector<16x16xf32> to vector<16xf32>
    %189 = vector.shape_cast %188 : vector<16xf32> to vector<16x1xf32>
    %190 = tpu.reciprocal %189 : vector<16x1xf32> -> vector<16x1xf32>
    %191 = vector.extract_strided_slice %128 {offsets = [0, 24], sizes = [16, 8], strides = [1, 1]} : vector<16x32xf32> to vector<16x8xf32>
    %cst_74 = arith.constant dense<0.000000e+00> : vector<16x8xf32>
    %192 = tpu.matmul %187, %191, %cst_74 {dimension_numbers = #tpu.dot_dimension_numbers<[1], [0], [0], [1], [0, 0, 1, 1], [], []>} : vector<16x16xf32>, vector<16x8xf32>, vector<16x8xf32> -> vector<16x8xf32>
    %193 = vector.broadcast %190 : vector<16x1xf32> to vector<16x8xf32>
    %194 = arith.mulf %192, %193 : vector<16x8xf32>
    %195 = tpu.concatenate %146, %162, %178, %194 in 1 : vector<16x8xf32>, vector<16x8xf32>, vector<16x8xf32>, vector<16x8xf32> -> vector<16x32xf32>
    %cst_75 = arith.constant dense<0.000000e+00> : vector<16x32xf32>
    %196 = tpu.matmul %195, %130, %cst_75 {dimension_numbers = #tpu.dot_dimension_numbers<[1], [0], [0], [1], [0, 0, 1, 1], [], []>} : vector<16x32xf32>, vector<32x32xf32>, vector<16x32xf32> -> vector<16x32xf32>
    %197 = arith.addf %123, %196 : vector<16x32xf32>
    %c0_76 = arith.constant 0 : index
    %c2_77 = arith.constant 2 : index
    %c0_78 = arith.constant 0 : index
    %c0_79 = arith.constant 0 : index
    %198 = vector.load %arg9[%c0_76, %c2_77, %c0_78, %c0_79] : memref<2x6x8x32xf32, #tpu.memory_space<vmem>>, vector<1x1x8x32xf32>
    %199 = vector.shape_cast %198 : vector<1x1x8x32xf32> to vector<8x32xf32>
    %c0_80 = arith.constant 0 : index
    %c3 = arith.constant 3 : index
    %c0_81 = arith.constant 0 : index
    %c0_82 = arith.constant 0 : index
    %200 = vector.load %arg9[%c0_80, %c3, %c0_81, %c0_82] : memref<2x6x8x32xf32, #tpu.memory_space<vmem>>, vector<1x1x8x32xf32>
    %201 = vector.shape_cast %200 : vector<1x1x8x32xf32> to vector<8x32xf32>
    %202 = vector.shape_cast %197 : vector<16x32xf32> to vector<2x8x32xf32>
    %203 = arith.mulf %202, %202 : vector<2x8x32xf32>
    %204 = vector.shape_cast %202 : vector<2x8x32xf32> to vector<1x2x8x32xf32>
    %205 = vector.shape_cast %203 : vector<2x8x32xf32> to vector<1x2x8x32xf32>
    %206 = tpu.concatenate %204, %205 in 0 : vector<1x2x8x32xf32>, vector<1x2x8x32xf32> -> vector<2x2x8x32xf32>
    %cst_83 = arith.constant dense<0.000000e+00> : vector<2x2x8xf32>
    %207 = vector.multi_reduction <add>, %206, %cst_83 [3] : vector<2x2x8x32xf32> to vector<2x2x8xf32>
    %208 = vector.shape_cast %207 : vector<2x2x8xf32> to vector<2x2x8x1xf32>
    %cst_84 = arith.constant dense<0.000000e+00> : vector<2x2x1xf32>
    %209 = vector.multi_reduction <add>, %208, %cst_84 [2] : vector<2x2x8x1xf32> to vector<2x2x1xf32>
    %210 = vector.shape_cast %209 : vector<2x2x1xf32> to vector<2x2x1x1xf32>
    %211 = vector.extract_strided_slice %210 {offsets = [0, 0, 0, 0], sizes = [1, 2, 1, 1], strides = [1, 1, 1, 1]} : vector<2x2x1x1xf32> to vector<1x2x1x1xf32>
    %212 = vector.shape_cast %211 : vector<1x2x1x1xf32> to vector<2x1x1xf32>
    %cst_85 = arith.constant 2.560000e+02 : f32
    %213 = vector.broadcast %cst_85 : f32 to vector<2x1x1xf32>
    %214 = arith.divf %212, %213 : vector<2x1x1xf32>
    %215 = vector.extract_strided_slice %210 {offsets = [1, 0, 0, 0], sizes = [1, 2, 1, 1], strides = [1, 1, 1, 1]} : vector<2x2x1x1xf32> to vector<1x2x1x1xf32>
    %216 = vector.shape_cast %215 : vector<1x2x1x1xf32> to vector<2x1x1xf32>
    %cst_86 = arith.constant 2.560000e+02 : f32
    %217 = vector.broadcast %cst_86 : f32 to vector<2x1x1xf32>
    %218 = arith.mulf %217, %214 : vector<2x1x1xf32>
    %219 = arith.mulf %218, %214 : vector<2x1x1xf32>
    %220 = arith.subf %216, %219 : vector<2x1x1xf32>
    %cst_87 = arith.constant 2.550000e+02 : f32
    %221 = vector.broadcast %cst_87 : f32 to vector<2x1x1xf32>
    %222 = arith.divf %220, %221 : vector<2x1x1xf32>
    %cst_88 = arith.constant 9.99999974E-6 : f32
    %223 = vector.broadcast %cst_88 : f32 to vector<2x1x1xf32>
    %224 = arith.addf %222, %223 : vector<2x1x1xf32>
    %225 = math.rsqrt %224 : vector<2x1x1xf32>
    %226 = vector.broadcast %214 : vector<2x1x1xf32> to vector<2x8x32xf32>
    %227 = arith.subf %202, %226 : vector<2x8x32xf32>
    %228 = vector.broadcast %225 : vector<2x1x1xf32> to vector<2x8x32xf32>
    %229 = arith.mulf %227, %228 : vector<2x8x32xf32>
    %230 = vector.shape_cast %199 : vector<8x32xf32> to vector<1x8x32xf32>
    %231 = vector.broadcast %230 : vector<1x8x32xf32> to vector<2x8x32xf32>
    %232 = arith.mulf %229, %231 : vector<2x8x32xf32>
    %233 = vector.shape_cast %201 : vector<8x32xf32> to vector<1x8x32xf32>
    %234 = vector.broadcast %233 : vector<1x8x32xf32> to vector<2x8x32xf32>
    %235 = arith.addf %232, %234 : vector<2x8x32xf32>
    %236 = vector.shape_cast %235 : vector<2x8x32xf32> to vector<16x32xf32>
    %c0_89 = arith.constant 0 : index
    %c0_90 = arith.constant 0 : index
    %c0_91 = arith.constant 0 : index
    %237 = vector.load %arg7[%c0_89, %c0_90, %c0_91] : memref<2x32x128xf32, #tpu.memory_space<vmem>>, vector<1x32x128xf32>
    %238 = vector.shape_cast %237 : vector<1x32x128xf32> to vector<32x128xf32>
    %cst_92 = arith.constant dense<0.000000e+00> : vector<16x128xf32>
    %239 = tpu.matmul %236, %238, %cst_92 {dimension_numbers = #tpu.dot_dimension_numbers<[1], [0], [0], [1], [0, 0, 1, 1], [], []>} : vector<16x32xf32>, vector<32x128xf32>, vector<16x128xf32> -> vector<16x128xf32>
    %cst_93 = arith.constant 0.000000e+00 : f32
    %240 = vector.broadcast %cst_93 : f32 to vector<16x128xf32>
    %241 = arith.maximumf %239, %240 : vector<16x128xf32>
    %c0_94 = arith.constant 0 : index
    %c0_95 = arith.constant 0 : index
    %c0_96 = arith.constant 0 : index
    %242 = vector.load %arg8[%c0_94, %c0_95, %c0_96] : memref<2x128x32xf32, #tpu.memory_space<vmem>>, vector<1x128x32xf32>
    %243 = vector.shape_cast %242 : vector<1x128x32xf32> to vector<128x32xf32>
    %cst_97 = arith.constant dense<0.000000e+00> : vector<16x32xf32>
    %244 = tpu.matmul %241, %243, %cst_97 {dimension_numbers = #tpu.dot_dimension_numbers<[1], [0], [0], [1], [0, 0, 1, 1], [], []>} : vector<16x128xf32>, vector<128x32xf32>, vector<16x32xf32> -> vector<16x32xf32>
    %245 = arith.addf %236, %244 : vector<16x32xf32>
    %c0_98 = arith.constant 0 : index
    %c4 = arith.constant 4 : index
    %c0_99 = arith.constant 0 : index
    %c0_100 = arith.constant 0 : index
    %246 = vector.load %arg9[%c0_98, %c4, %c0_99, %c0_100] : memref<2x6x8x32xf32, #tpu.memory_space<vmem>>, vector<1x1x8x32xf32>
    %247 = vector.shape_cast %246 : vector<1x1x8x32xf32> to vector<8x32xf32>
    %c0_101 = arith.constant 0 : index
    %c5 = arith.constant 5 : index
    %c0_102 = arith.constant 0 : index
    %c0_103 = arith.constant 0 : index
    %248 = vector.load %arg9[%c0_101, %c5, %c0_102, %c0_103] : memref<2x6x8x32xf32, #tpu.memory_space<vmem>>, vector<1x1x8x32xf32>
    %249 = vector.shape_cast %248 : vector<1x1x8x32xf32> to vector<8x32xf32>
    %250 = vector.shape_cast %245 : vector<16x32xf32> to vector<2x8x32xf32>
    %251 = arith.mulf %250, %250 : vector<2x8x32xf32>
    %252 = vector.shape_cast %250 : vector<2x8x32xf32> to vector<1x2x8x32xf32>
    %253 = vector.shape_cast %251 : vector<2x8x32xf32> to vector<1x2x8x32xf32>
    %254 = tpu.concatenate %252, %253 in 0 : vector<1x2x8x32xf32>, vector<1x2x8x32xf32> -> vector<2x2x8x32xf32>
    %cst_104 = arith.constant dense<0.000000e+00> : vector<2x2x8xf32>
    %255 = vector.multi_reduction <add>, %254, %cst_104 [3] : vector<2x2x8x32xf32> to vector<2x2x8xf32>
    %256 = vector.shape_cast %255 : vector<2x2x8xf32> to vector<2x2x8x1xf32>
    %cst_105 = arith.constant dense<0.000000e+00> : vector<2x2x1xf32>
    %257 = vector.multi_reduction <add>, %256, %cst_105 [2] : vector<2x2x8x1xf32> to vector<2x2x1xf32>
    %258 = vector.shape_cast %257 : vector<2x2x1xf32> to vector<2x2x1x1xf32>
    %259 = vector.extract_strided_slice %258 {offsets = [0, 0, 0, 0], sizes = [1, 2, 1, 1], strides = [1, 1, 1, 1]} : vector<2x2x1x1xf32> to vector<1x2x1x1xf32>
    %260 = vector.shape_cast %259 : vector<1x2x1x1xf32> to vector<2x1x1xf32>
    %cst_106 = arith.constant 2.560000e+02 : f32
    %261 = vector.broadcast %cst_106 : f32 to vector<2x1x1xf32>
    %262 = arith.divf %260, %261 : vector<2x1x1xf32>
    %263 = vector.extract_strided_slice %258 {offsets = [1, 0, 0, 0], sizes = [1, 2, 1, 1], strides = [1, 1, 1, 1]} : vector<2x2x1x1xf32> to vector<1x2x1x1xf32>
    %264 = vector.shape_cast %263 : vector<1x2x1x1xf32> to vector<2x1x1xf32>
    %cst_107 = arith.constant 2.560000e+02 : f32
    %265 = vector.broadcast %cst_107 : f32 to vector<2x1x1xf32>
    %266 = arith.mulf %265, %262 : vector<2x1x1xf32>
    %267 = arith.mulf %266, %262 : vector<2x1x1xf32>
    %268 = arith.subf %264, %267 : vector<2x1x1xf32>
    %cst_108 = arith.constant 2.550000e+02 : f32
    %269 = vector.broadcast %cst_108 : f32 to vector<2x1x1xf32>
    %270 = arith.divf %268, %269 : vector<2x1x1xf32>
    %cst_109 = arith.constant 9.99999974E-6 : f32
    %271 = vector.broadcast %cst_109 : f32 to vector<2x1x1xf32>
    %272 = arith.addf %270, %271 : vector<2x1x1xf32>
    %273 = math.rsqrt %272 : vector<2x1x1xf32>
    %274 = vector.broadcast %262 : vector<2x1x1xf32> to vector<2x8x32xf32>
    %275 = arith.subf %250, %274 : vector<2x8x32xf32>
    %276 = vector.broadcast %273 : vector<2x1x1xf32> to vector<2x8x32xf32>
    %277 = arith.mulf %275, %276 : vector<2x8x32xf32>
    %278 = vector.shape_cast %247 : vector<8x32xf32> to vector<1x8x32xf32>
    %279 = vector.broadcast %278 : vector<1x8x32xf32> to vector<2x8x32xf32>
    %280 = arith.mulf %277, %279 : vector<2x8x32xf32>
    %281 = vector.shape_cast %249 : vector<8x32xf32> to vector<1x8x32xf32>
    %282 = vector.broadcast %281 : vector<1x8x32xf32> to vector<2x8x32xf32>
    %283 = arith.addf %280, %282 : vector<2x8x32xf32>
    %284 = vector.shape_cast %283 : vector<2x8x32xf32> to vector<16x32xf32>
    %c1_110 = arith.constant 1 : index
    %c0_111 = arith.constant 0 : index
    %c0_112 = arith.constant 0 : index
    %285 = vector.load %arg4[%c1_110, %c0_111, %c0_112] : memref<2x32x96xf32, #tpu.memory_space<vmem>>, vector<1x32x96xf32>
    %286 = vector.shape_cast %285 : vector<1x32x96xf32> to vector<32x96xf32>
    %cst_113 = arith.constant dense<0.000000e+00> : vector<16x96xf32>
    %287 = tpu.matmul %284, %286, %cst_113 {dimension_numbers = #tpu.dot_dimension_numbers<[1], [0], [0], [1], [0, 0, 1, 1], [], []>} : vector<16x32xf32>, vector<32x96xf32>, vector<16x96xf32> -> vector<16x96xf32>
    %288 = vector.extract_strided_slice %287 {offsets = [0, 0], sizes = [16, 32], strides = [1, 1]} : vector<16x96xf32> to vector<16x32xf32>
    %289 = vector.extract_strided_slice %287 {offsets = [0, 32], sizes = [16, 32], strides = [1, 1]} : vector<16x96xf32> to vector<16x32xf32>
    %290 = vector.extract_strided_slice %287 {offsets = [0, 64], sizes = [16, 32], strides = [1, 1]} : vector<16x96xf32> to vector<16x32xf32>
    %c1_114 = arith.constant 1 : index
    %c1_115 = arith.constant 1 : index
    %c0_116 = arith.constant 0 : index
    %c0_117 = arith.constant 0 : index
    %291 = vector.load %arg6[%c1_114, %c1_115, %c0_116, %c0_117] : memref<2x3x32x32xf32, #tpu.memory_space<vmem>>, vector<1x1x32x32xf32>
    %292 = vector.shape_cast %291 : vector<1x1x32x32xf32> to vector<32x32xf32>
    %293 = vector.extract_strided_slice %288 {offsets = [0, 0], sizes = [16, 8], strides = [1, 1]} : vector<16x32xf32> to vector<16x8xf32>
    %294 = vector.extract_strided_slice %289 {offsets = [0, 0], sizes = [16, 8], strides = [1, 1]} : vector<16x32xf32> to vector<16x8xf32>
    %cst_118 = arith.constant dense<0.000000e+00> : vector<16x16xf32>
    %295 = tpu.matmul %293, %294, %cst_118 {dimension_numbers = #tpu.dot_dimension_numbers<[1], [1], [0], [0], [0, 0, 1, 0], [], []>} : vector<16x8xf32>, vector<16x8xf32>, vector<16x16xf32> -> vector<16x16xf32>
    %296 = arith.addf %295, %1 : vector<16x16xf32>
    %cst_119 = arith.constant dense<0xFF800000> : vector<16xf32>
    %297 = vector.multi_reduction <maximumf>, %296, %cst_119 [1] : vector<16x16xf32> to vector<16xf32>
    %298 = vector.shape_cast %297 : vector<16xf32> to vector<16x1xf32>
    %299 = vector.broadcast %298 : vector<16x1xf32> to vector<16x16xf32>
    %300 = arith.subf %296, %299 : vector<16x16xf32>
    %301 = math.exp %300 : vector<16x16xf32>
    %cst_120 = arith.constant dense<0.000000e+00> : vector<16xf32>
    %302 = vector.multi_reduction <add>, %301, %cst_120 [1] : vector<16x16xf32> to vector<16xf32>
    %303 = vector.shape_cast %302 : vector<16xf32> to vector<16x1xf32>
    %304 = tpu.reciprocal %303 : vector<16x1xf32> -> vector<16x1xf32>
    %305 = vector.extract_strided_slice %290 {offsets = [0, 0], sizes = [16, 8], strides = [1, 1]} : vector<16x32xf32> to vector<16x8xf32>
    %cst_121 = arith.constant dense<0.000000e+00> : vector<16x8xf32>
    %306 = tpu.matmul %301, %305, %cst_121 {dimension_numbers = #tpu.dot_dimension_numbers<[1], [0], [0], [1], [0, 0, 1, 1], [], []>} : vector<16x16xf32>, vector<16x8xf32>, vector<16x8xf32> -> vector<16x8xf32>
    %307 = vector.broadcast %304 : vector<16x1xf32> to vector<16x8xf32>
    %308 = arith.mulf %306, %307 : vector<16x8xf32>
    %309 = vector.extract_strided_slice %288 {offsets = [0, 8], sizes = [16, 8], strides = [1, 1]} : vector<16x32xf32> to vector<16x8xf32>
    %310 = vector.extract_strided_slice %289 {offsets = [0, 8], sizes = [16, 8], strides = [1, 1]} : vector<16x32xf32> to vector<16x8xf32>
    %cst_122 = arith.constant dense<0.000000e+00> : vector<16x16xf32>
    %311 = tpu.matmul %309, %310, %cst_122 {dimension_numbers = #tpu.dot_dimension_numbers<[1], [1], [0], [0], [0, 0, 1, 0], [], []>} : vector<16x8xf32>, vector<16x8xf32>, vector<16x16xf32> -> vector<16x16xf32>
    %312 = arith.addf %311, %1 : vector<16x16xf32>
    %cst_123 = arith.constant dense<0xFF800000> : vector<16xf32>
    %313 = vector.multi_reduction <maximumf>, %312, %cst_123 [1] : vector<16x16xf32> to vector<16xf32>
    %314 = vector.shape_cast %313 : vector<16xf32> to vector<16x1xf32>
    %315 = vector.broadcast %314 : vector<16x1xf32> to vector<16x16xf32>
    %316 = arith.subf %312, %315 : vector<16x16xf32>
    %317 = math.exp %316 : vector<16x16xf32>
    %cst_124 = arith.constant dense<0.000000e+00> : vector<16xf32>
    %318 = vector.multi_reduction <add>, %317, %cst_124 [1] : vector<16x16xf32> to vector<16xf32>
    %319 = vector.shape_cast %318 : vector<16xf32> to vector<16x1xf32>
    %320 = tpu.reciprocal %319 : vector<16x1xf32> -> vector<16x1xf32>
    %321 = vector.extract_strided_slice %290 {offsets = [0, 8], sizes = [16, 8], strides = [1, 1]} : vector<16x32xf32> to vector<16x8xf32>
    %cst_125 = arith.constant dense<0.000000e+00> : vector<16x8xf32>
    %322 = tpu.matmul %317, %321, %cst_125 {dimension_numbers = #tpu.dot_dimension_numbers<[1], [0], [0], [1], [0, 0, 1, 1], [], []>} : vector<16x16xf32>, vector<16x8xf32>, vector<16x8xf32> -> vector<16x8xf32>
    %323 = vector.broadcast %320 : vector<16x1xf32> to vector<16x8xf32>
    %324 = arith.mulf %322, %323 : vector<16x8xf32>
    %325 = vector.extract_strided_slice %288 {offsets = [0, 16], sizes = [16, 8], strides = [1, 1]} : vector<16x32xf32> to vector<16x8xf32>
    %326 = vector.extract_strided_slice %289 {offsets = [0, 16], sizes = [16, 8], strides = [1, 1]} : vector<16x32xf32> to vector<16x8xf32>
    %cst_126 = arith.constant dense<0.000000e+00> : vector<16x16xf32>
    %327 = tpu.matmul %325, %326, %cst_126 {dimension_numbers = #tpu.dot_dimension_numbers<[1], [1], [0], [0], [0, 0, 1, 0], [], []>} : vector<16x8xf32>, vector<16x8xf32>, vector<16x16xf32> -> vector<16x16xf32>
    %328 = arith.addf %327, %1 : vector<16x16xf32>
    %cst_127 = arith.constant dense<0xFF800000> : vector<16xf32>
    %329 = vector.multi_reduction <maximumf>, %328, %cst_127 [1] : vector<16x16xf32> to vector<16xf32>
    %330 = vector.shape_cast %329 : vector<16xf32> to vector<16x1xf32>
    %331 = vector.broadcast %330 : vector<16x1xf32> to vector<16x16xf32>
    %332 = arith.subf %328, %331 : vector<16x16xf32>
    %333 = math.exp %332 : vector<16x16xf32>
    %cst_128 = arith.constant dense<0.000000e+00> : vector<16xf32>
    %334 = vector.multi_reduction <add>, %333, %cst_128 [1] : vector<16x16xf32> to vector<16xf32>
    %335 = vector.shape_cast %334 : vector<16xf32> to vector<16x1xf32>
    %336 = tpu.reciprocal %335 : vector<16x1xf32> -> vector<16x1xf32>
    %337 = vector.extract_strided_slice %290 {offsets = [0, 16], sizes = [16, 8], strides = [1, 1]} : vector<16x32xf32> to vector<16x8xf32>
    %cst_129 = arith.constant dense<0.000000e+00> : vector<16x8xf32>
    %338 = tpu.matmul %333, %337, %cst_129 {dimension_numbers = #tpu.dot_dimension_numbers<[1], [0], [0], [1], [0, 0, 1, 1], [], []>} : vector<16x16xf32>, vector<16x8xf32>, vector<16x8xf32> -> vector<16x8xf32>
    %339 = vector.broadcast %336 : vector<16x1xf32> to vector<16x8xf32>
    %340 = arith.mulf %338, %339 : vector<16x8xf32>
    %341 = vector.extract_strided_slice %288 {offsets = [0, 24], sizes = [16, 8], strides = [1, 1]} : vector<16x32xf32> to vector<16x8xf32>
    %342 = vector.extract_strided_slice %289 {offsets = [0, 24], sizes = [16, 8], strides = [1, 1]} : vector<16x32xf32> to vector<16x8xf32>
    %cst_130 = arith.constant dense<0.000000e+00> : vector<16x16xf32>
    %343 = tpu.matmul %341, %342, %cst_130 {dimension_numbers = #tpu.dot_dimension_numbers<[1], [1], [0], [0], [0, 0, 1, 0], [], []>} : vector<16x8xf32>, vector<16x8xf32>, vector<16x16xf32> -> vector<16x16xf32>
    %344 = arith.addf %343, %1 : vector<16x16xf32>
    %cst_131 = arith.constant dense<0xFF800000> : vector<16xf32>
    %345 = vector.multi_reduction <maximumf>, %344, %cst_131 [1] : vector<16x16xf32> to vector<16xf32>
    %346 = vector.shape_cast %345 : vector<16xf32> to vector<16x1xf32>
    %347 = vector.broadcast %346 : vector<16x1xf32> to vector<16x16xf32>
    %348 = arith.subf %344, %347 : vector<16x16xf32>
    %349 = math.exp %348 : vector<16x16xf32>
    %cst_132 = arith.constant dense<0.000000e+00> : vector<16xf32>
    %350 = vector.multi_reduction <add>, %349, %cst_132 [1] : vector<16x16xf32> to vector<16xf32>
    %351 = vector.shape_cast %350 : vector<16xf32> to vector<16x1xf32>
    %352 = tpu.reciprocal %351 : vector<16x1xf32> -> vector<16x1xf32>
    %353 = vector.extract_strided_slice %290 {offsets = [0, 24], sizes = [16, 8], strides = [1, 1]} : vector<16x32xf32> to vector<16x8xf32>
    %cst_133 = arith.constant dense<0.000000e+00> : vector<16x8xf32>
    %354 = tpu.matmul %349, %353, %cst_133 {dimension_numbers = #tpu.dot_dimension_numbers<[1], [0], [0], [1], [0, 0, 1, 1], [], []>} : vector<16x16xf32>, vector<16x8xf32>, vector<16x8xf32> -> vector<16x8xf32>
    %355 = vector.broadcast %352 : vector<16x1xf32> to vector<16x8xf32>
    %356 = arith.mulf %354, %355 : vector<16x8xf32>
    %357 = tpu.concatenate %308, %324, %340, %356 in 1 : vector<16x8xf32>, vector<16x8xf32>, vector<16x8xf32>, vector<16x8xf32> -> vector<16x32xf32>
    %cst_134 = arith.constant dense<0.000000e+00> : vector<16x32xf32>
    %358 = tpu.matmul %357, %292, %cst_134 {dimension_numbers = #tpu.dot_dimension_numbers<[1], [0], [0], [1], [0, 0, 1, 1], [], []>} : vector<16x32xf32>, vector<32x32xf32>, vector<16x32xf32> -> vector<16x32xf32>
    %359 = arith.addf %284, %358 : vector<16x32xf32>
    %c1_135 = arith.constant 1 : index
    %c0_136 = arith.constant 0 : index
    %c0_137 = arith.constant 0 : index
    %c0_138 = arith.constant 0 : index
    %360 = vector.load %arg9[%c1_135, %c0_136, %c0_137, %c0_138] : memref<2x6x8x32xf32, #tpu.memory_space<vmem>>, vector<1x1x8x32xf32>
    %361 = vector.shape_cast %360 : vector<1x1x8x32xf32> to vector<8x32xf32>
    %c1_139 = arith.constant 1 : index
    %c1_140 = arith.constant 1 : index
    %c0_141 = arith.constant 0 : index
    %c0_142 = arith.constant 0 : index
    %362 = vector.load %arg9[%c1_139, %c1_140, %c0_141, %c0_142] : memref<2x6x8x32xf32, #tpu.memory_space<vmem>>, vector<1x1x8x32xf32>
    %363 = vector.shape_cast %362 : vector<1x1x8x32xf32> to vector<8x32xf32>
    %364 = vector.shape_cast %359 : vector<16x32xf32> to vector<2x8x32xf32>
    %365 = arith.mulf %364, %364 : vector<2x8x32xf32>
    %366 = vector.shape_cast %364 : vector<2x8x32xf32> to vector<1x2x8x32xf32>
    %367 = vector.shape_cast %365 : vector<2x8x32xf32> to vector<1x2x8x32xf32>
    %368 = tpu.concatenate %366, %367 in 0 : vector<1x2x8x32xf32>, vector<1x2x8x32xf32> -> vector<2x2x8x32xf32>
    %cst_143 = arith.constant dense<0.000000e+00> : vector<2x2x8xf32>
    %369 = vector.multi_reduction <add>, %368, %cst_143 [3] : vector<2x2x8x32xf32> to vector<2x2x8xf32>
    %370 = vector.shape_cast %369 : vector<2x2x8xf32> to vector<2x2x8x1xf32>
    %cst_144 = arith.constant dense<0.000000e+00> : vector<2x2x1xf32>
    %371 = vector.multi_reduction <add>, %370, %cst_144 [2] : vector<2x2x8x1xf32> to vector<2x2x1xf32>
    %372 = vector.shape_cast %371 : vector<2x2x1xf32> to vector<2x2x1x1xf32>
    %373 = vector.extract_strided_slice %372 {offsets = [0, 0, 0, 0], sizes = [1, 2, 1, 1], strides = [1, 1, 1, 1]} : vector<2x2x1x1xf32> to vector<1x2x1x1xf32>
    %374 = vector.shape_cast %373 : vector<1x2x1x1xf32> to vector<2x1x1xf32>
    %cst_145 = arith.constant 2.560000e+02 : f32
    %375 = vector.broadcast %cst_145 : f32 to vector<2x1x1xf32>
    %376 = arith.divf %374, %375 : vector<2x1x1xf32>
    %377 = vector.extract_strided_slice %372 {offsets = [1, 0, 0, 0], sizes = [1, 2, 1, 1], strides = [1, 1, 1, 1]} : vector<2x2x1x1xf32> to vector<1x2x1x1xf32>
    %378 = vector.shape_cast %377 : vector<1x2x1x1xf32> to vector<2x1x1xf32>
    %cst_146 = arith.constant 2.560000e+02 : f32
    %379 = vector.broadcast %cst_146 : f32 to vector<2x1x1xf32>
    %380 = arith.mulf %379, %376 : vector<2x1x1xf32>
    %381 = arith.mulf %380, %376 : vector<2x1x1xf32>
    %382 = arith.subf %378, %381 : vector<2x1x1xf32>
    %cst_147 = arith.constant 2.550000e+02 : f32
    %383 = vector.broadcast %cst_147 : f32 to vector<2x1x1xf32>
    %384 = arith.divf %382, %383 : vector<2x1x1xf32>
    %cst_148 = arith.constant 9.99999974E-6 : f32
    %385 = vector.broadcast %cst_148 : f32 to vector<2x1x1xf32>
    %386 = arith.addf %384, %385 : vector<2x1x1xf32>
    %387 = math.rsqrt %386 : vector<2x1x1xf32>
    %388 = vector.broadcast %376 : vector<2x1x1xf32> to vector<2x8x32xf32>
    %389 = arith.subf %364, %388 : vector<2x8x32xf32>
    %390 = vector.broadcast %387 : vector<2x1x1xf32> to vector<2x8x32xf32>
    %391 = arith.mulf %389, %390 : vector<2x8x32xf32>
    %392 = vector.shape_cast %361 : vector<8x32xf32> to vector<1x8x32xf32>
    %393 = vector.broadcast %392 : vector<1x8x32xf32> to vector<2x8x32xf32>
    %394 = arith.mulf %391, %393 : vector<2x8x32xf32>
    %395 = vector.shape_cast %363 : vector<8x32xf32> to vector<1x8x32xf32>
    %396 = vector.broadcast %395 : vector<1x8x32xf32> to vector<2x8x32xf32>
    %397 = arith.addf %394, %396 : vector<2x8x32xf32>
    %398 = vector.shape_cast %397 : vector<2x8x32xf32> to vector<16x32xf32>
    %c1_149 = arith.constant 1 : index
    %c0_150 = arith.constant 0 : index
    %c0_151 = arith.constant 0 : index
    %c0_152 = arith.constant 0 : index
    %399 = vector.load %arg6[%c1_149, %c0_150, %c0_151, %c0_152] : memref<2x3x32x32xf32, #tpu.memory_space<vmem>>, vector<1x1x32x32xf32>
    %400 = vector.shape_cast %399 : vector<1x1x32x32xf32> to vector<32x32xf32>
    %cst_153 = arith.constant dense<0.000000e+00> : vector<16x32xf32>
    %401 = tpu.matmul %398, %400, %cst_153 {dimension_numbers = #tpu.dot_dimension_numbers<[1], [0], [0], [1], [0, 0, 1, 1], [], []>} : vector<16x32xf32>, vector<32x32xf32>, vector<16x32xf32> -> vector<16x32xf32>
    %402 = vector.extract_strided_slice %9 {offsets = [0, 64], sizes = [16, 32], strides = [1, 1]} : vector<16x128xf32> to vector<16x32xf32>
    %403 = vector.extract_strided_slice %9 {offsets = [0, 96], sizes = [16, 32], strides = [1, 1]} : vector<16x128xf32> to vector<16x32xf32>
    %c1_154 = arith.constant 1 : index
    %c2_155 = arith.constant 2 : index
    %c0_156 = arith.constant 0 : index
    %c0_157 = arith.constant 0 : index
    %404 = vector.load %arg6[%c1_154, %c2_155, %c0_156, %c0_157] : memref<2x3x32x32xf32, #tpu.memory_space<vmem>>, vector<1x1x32x32xf32>
    %405 = vector.shape_cast %404 : vector<1x1x32x32xf32> to vector<32x32xf32>
    %406 = vector.extract_strided_slice %401 {offsets = [0, 0], sizes = [16, 8], strides = [1, 1]} : vector<16x32xf32> to vector<16x8xf32>
    %407 = vector.extract_strided_slice %402 {offsets = [0, 0], sizes = [16, 8], strides = [1, 1]} : vector<16x32xf32> to vector<16x8xf32>
    %cst_158 = arith.constant dense<0.000000e+00> : vector<16x16xf32>
    %408 = tpu.matmul %406, %407, %cst_158 {dimension_numbers = #tpu.dot_dimension_numbers<[1], [1], [0], [0], [0, 0, 1, 0], [], []>} : vector<16x8xf32>, vector<16x8xf32>, vector<16x16xf32> -> vector<16x16xf32>
    %409 = arith.addf %408, %3 : vector<16x16xf32>
    %cst_159 = arith.constant dense<0xFF800000> : vector<16xf32>
    %410 = vector.multi_reduction <maximumf>, %409, %cst_159 [1] : vector<16x16xf32> to vector<16xf32>
    %411 = vector.shape_cast %410 : vector<16xf32> to vector<16x1xf32>
    %412 = vector.broadcast %411 : vector<16x1xf32> to vector<16x16xf32>
    %413 = arith.subf %409, %412 : vector<16x16xf32>
    %414 = math.exp %413 : vector<16x16xf32>
    %cst_160 = arith.constant dense<0.000000e+00> : vector<16xf32>
    %415 = vector.multi_reduction <add>, %414, %cst_160 [1] : vector<16x16xf32> to vector<16xf32>
    %416 = vector.shape_cast %415 : vector<16xf32> to vector<16x1xf32>
    %417 = tpu.reciprocal %416 : vector<16x1xf32> -> vector<16x1xf32>
    %418 = vector.extract_strided_slice %403 {offsets = [0, 0], sizes = [16, 8], strides = [1, 1]} : vector<16x32xf32> to vector<16x8xf32>
    %cst_161 = arith.constant dense<0.000000e+00> : vector<16x8xf32>
    %419 = tpu.matmul %414, %418, %cst_161 {dimension_numbers = #tpu.dot_dimension_numbers<[1], [0], [0], [1], [0, 0, 1, 1], [], []>} : vector<16x16xf32>, vector<16x8xf32>, vector<16x8xf32> -> vector<16x8xf32>
    %420 = vector.broadcast %417 : vector<16x1xf32> to vector<16x8xf32>
    %421 = arith.mulf %419, %420 : vector<16x8xf32>
    %422 = vector.extract_strided_slice %401 {offsets = [0, 8], sizes = [16, 8], strides = [1, 1]} : vector<16x32xf32> to vector<16x8xf32>
    %423 = vector.extract_strided_slice %402 {offsets = [0, 8], sizes = [16, 8], strides = [1, 1]} : vector<16x32xf32> to vector<16x8xf32>
    %cst_162 = arith.constant dense<0.000000e+00> : vector<16x16xf32>
    %424 = tpu.matmul %422, %423, %cst_162 {dimension_numbers = #tpu.dot_dimension_numbers<[1], [1], [0], [0], [0, 0, 1, 0], [], []>} : vector<16x8xf32>, vector<16x8xf32>, vector<16x16xf32> -> vector<16x16xf32>
    %425 = arith.addf %424, %3 : vector<16x16xf32>
    %cst_163 = arith.constant dense<0xFF800000> : vector<16xf32>
    %426 = vector.multi_reduction <maximumf>, %425, %cst_163 [1] : vector<16x16xf32> to vector<16xf32>
    %427 = vector.shape_cast %426 : vector<16xf32> to vector<16x1xf32>
    %428 = vector.broadcast %427 : vector<16x1xf32> to vector<16x16xf32>
    %429 = arith.subf %425, %428 : vector<16x16xf32>
    %430 = math.exp %429 : vector<16x16xf32>
    %cst_164 = arith.constant dense<0.000000e+00> : vector<16xf32>
    %431 = vector.multi_reduction <add>, %430, %cst_164 [1] : vector<16x16xf32> to vector<16xf32>
    %432 = vector.shape_cast %431 : vector<16xf32> to vector<16x1xf32>
    %433 = tpu.reciprocal %432 : vector<16x1xf32> -> vector<16x1xf32>
    %434 = vector.extract_strided_slice %403 {offsets = [0, 8], sizes = [16, 8], strides = [1, 1]} : vector<16x32xf32> to vector<16x8xf32>
    %cst_165 = arith.constant dense<0.000000e+00> : vector<16x8xf32>
    %435 = tpu.matmul %430, %434, %cst_165 {dimension_numbers = #tpu.dot_dimension_numbers<[1], [0], [0], [1], [0, 0, 1, 1], [], []>} : vector<16x16xf32>, vector<16x8xf32>, vector<16x8xf32> -> vector<16x8xf32>
    %436 = vector.broadcast %433 : vector<16x1xf32> to vector<16x8xf32>
    %437 = arith.mulf %435, %436 : vector<16x8xf32>
    %438 = vector.extract_strided_slice %401 {offsets = [0, 16], sizes = [16, 8], strides = [1, 1]} : vector<16x32xf32> to vector<16x8xf32>
    %439 = vector.extract_strided_slice %402 {offsets = [0, 16], sizes = [16, 8], strides = [1, 1]} : vector<16x32xf32> to vector<16x8xf32>
    %cst_166 = arith.constant dense<0.000000e+00> : vector<16x16xf32>
    %440 = tpu.matmul %438, %439, %cst_166 {dimension_numbers = #tpu.dot_dimension_numbers<[1], [1], [0], [0], [0, 0, 1, 0], [], []>} : vector<16x8xf32>, vector<16x8xf32>, vector<16x16xf32> -> vector<16x16xf32>
    %441 = arith.addf %440, %3 : vector<16x16xf32>
    %cst_167 = arith.constant dense<0xFF800000> : vector<16xf32>
    %442 = vector.multi_reduction <maximumf>, %441, %cst_167 [1] : vector<16x16xf32> to vector<16xf32>
    %443 = vector.shape_cast %442 : vector<16xf32> to vector<16x1xf32>
    %444 = vector.broadcast %443 : vector<16x1xf32> to vector<16x16xf32>
    %445 = arith.subf %441, %444 : vector<16x16xf32>
    %446 = math.exp %445 : vector<16x16xf32>
    %cst_168 = arith.constant dense<0.000000e+00> : vector<16xf32>
    %447 = vector.multi_reduction <add>, %446, %cst_168 [1] : vector<16x16xf32> to vector<16xf32>
    %448 = vector.shape_cast %447 : vector<16xf32> to vector<16x1xf32>
    %449 = tpu.reciprocal %448 : vector<16x1xf32> -> vector<16x1xf32>
    %450 = vector.extract_strided_slice %403 {offsets = [0, 16], sizes = [16, 8], strides = [1, 1]} : vector<16x32xf32> to vector<16x8xf32>
    %cst_169 = arith.constant dense<0.000000e+00> : vector<16x8xf32>
    %451 = tpu.matmul %446, %450, %cst_169 {dimension_numbers = #tpu.dot_dimension_numbers<[1], [0], [0], [1], [0, 0, 1, 1], [], []>} : vector<16x16xf32>, vector<16x8xf32>, vector<16x8xf32> -> vector<16x8xf32>
    %452 = vector.broadcast %449 : vector<16x1xf32> to vector<16x8xf32>
    %453 = arith.mulf %451, %452 : vector<16x8xf32>
    %454 = vector.extract_strided_slice %401 {offsets = [0, 24], sizes = [16, 8], strides = [1, 1]} : vector<16x32xf32> to vector<16x8xf32>
    %455 = vector.extract_strided_slice %402 {offsets = [0, 24], sizes = [16, 8], strides = [1, 1]} : vector<16x32xf32> to vector<16x8xf32>
    %cst_170 = arith.constant dense<0.000000e+00> : vector<16x16xf32>
    %456 = tpu.matmul %454, %455, %cst_170 {dimension_numbers = #tpu.dot_dimension_numbers<[1], [1], [0], [0], [0, 0, 1, 0], [], []>} : vector<16x8xf32>, vector<16x8xf32>, vector<16x16xf32> -> vector<16x16xf32>
    %457 = arith.addf %456, %3 : vector<16x16xf32>
    %cst_171 = arith.constant dense<0xFF800000> : vector<16xf32>
    %458 = vector.multi_reduction <maximumf>, %457, %cst_171 [1] : vector<16x16xf32> to vector<16xf32>
    %459 = vector.shape_cast %458 : vector<16xf32> to vector<16x1xf32>
    %460 = vector.broadcast %459 : vector<16x1xf32> to vector<16x16xf32>
    %461 = arith.subf %457, %460 : vector<16x16xf32>
    %462 = math.exp %461 : vector<16x16xf32>
    %cst_172 = arith.constant dense<0.000000e+00> : vector<16xf32>
    %463 = vector.multi_reduction <add>, %462, %cst_172 [1] : vector<16x16xf32> to vector<16xf32>
    %464 = vector.shape_cast %463 : vector<16xf32> to vector<16x1xf32>
    %465 = tpu.reciprocal %464 : vector<16x1xf32> -> vector<16x1xf32>
    %466 = vector.extract_strided_slice %403 {offsets = [0, 24], sizes = [16, 8], strides = [1, 1]} : vector<16x32xf32> to vector<16x8xf32>
    %cst_173 = arith.constant dense<0.000000e+00> : vector<16x8xf32>
    %467 = tpu.matmul %462, %466, %cst_173 {dimension_numbers = #tpu.dot_dimension_numbers<[1], [0], [0], [1], [0, 0, 1, 1], [], []>} : vector<16x16xf32>, vector<16x8xf32>, vector<16x8xf32> -> vector<16x8xf32>
    %468 = vector.broadcast %465 : vector<16x1xf32> to vector<16x8xf32>
    %469 = arith.mulf %467, %468 : vector<16x8xf32>
    %470 = tpu.concatenate %421, %437, %453, %469 in 1 : vector<16x8xf32>, vector<16x8xf32>, vector<16x8xf32>, vector<16x8xf32> -> vector<16x32xf32>
    %cst_174 = arith.constant dense<0.000000e+00> : vector<16x32xf32>
    %471 = tpu.matmul %470, %405, %cst_174 {dimension_numbers = #tpu.dot_dimension_numbers<[1], [0], [0], [1], [0, 0, 1, 1], [], []>} : vector<16x32xf32>, vector<32x32xf32>, vector<16x32xf32> -> vector<16x32xf32>
    %472 = arith.addf %398, %471 : vector<16x32xf32>
    %c1_175 = arith.constant 1 : index
    %c2_176 = arith.constant 2 : index
    %c0_177 = arith.constant 0 : index
    %c0_178 = arith.constant 0 : index
    %473 = vector.load %arg9[%c1_175, %c2_176, %c0_177, %c0_178] : memref<2x6x8x32xf32, #tpu.memory_space<vmem>>, vector<1x1x8x32xf32>
    %474 = vector.shape_cast %473 : vector<1x1x8x32xf32> to vector<8x32xf32>
    %c1_179 = arith.constant 1 : index
    %c3_180 = arith.constant 3 : index
    %c0_181 = arith.constant 0 : index
    %c0_182 = arith.constant 0 : index
    %475 = vector.load %arg9[%c1_179, %c3_180, %c0_181, %c0_182] : memref<2x6x8x32xf32, #tpu.memory_space<vmem>>, vector<1x1x8x32xf32>
    %476 = vector.shape_cast %475 : vector<1x1x8x32xf32> to vector<8x32xf32>
    %477 = vector.shape_cast %472 : vector<16x32xf32> to vector<2x8x32xf32>
    %478 = arith.mulf %477, %477 : vector<2x8x32xf32>
    %479 = vector.shape_cast %477 : vector<2x8x32xf32> to vector<1x2x8x32xf32>
    %480 = vector.shape_cast %478 : vector<2x8x32xf32> to vector<1x2x8x32xf32>
    %481 = tpu.concatenate %479, %480 in 0 : vector<1x2x8x32xf32>, vector<1x2x8x32xf32> -> vector<2x2x8x32xf32>
    %cst_183 = arith.constant dense<0.000000e+00> : vector<2x2x8xf32>
    %482 = vector.multi_reduction <add>, %481, %cst_183 [3] : vector<2x2x8x32xf32> to vector<2x2x8xf32>
    %483 = vector.shape_cast %482 : vector<2x2x8xf32> to vector<2x2x8x1xf32>
    %cst_184 = arith.constant dense<0.000000e+00> : vector<2x2x1xf32>
    %484 = vector.multi_reduction <add>, %483, %cst_184 [2] : vector<2x2x8x1xf32> to vector<2x2x1xf32>
    %485 = vector.shape_cast %484 : vector<2x2x1xf32> to vector<2x2x1x1xf32>
    %486 = vector.extract_strided_slice %485 {offsets = [0, 0, 0, 0], sizes = [1, 2, 1, 1], strides = [1, 1, 1, 1]} : vector<2x2x1x1xf32> to vector<1x2x1x1xf32>
    %487 = vector.shape_cast %486 : vector<1x2x1x1xf32> to vector<2x1x1xf32>
    %cst_185 = arith.constant 2.560000e+02 : f32
    %488 = vector.broadcast %cst_185 : f32 to vector<2x1x1xf32>
    %489 = arith.divf %487, %488 : vector<2x1x1xf32>
    %490 = vector.extract_strided_slice %485 {offsets = [1, 0, 0, 0], sizes = [1, 2, 1, 1], strides = [1, 1, 1, 1]} : vector<2x2x1x1xf32> to vector<1x2x1x1xf32>
    %491 = vector.shape_cast %490 : vector<1x2x1x1xf32> to vector<2x1x1xf32>
    %cst_186 = arith.constant 2.560000e+02 : f32
    %492 = vector.broadcast %cst_186 : f32 to vector<2x1x1xf32>
    %493 = arith.mulf %492, %489 : vector<2x1x1xf32>
    %494 = arith.mulf %493, %489 : vector<2x1x1xf32>
    %495 = arith.subf %491, %494 : vector<2x1x1xf32>
    %cst_187 = arith.constant 2.550000e+02 : f32
    %496 = vector.broadcast %cst_187 : f32 to vector<2x1x1xf32>
    %497 = arith.divf %495, %496 : vector<2x1x1xf32>
    %cst_188 = arith.constant 9.99999974E-6 : f32
    %498 = vector.broadcast %cst_188 : f32 to vector<2x1x1xf32>
    %499 = arith.addf %497, %498 : vector<2x1x1xf32>
    %500 = math.rsqrt %499 : vector<2x1x1xf32>
    %501 = vector.broadcast %489 : vector<2x1x1xf32> to vector<2x8x32xf32>
    %502 = arith.subf %477, %501 : vector<2x8x32xf32>
    %503 = vector.broadcast %500 : vector<2x1x1xf32> to vector<2x8x32xf32>
    %504 = arith.mulf %502, %503 : vector<2x8x32xf32>
    %505 = vector.shape_cast %474 : vector<8x32xf32> to vector<1x8x32xf32>
    %506 = vector.broadcast %505 : vector<1x8x32xf32> to vector<2x8x32xf32>
    %507 = arith.mulf %504, %506 : vector<2x8x32xf32>
    %508 = vector.shape_cast %476 : vector<8x32xf32> to vector<1x8x32xf32>
    %509 = vector.broadcast %508 : vector<1x8x32xf32> to vector<2x8x32xf32>
    %510 = arith.addf %507, %509 : vector<2x8x32xf32>
    %511 = vector.shape_cast %510 : vector<2x8x32xf32> to vector<16x32xf32>
    %c1_189 = arith.constant 1 : index
    %c0_190 = arith.constant 0 : index
    %c0_191 = arith.constant 0 : index
    %512 = vector.load %arg7[%c1_189, %c0_190, %c0_191] : memref<2x32x128xf32, #tpu.memory_space<vmem>>, vector<1x32x128xf32>
    %513 = vector.shape_cast %512 : vector<1x32x128xf32> to vector<32x128xf32>
    %cst_192 = arith.constant dense<0.000000e+00> : vector<16x128xf32>
    %514 = tpu.matmul %511, %513, %cst_192 {dimension_numbers = #tpu.dot_dimension_numbers<[1], [0], [0], [1], [0, 0, 1, 1], [], []>} : vector<16x32xf32>, vector<32x128xf32>, vector<16x128xf32> -> vector<16x128xf32>
    %cst_193 = arith.constant 0.000000e+00 : f32
    %515 = vector.broadcast %cst_193 : f32 to vector<16x128xf32>
    %516 = arith.maximumf %514, %515 : vector<16x128xf32>
    %c1_194 = arith.constant 1 : index
    %c0_195 = arith.constant 0 : index
    %c0_196 = arith.constant 0 : index
    %517 = vector.load %arg8[%c1_194, %c0_195, %c0_196] : memref<2x128x32xf32, #tpu.memory_space<vmem>>, vector<1x128x32xf32>
    %518 = vector.shape_cast %517 : vector<1x128x32xf32> to vector<128x32xf32>
    %cst_197 = arith.constant dense<0.000000e+00> : vector<16x32xf32>
    %519 = tpu.matmul %516, %518, %cst_197 {dimension_numbers = #tpu.dot_dimension_numbers<[1], [0], [0], [1], [0, 0, 1, 1], [], []>} : vector<16x128xf32>, vector<128x32xf32>, vector<16x32xf32> -> vector<16x32xf32>
    %520 = arith.addf %511, %519 : vector<16x32xf32>
    %c1_198 = arith.constant 1 : index
    %c4_199 = arith.constant 4 : index
    %c0_200 = arith.constant 0 : index
    %c0_201 = arith.constant 0 : index
    %521 = vector.load %arg9[%c1_198, %c4_199, %c0_200, %c0_201] : memref<2x6x8x32xf32, #tpu.memory_space<vmem>>, vector<1x1x8x32xf32>
    %522 = vector.shape_cast %521 : vector<1x1x8x32xf32> to vector<8x32xf32>
    %c1_202 = arith.constant 1 : index
    %c5_203 = arith.constant 5 : index
    %c0_204 = arith.constant 0 : index
    %c0_205 = arith.constant 0 : index
    %523 = vector.load %arg9[%c1_202, %c5_203, %c0_204, %c0_205] : memref<2x6x8x32xf32, #tpu.memory_space<vmem>>, vector<1x1x8x32xf32>
    %524 = vector.shape_cast %523 : vector<1x1x8x32xf32> to vector<8x32xf32>
    %525 = vector.shape_cast %520 : vector<16x32xf32> to vector<2x8x32xf32>
    %526 = arith.mulf %525, %525 : vector<2x8x32xf32>
    %527 = vector.shape_cast %525 : vector<2x8x32xf32> to vector<1x2x8x32xf32>
    %528 = vector.shape_cast %526 : vector<2x8x32xf32> to vector<1x2x8x32xf32>
    %529 = tpu.concatenate %527, %528 in 0 : vector<1x2x8x32xf32>, vector<1x2x8x32xf32> -> vector<2x2x8x32xf32>
    %cst_206 = arith.constant dense<0.000000e+00> : vector<2x2x8xf32>
    %530 = vector.multi_reduction <add>, %529, %cst_206 [3] : vector<2x2x8x32xf32> to vector<2x2x8xf32>
    %531 = vector.shape_cast %530 : vector<2x2x8xf32> to vector<2x2x8x1xf32>
    %cst_207 = arith.constant dense<0.000000e+00> : vector<2x2x1xf32>
    %532 = vector.multi_reduction <add>, %531, %cst_207 [2] : vector<2x2x8x1xf32> to vector<2x2x1xf32>
    %533 = vector.shape_cast %532 : vector<2x2x1xf32> to vector<2x2x1x1xf32>
    %534 = vector.extract_strided_slice %533 {offsets = [0, 0, 0, 0], sizes = [1, 2, 1, 1], strides = [1, 1, 1, 1]} : vector<2x2x1x1xf32> to vector<1x2x1x1xf32>
    %535 = vector.shape_cast %534 : vector<1x2x1x1xf32> to vector<2x1x1xf32>
    %cst_208 = arith.constant 2.560000e+02 : f32
    %536 = vector.broadcast %cst_208 : f32 to vector<2x1x1xf32>
    %537 = arith.divf %535, %536 : vector<2x1x1xf32>
    %538 = vector.extract_strided_slice %533 {offsets = [1, 0, 0, 0], sizes = [1, 2, 1, 1], strides = [1, 1, 1, 1]} : vector<2x2x1x1xf32> to vector<1x2x1x1xf32>
    %539 = vector.shape_cast %538 : vector<1x2x1x1xf32> to vector<2x1x1xf32>
    %cst_209 = arith.constant 2.560000e+02 : f32
    %540 = vector.broadcast %cst_209 : f32 to vector<2x1x1xf32>
    %541 = arith.mulf %540, %537 : vector<2x1x1xf32>
    %542 = arith.mulf %541, %537 : vector<2x1x1xf32>
    %543 = arith.subf %539, %542 : vector<2x1x1xf32>
    %cst_210 = arith.constant 2.550000e+02 : f32
    %544 = vector.broadcast %cst_210 : f32 to vector<2x1x1xf32>
    %545 = arith.divf %543, %544 : vector<2x1x1xf32>
    %cst_211 = arith.constant 9.99999974E-6 : f32
    %546 = vector.broadcast %cst_211 : f32 to vector<2x1x1xf32>
    %547 = arith.addf %545, %546 : vector<2x1x1xf32>
    %548 = math.rsqrt %547 : vector<2x1x1xf32>
    %549 = vector.broadcast %537 : vector<2x1x1xf32> to vector<2x8x32xf32>
    %550 = arith.subf %525, %549 : vector<2x8x32xf32>
    %551 = vector.broadcast %548 : vector<2x1x1xf32> to vector<2x8x32xf32>
    %552 = arith.mulf %550, %551 : vector<2x8x32xf32>
    %553 = vector.shape_cast %522 : vector<8x32xf32> to vector<1x8x32xf32>
    %554 = vector.broadcast %553 : vector<1x8x32xf32> to vector<2x8x32xf32>
    %555 = arith.mulf %552, %554 : vector<2x8x32xf32>
    %556 = vector.shape_cast %524 : vector<8x32xf32> to vector<1x8x32xf32>
    %557 = vector.broadcast %556 : vector<1x8x32xf32> to vector<2x8x32xf32>
    %558 = arith.addf %555, %557 : vector<2x8x32xf32>
    %559 = vector.shape_cast %558 : vector<2x8x32xf32> to vector<16x32xf32>
    %c0_212 = arith.constant 0 : index
    %c0_213 = arith.constant 0 : index
    %560 = vector.load %arg10[%c0_212, %c0_213] : memref<16x32xf32, #tpu.memory_space<vmem>>, vector<16x32xf32>
    tpu.vector_store %arg10[%c0_212, %c0_213], %559 {strides = array<i32>} : memref<16x32xf32, #tpu.memory_space<vmem>>, vector<16x32xf32>,
    return
  }
}

</mosaic_0001>

<llo_original>
// kernel: tpu_custom_call.1
$region0: #{tpu_custom_call.1}
  #allocation0 [shape = 'u32[]', space=smem, size = 0x4, offset = 0x4, fixed_abs, tag = 'smem constant byte address 0x4 - core index']
  #allocation1 [shape = 'u32[144,128]{1,0:T(1,128)}', space=vmem, size = 0x12000, scoped, tag = 'internal scratch']
  %s0 = inlined_call_operand.hbm [shape: f32[16,32], index: 0, kind: input, shape index: {}]
  %s1 = inlined_call_operand.hbm [shape: f32[16,32], index: 1, kind: input, shape index: {}]
  %s2 = inlined_call_operand.hbm [shape: f32[16,32], index: 2, kind: input, shape index: {}]
  %s3 = inlined_call_operand.vmem [shape: f32[2,16,16], index: 3, kind: input, shape index: {}]
  %s4 = inlined_call_operand.hbm [shape: f32[2,32,96], index: 4, kind: input, shape index: {}]
  %s5 = inlined_call_operand.hbm [shape: f32[32,128], index: 5, kind: input, shape index: {}]
  %s6 = inlined_call_operand.vmem [shape: f32[2,3,32,32], index: 6, kind: input, shape index: {}]
  %s7 = inlined_call_operand.hbm [shape: f32[2,32,128], index: 7, kind: input, shape index: {}]
  %s8 = inlined_call_operand.vmem [shape: f32[2,128,32], index: 8, kind: input, shape index: {}]
  %s9 = inlined_call_operand.vmem [shape: f32[2,6,8,32], index: 9, kind: input, shape index: {}]
  %s10 = inlined_call_operand.hbm [shape: f32[16,32], index: 10, kind: output, shape index: {}]
  %s11 = sld [smem:[#allocation0]]
  $region74: #{tpu_custom_call.1} parent=0
    _
  %s13 = ssub.s32 1, %s11
  %s14 = scalar_select 0, %s13, %s11
  $region1: #{tpu_custom_call.1} parent=0
    #allocation2 [shape = 'u8[8192]{0}', space=vmem, size = 0x2000, scoped, tag = 'input window, operand 0, single buffered']
    #allocation3 [shape = 's32[1]{0}', space=sflag, size = 0x4, scoped, tag = 'scoped memory for tpu_custom_call.1']
    #allocation4 [shape = 's32[1]{0}', space=sflag, size = 0x4, scoped, tag = 'scoped memory for tpu_custom_call.1']
    #allocation5 [shape = 'u8[8192]{0}', space=vmem, size = 0x2000, scoped, tag = 'input window, operand 1, single buffered']
    #allocation6 [shape = 's32[1]{0}', space=sflag, size = 0x4, scoped, tag = 'scoped memory for tpu_custom_call.1']
    #allocation7 [shape = 'u8[8192]{0}', space=vmem, size = 0x2000, scoped, tag = 'input window, operand 2, single buffered']
    #allocation8 [shape = 'u8[32768]{0}', space=vmem, size = 0x8000, scoped, tag = 'input window, operand 4, single buffered']
    #allocation9 [shape = 's32[1]{0}', space=sflag, size = 0x4, scoped, tag = 'scoped memory for tpu_custom_call.1']
    #allocation10 [shape = 'u8[16384]{0}', space=vmem, size = 0x4000, scoped, tag = 'input window, operand 5, single buffered']
    #allocation11 [shape = 'u8[32768]{0}', space=vmem, size = 0x8000, scoped, tag = 'input window, operand 7, single buffered']
    #allocation12 [shape = 's32[1]{0}', space=sflag, size = 0x4, scoped, tag = 'scoped memory for tpu_custom_call.1']
    #allocation13 [shape = 'u8[8192]{0}', space=vmem, size = 0x2000, scoped, tag = 'output window, operand 0, single buffered']
    %15 = vsyncpa [#allocation3], 0
    %16 = vsyncpa [#allocation6], 0
    %17 = vsyncpa [#allocation9], 0
    %18 = vsyncpa [#allocation12], 0
    %19 = vsyncpa [#allocation4], 0
    // Predicated region
    $region2: #{tpu_custom_call.1} parent=1 // pred_check
      _
    $region3: #{tpu_custom_call.1} parent=1 // pred_check_branch
      %21 = sbr.rel (0) target = $region5
    $region4: #{tpu_custom_call.1} parent=1 // pred_region
      %s23 = ssub.s32 256, 256
      %24 = vsyncadd [#allocation3], %s23
      %s25 = sshll.u32 [#allocation2], 4
      %s26 = int_to_ptr.vmem [resolvable:$true] %s25
      %31 = dma.hbm_to_vmem [thread:$0]  %s0, 256, %s26, [#allocation3], 128, 128, 8
    $region5: #{tpu_custom_call.1} parent=1 // pred_fallthru
      _
    // Predicated region
    $region6: #{tpu_custom_call.1} parent=1 // pred_check
      _
    $region7: #{tpu_custom_call.1} parent=1 // pred_check_branch
      %33 = sbr.rel (0) target = $region9
    $region8: #{tpu_custom_call.1} parent=1 // pred_region
      %s35 = ssub.s32 256, 256
      %36 = vsyncadd [#allocation6], %s35
      %s37 = sshll.u32 [#allocation5], 4
      %s38 = int_to_ptr.vmem [resolvable:$true] %s37
      %43 = dma.hbm_to_vmem [thread:$0]  %s1, 256, %s38, [#allocation6], 128, 128, 8
    $region9: #{tpu_custom_call.1} parent=1 // pred_fallthru
      _
    // Predicated region
    $region10: #{tpu_custom_call.1} parent=1 // pred_check
      _
    $region11: #{tpu_custom_call.1} parent=1 // pred_check_branch
      %45 = sbr.rel (0) target = $region13
    $region12: #{tpu_custom_call.1} parent=1 // pred_region
      %s47 = ssub.s32 256, 256
      %48 = vsyncadd [#allocation6], %s47
      %s49 = sshll.u32 [#allocation7], 4
      %s50 = int_to_ptr.vmem [resolvable:$true] %s49
      %55 = dma.hbm_to_vmem [thread:$0]  %s2, 256, %s50, [#allocation6], 128, 128, 8
    $region13: #{tpu_custom_call.1} parent=1 // pred_fallthru
      _
    // Predicated region
    $region14: #{tpu_custom_call.1} parent=1 // pred_check
      _
    $region15: #{tpu_custom_call.1} parent=1 // pred_check_branch
      %57 = sbr.rel (0) target = $region17
    $region16: #{tpu_custom_call.1} parent=1 // pred_region
      _
    $region17: #{tpu_custom_call.1} parent=1 // pred_fallthru
      _
    // Predicated region
    $region18: #{tpu_custom_call.1} parent=1 // pred_check
      _
    $region19: #{tpu_custom_call.1} parent=1 // pred_check_branch
      %59 = sbr.rel (0) target = $region21
    $region20: #{tpu_custom_call.1} parent=1 // pred_region
      %s61 = ssub.s32 1024, 1024
      %62 = vsyncadd [#allocation9], %s61
      %s63 = sshll.u32 [#allocation8], 4
      %s64 = int_to_ptr.vmem [resolvable:$true] %s63
      %69 = dma.hbm_to_vmem [thread:$0]  %s4, 1024, %s64, [#allocation9], 128, 128, 8
    $region21: #{tpu_custom_call.1} parent=1 // pred_fallthru
      _
    // Predicated region
    $region22: #{tpu_custom_call.1} parent=1 // pred_check
      _
    $region23: #{tpu_custom_call.1} parent=1 // pred_check_branch
      %71 = sbr.rel (0) target = $region25
    $region24: #{tpu_custom_call.1} parent=1 // pred_region
      %s73 = ssub.s32 512, 512
      %74 = vsyncadd [#allocation9], %s73
      %s75 = sshll.u32 [#allocation10], 4
      %s76 = int_to_ptr.vmem [resolvable:$true] %s75
      %81 = dma.hbm_to_vmem [thread:$0]  %s5, 512, %s76, [#allocation9], 128, 128, 8
    $region25: #{tpu_custom_call.1} parent=1 // pred_fallthru
      _
    // Predicated region
    $region26: #{tpu_custom_call.1} parent=1 // pred_check
      _
    $region27: #{tpu_custom_call.1} parent=1 // pred_check_branch
      %83 = sbr.rel (0) target = $region29
    $region28: #{tpu_custom_call.1} parent=1 // pred_region
      _
    $region29: #{tpu_custom_call.1} parent=1 // pred_fallthru
      _
    // Predicated region
    $region30: #{tpu_custom_call.1} parent=1 // pred_check
      _
    $region31: #{tpu_custom_call.1} parent=1 // pred_check_branch
      %85 = sbr.rel (0) target = $region33
    $region32: #{tpu_custom_call.1} parent=1 // pred_region
      %s87 = ssub.s32 1024, 1024
      %88 = vsyncadd [#allocation12], %s87
      %s89 = sshll.u32 [#allocation11], 4
      %s90 = int_to_ptr.vmem [resolvable:$true] %s89
      %95 = dma.hbm_to_vmem [thread:$0]  %s7, 1024, %s90, [#allocation12], 128, 128, 8
    $region33: #{tpu_custom_call.1} parent=1 // pred_fallthru
      _
    // Predicated region
    $region34: #{tpu_custom_call.1} parent=1 // pred_check
      _
    $region35: #{tpu_custom_call.1} parent=1 // pred_check_branch
      %97 = sbr.rel (0) target = $region37
    $region36: #{tpu_custom_call.1} parent=1 // pred_region
      _
    $region37: #{tpu_custom_call.1} parent=1 // pred_fallthru
      _
    // Predicated region
    $region38: #{tpu_custom_call.1} parent=1 // pred_check
      _
    $region39: #{tpu_custom_call.1} parent=1 // pred_check_branch
      %99 = sbr.rel (0) target = $region41
    $region40: #{tpu_custom_call.1} parent=1 // pred_region
      _
    $region41: #{tpu_custom_call.1} parent=1 // pred_fallthru
      _
    // Predicated region
    $region42: #{tpu_custom_call.1} parent=1 // pred_check
      _
    $region43: #{tpu_custom_call.1} parent=1 // pred_check_branch
      %101 = sbr.rel (0) target = $region45
    $region44: #{tpu_custom_call.1} parent=1 // pred_region
      %102 = dma.done [#allocation3], 256
    $region45: #{tpu_custom_call.1} parent=1 // pred_fallthru
      _
    // Predicated region
    $region46: #{tpu_custom_call.1} parent=1 // pred_check
      _
    $region47: #{tpu_custom_call.1} parent=1 // pred_check_branch
      %104 = sbr.rel (0) target = $region49
    $region48: #{tpu_custom_call.1} parent=1 // pred_region
      %105 = dma.done [#allocation6], 256
    $region49: #{tpu_custom_call.1} parent=1 // pred_fallthru
      _
    // Predicated region
    $region50: #{tpu_custom_call.1} parent=1 // pred_check
      _
    $region51: #{tpu_custom_call.1} parent=1 // pred_check_branch
      %107 = sbr.rel (0) target = $region53
    $region52: #{tpu_custom_call.1} parent=1 // pred_region
      %108 = dma.done [#allocation6], 256
    $region53: #{tpu_custom_call.1} parent=1 // pred_fallthru
      _
    // Predicated region
    $region54: #{tpu_custom_call.1} parent=1 // pred_check
      _
    $region55: #{tpu_custom_call.1} parent=1 // pred_check_branch
      %110 = sbr.rel (0) target = $region57
    $region56: #{tpu_custom_call.1} parent=1 // pred_region
      %111 = dma.done [#allocation9], 1024
    $region57: #{tpu_custom_call.1} parent=1 // pred_fallthru
      _
    // Predicated region
    $region58: #{tpu_custom_call.1} parent=1 // pred_check
      _
    $region59: #{tpu_custom_call.1} parent=1 // pred_check_branch
      %113 = sbr.rel (0) target = $region61
    $region60: #{tpu_custom_call.1} parent=1 // pred_region
      %114 = dma.done [#allocation9], 512
    $region61: #{tpu_custom_call.1} parent=1 // pred_fallthru
      _
    // Predicated region
    $region62: #{tpu_custom_call.1} parent=1 // pred_check
      _
    $region63: #{tpu_custom_call.1} parent=1 // pred_check_branch
      %116 = sbr.rel (0) target = $region65
    $region64: #{tpu_custom_call.1} parent=1 // pred_region
      %117 = dma.done [#allocation12], 1024
    $region65: #{tpu_custom_call.1} parent=1 // pred_fallthru
      _
    %v118 = vld [vmem:[%s3] sm:$0xff]
    %v119 = vld [vmem:[%s3 + $0x8] sm:$0xff]
    %s120 = scalar_lea.vmem %s3, 16
    %v121 = vld [vmem:[%s120] sm:$0xff]
    %v122 = vld [vmem:[%s120 + $0x8] sm:$0xff]
    %v123 = vld [vmem:[#allocation2] sm:$0xff]
    %v124 = vld [vmem:[#allocation2 + $0x8] sm:$0xff]
    %v125 = vld [vmem:[#allocation7] sm:$0xff]
    %v126 = vld [vmem:[#allocation7 + $0x8] sm:$0xff]
    %v127 = vadd.f32 %v123, %v125
    %v128 = vadd.f32 %v124, %v126
    %v129 = vld [vmem:[#allocation5] sm:$0xff]
    %v130 = vld [vmem:[#allocation5 + $0x8] sm:$0xff]
    %v131 = vld [vmem:[#allocation10] sm:$0xff]
    %v132 = vld [vmem:[#allocation10 + $0x8] sm:$0xff]
    %v133 = vld [vmem:[#allocation10 + $0x10] sm:$0xff]
    %v134 = vld [vmem:[#allocation10 + $0x18] sm:$0xff]
    %vm135 = vcmask 261120
    %v137 = vsel %vm135, %v129, 0
    %v140 = vsel %vm135, %v130, 0
    %142 = vmatprep.subr.mxu0 0.0
    %143 = vmatpush1.msra.mxu0 0.0
    %144 = vmatprep.subr.mxu0 0.0
    %145 = vmatpush1.msra.mxu0 0.0
    %146 = vmatprep.subr.mxu0 0.0
    %147 = vmatpush1.msra.mxu0 0.0
    %148 = vmatprep.subr.mxu0 0.0
    %149 = vmatpush1.msra.mxu0 0.0
    %150 = vmatprep.subr.mxu0 0.0
    %151 = vmatpush1.msra.mxu0 0.0
    %152 = vmatprep.subr.mxu0 0.0
    %153 = vmatpush1.msra.mxu0 0.0
    %154 = vmatprep.subr.mxu0 0.0
    %155 = vmatpush1.msra.mxu0 0.0
    %156 = vmatprep.subr.mxu0 0.0
    %157 = vmatpush1.msra.mxu0 0.0
    %158 = vmatprep.subr.mxu0 0.0
    %159 = vmatpush1.msra.mxu0 0.0
    %160 = vmatprep.subr.mxu0 0.0
    %161 = vmatpush1.msra.mxu0 0.0
    %162 = vmatprep.subr.mxu0 0.0
    %163 = vmatpush1.msra.mxu0 0.0
    %164 = vmatprep.subr.mxu0 0.0
    %165 = vmatpush1.msra.mxu0 0.0
    %166 = vmatprep.subr.mxu0 0.0
    %167 = vmatpush1.msra.mxu0 %v134
    %168 = vmatprep.subr.mxu0 0.0
    %169 = vmatpush1.msra.mxu0 %v133
    %170 = vmatprep.subr.mxu0 0.0
    %171 = vmatpush1.msra.mxu0 %v132
    %172 = vmatprep.subr.mxu0 0.0
    %173 = vmatpush1.msra.mxu0 %v131
    %174 = vmatprep.subr.mxu0 0.0
    %175 = vmatpush2.msra.mxu0 0.0
    %176 = vmatprep.subr.mxu0 0.0
    %177 = vmatpush2.msra.mxu0 0.0
    %178 = vmatprep.subr.mxu0 0.0
    %179 = vmatpush2.msra.mxu0 0.0
    %180 = vmatprep.subr.mxu0 0.0
    %181 = vmatpush2.msra.mxu0 0.0
    %182 = vmatprep.subr.mxu0 0.0
    %183 = vmatpush2.msra.mxu0 0.0
    %184 = vmatprep.subr.mxu0 0.0
    %185 = vmatpush2.msra.mxu0 0.0
    %186 = vmatprep.subr.mxu0 0.0
    %187 = vmatpush2.msra.mxu0 0.0
    %188 = vmatprep.subr.mxu0 0.0
    %189 = vmatpush2.msra.mxu0 0.0
    %190 = vmatprep.subr.mxu0 0.0
    %191 = vmatpush2.msra.mxu0 0.0
    %192 = vmatprep.subr.mxu0 0.0
    %193 = vmatpush2.msra.mxu0 0.0
    %194 = vmatprep.subr.mxu0 0.0
    %195 = vmatpush2.msra.mxu0 0.0
    %196 = vmatprep.subr.mxu0 0.0
    %197 = vmatpush2.msra.mxu0 0.0
    %198 = vmatprep.subr.mxu0 0.0
    %199 = vmatpush2.msra.mxu0 0.0
    %200 = vmatprep.subr.mxu0 0.0
    %201 = vmatpush2.msra.mxu0 0.0
    %202 = vmatprep.subr.mxu0 0.0
    %203 = vmatpush2.msra.mxu0 0.0
    %204 = vmatprep.subr.mxu0 0.0
    %205 = vmatpush2.msra.mxu0 0.0
    %206 = vmatprep.mubr.f32.mxu0 0.0
    %207 = vmatmul.mubr.f32.gmra.mxu0 %v137
    %v208 = vpop.f32.mrf.mxu0
    %v209 = vadd.f32 0.0, %v208
    %v210 = vpop.f32.mrf.mxu0
    %211 = vmatprep.mubr.f32.mxu0 0.0
    %212 = vmatmul.mubr.f32.gmra.mxu0 %v140
    %v213 = vpop.f32.mrf.mxu0
    %v214 = vadd.f32 0.0, %v213
    %v215 = vpop.f32.mrf.mxu0
    %216 = vdwg.mxu0
    %v217 = vld [vmem:[#allocation8] sm:$0xff]
    %v218 = vld [vmem:[#allocation8 + $0x8] sm:$0xff]
    %v219 = vld [vmem:[#allocation8 + $0x10] sm:$0xff]
    %v220 = vld [vmem:[#allocation8 + $0x18] sm:$0xff]
    %v222 = vsel %vm135, %v127, 0
    %v225 = vsel %vm135, %v128, 0
    %227 = vmatprep.subr.mxu0 0.0
    %228 = vmatpush1.msra.mxu0 0.0
    %229 = vmatprep.subr.mxu0 0.0
    %230 = vmatpush1.msra.mxu0 0.0
    %231 = vmatprep.subr.mxu0 0.0
    %232 = vmatpush1.msra.mxu0 0.0
    %233 = vmatprep.subr.mxu0 0.0
    %234 = vmatpush1.msra.mxu0 0.0
    %235 = vmatprep.subr.mxu0 0.0
    %236 = vmatpush1.msra.mxu0 0.0
    %237 = vmatprep.subr.mxu0 0.0
    %238 = vmatpush1.msra.mxu0 0.0
    %239 = vmatprep.subr.mxu0 0.0
    %240 = vmatpush1.msra.mxu0 0.0
    %241 = vmatprep.subr.mxu0 0.0
    %242 = vmatpush1.msra.mxu0 0.0
    %243 = vmatprep.subr.mxu0 0.0
    %244 = vmatpush1.msra.mxu0 0.0
    %245 = vmatprep.subr.mxu0 0.0
    %246 = vmatpush1.msra.mxu0 0.0
    %247 = vmatprep.subr.mxu0 0.0
    %248 = vmatpush1.msra.mxu0 0.0
    %249 = vmatprep.subr.mxu0 0.0
    %250 = vmatpush1.msra.mxu0 0.0
    %251 = vmatprep.subr.mxu0 0.0
    %252 = vmatpush1.msra.mxu0 %v220
    %253 = vmatprep.subr.mxu0 0.0
    %254 = vmatpush1.msra.mxu0 %v219
    %255 = vmatprep.subr.mxu0 0.0
    %256 = vmatpush1.msra.mxu0 %v218
    %257 = vmatprep.subr.mxu0 0.0
    %258 = vmatpush1.msra.mxu0 %v217
    %259 = vmatprep.subr.mxu0 0.0
    %260 = vmatpush2.msra.mxu0 0.0
    %261 = vmatprep.subr.mxu0 0.0
    %262 = vmatpush2.msra.mxu0 0.0
    %263 = vmatprep.subr.mxu0 0.0
    %264 = vmatpush2.msra.mxu0 0.0
    %265 = vmatprep.subr.mxu0 0.0
    %266 = vmatpush2.msra.mxu0 0.0
    %267 = vmatprep.subr.mxu0 0.0
    %268 = vmatpush2.msra.mxu0 0.0
    %269 = vmatprep.subr.mxu0 0.0
    %270 = vmatpush2.msra.mxu0 0.0
    %271 = vmatprep.subr.mxu0 0.0
    %272 = vmatpush2.msra.mxu0 0.0
    %273 = vmatprep.subr.mxu0 0.0
    %274 = vmatpush2.msra.mxu0 0.0
    %275 = vmatprep.subr.mxu0 0.0
    %276 = vmatpush2.msra.mxu0 0.0
    %277 = vmatprep.subr.mxu0 0.0
    %278 = vmatpush2.msra.mxu0 0.0
    %279 = vmatprep.subr.mxu0 0.0
    %280 = vmatpush2.msra.mxu0 0.0
    %281 = vmatprep.subr.mxu0 0.0
    %282 = vmatpush2.msra.mxu0 0.0
    %283 = vmatprep.subr.mxu0 0.0
    %284 = vmatpush2.msra.mxu0 0.0
    %285 = vmatprep.subr.mxu0 0.0
    %286 = vmatpush2.msra.mxu0 0.0
    %287 = vmatprep.subr.mxu0 0.0
    %288 = vmatpush2.msra.mxu0 0.0
    %289 = vmatprep.subr.mxu0 0.0
    %290 = vmatpush2.msra.mxu0 0.0
    %291 = vmatprep.mubr.f32.mxu0 0.0
    %292 = vmatmul.mubr.f32.gmra.mxu0 %v222
    %v293 = vpop.f32.mrf.mxu0
    %v294 = vadd.f32 0.0, %v293
    %v295 = vpop.f32.mrf.mxu0
    %296 = vmatprep.mubr.f32.mxu0 0.0
    %297 = vmatmul.mubr.f32.gmra.mxu0 %v225
    %v298 = vpop.f32.mrf.mxu0
    %v299 = vadd.f32 0.0, %v298
    %v300 = vpop.f32.mrf.mxu0
    %301 = vdwg.mxu0
    %s302 = scalar_lea.vmem %s6, 32
    %v303 = vld [vmem:[%s302] sm:$0xff]
    %v304 = vld [vmem:[%s302 + $0x8] sm:$0xff]
    %v305 = vld [vmem:[%s302 + $0x10] sm:$0xff]
    %v306 = vld [vmem:[%s302 + $0x18] sm:$0xff]
    %309 = vrot.lane.b32.xlu0 %v294, 96
    %v310 = vpop.permute.xlu0 %309
    %311 = vrot.lane.b32.xlu0 %v299, 96
    %v312 = vpop.permute.xlu0 %311
    %vm313 = vcmask 64512
    %v314 = vsel %vm313, %v294, 0
    %v316 = vsel %vm313, %v299, 0
    %v318 = vsel %vm313, %v310, 0
    %v320 = vsel %vm313, %v312, 0
    %322 = vmatprep.subr.mxu0 0.0
    %323 = vmatpush1.xpose.msra.mxu0 0.0
    %324 = vmatprep.subr.mxu0 0.0
    %325 = vmatpush1.xpose.msra.mxu0 0.0
    %326 = vmatprep.subr.mxu0 0.0
    %327 = vmatpush1.xpose.msra.mxu0 0.0
    %328 = vmatprep.subr.mxu0 0.0
    %329 = vmatpush1.xpose.msra.mxu0 0.0
    %330 = vmatprep.subr.mxu0 0.0
    %331 = vmatpush1.xpose.msra.mxu0 0.0
    %332 = vmatprep.subr.mxu0 0.0
    %333 = vmatpush1.xpose.msra.mxu0 0.0
    %334 = vmatprep.subr.mxu0 0.0
    %335 = vmatpush1.xpose.msra.mxu0 0.0
    %336 = vmatprep.subr.mxu0 0.0
    %337 = vmatpush1.xpose.msra.mxu0 0.0
    %338 = vmatprep.subr.mxu0 0.0
    %339 = vmatpush1.xpose.msra.mxu0 0.0
    %340 = vmatprep.subr.mxu0 0.0
    %341 = vmatpush1.xpose.msra.mxu0 0.0
    %342 = vmatprep.subr.mxu0 0.0
    %343 = vmatpush1.xpose.msra.mxu0 0.0
    %344 = vmatprep.subr.mxu0 0.0
    %345 = vmatpush1.xpose.msra.mxu0 0.0
    %346 = vmatprep.subr.mxu0 0.0
    %347 = vmatpush1.xpose.msra.mxu0 0.0
    %348 = vmatprep.subr.mxu0 0.0
    %349 = vmatpush1.xpose.msra.mxu0 0.0
    %350 = vmatprep.subr.mxu0 0.0
    %351 = vmatpush1.xpose.msra.mxu0 %v320
    %352 = vmatprep.subr.mxu0 0.0
    %353 = vmatpush1.xpose.msra.mxu0 %v318
    %354 = vmatprep.subr.mxu0 0.0
    %355 = vmatpush2.xpose.msra.mxu0 0.0
    %356 = vmatprep.subr.mxu0 0.0
    %357 = vmatpush2.xpose.msra.mxu0 0.0
    %358 = vmatprep.subr.mxu0 0.0
    %359 = vmatpush2.xpose.msra.mxu0 0.0
    %360 = vmatprep.subr.mxu0 0.0
    %361 = vmatpush2.xpose.msra.mxu0 0.0
    %362 = vmatprep.subr.mxu0 0.0
    %363 = vmatpush2.xpose.msra.mxu0 0.0
    %364 = vmatprep.subr.mxu0 0.0
    %365 = vmatpush2.xpose.msra.mxu0 0.0
    %366 = vmatprep.subr.mxu0 0.0
    %367 = vmatpush2.xpose.msra.mxu0 0.0
    %368 = vmatprep.subr.mxu0 0.0
    %369 = vmatpush2.xpose.msra.mxu0 0.0
    %370 = vmatprep.subr.mxu0 0.0
    %371 = vmatpush2.xpose.msra.mxu0 0.0
    %372 = vmatprep.subr.mxu0 0.0
    %373 = vmatpush2.xpose.msra.mxu0 0.0
    %374 = vmatprep.subr.mxu0 0.0
    %375 = vmatpush2.xpose.msra.mxu0 0.0
    %376 = vmatprep.subr.mxu0 0.0
    %377 = vmatpush2.xpose.msra.mxu0 0.0
    %378 = vmatprep.subr.mxu0 0.0
    %379 = vmatpush2.xpose.msra.mxu0 0.0
    %380 = vmatprep.subr.mxu0 0.0
    %381 = vmatpush2.xpose.msra.mxu0 0.0
    %382 = vmatprep.subr.mxu0 0.0
    %383 = vmatpush2.xpose.msra.mxu0 0.0
    %384 = vmatprep.subr.mxu0 0.0
    %385 = vmatpush2.xpose.msra.mxu0 0.0
    %386 = vmatprep.mubr.f32.mxu0 0.0
    %387 = vmatmul.mubr.f32.gmra.mxu0 %v314
    %v388 = vpop.f32.mrf.mxu0
    %v389 = vadd.f32 %v118, %v388
    %v390 = vpop.f32.mrf.mxu0
    %391 = vmatprep.mubr.f32.mxu0 0.0
    %392 = vmatmul.mubr.f32.gmra.mxu0 %v316
    %v393 = vpop.f32.mrf.mxu0
    %v394 = vadd.f32 %v119, %v393
    %v395 = vpop.f32.mrf.mxu0
    %396 = vdwg.mxu0
    %vm397 = vcmask 130048
    %v398 = vsel %vm397, %v389, -inf
    %399 = vmax.xlane.f32.xlu0 %v398
    %v400 = vpop.xlane.xlu0 %399
    %v401 = vsel %vm397, %v394, -inf
    %402 = vmax.xlane.f32.xlu0 %v401
    %v403 = vpop.xlane.xlu0 %402
    %v404 = vsub.f32 %v389, %v400
    %v405 = vsub.f32 %v394, %v403
    %v406 = vmul.f32 %v404, 1.442695
    %v407 = vpow.pop %v406
    %v408 = vmul.f32 %v405, 1.442695
    %v409 = vpow.pop %v408
    %v410 = vsel %vm397, %v407, 0.0
    %411 = vadd.xlane.f32.xlu0 %v410
    %v412 = vpop.xlane.xlu0 %411
    %v413 = vsel %vm397, %v409, 0.0
    %414 = vadd.xlane.f32.xlu0 %v413
    %v415 = vpop.xlane.xlu0 %414
    %v416 = vrcp.pop %v412
    %v417 = vrcp.pop %v415
    %418 = vrot.lane.b32.xlu0 %v294, 64
    %v419 = vpop.permute.xlu0 %418
    %420 = vrot.lane.b32.xlu0 %v299, 64
    %v421 = vpop.permute.xlu0 %420
    %v425 = vsel %vm397, %v407, 0
    %v428 = vsel %vm397, %v409, 0
    %430 = vmatprep.subr.mxu0 0.0
    %431 = vmatpush1.msra.mxu0 0.0
    %432 = vmatprep.subr.mxu0 0.0
    %433 = vmatpush1.msra.mxu0 0.0
    %434 = vmatprep.subr.mxu0 0.0
    %435 = vmatpush1.msra.mxu0 0.0
    %436 = vmatprep.subr.mxu0 0.0
    %437 = vmatpush1.msra.mxu0 0.0
    %438 = vmatprep.subr.mxu0 0.0
    %439 = vmatpush1.msra.mxu0 0.0
    %440 = vmatprep.subr.mxu0 0.0
    %441 = vmatpush1.msra.mxu0 0.0
    %442 = vmatprep.subr.mxu0 0.0
    %443 = vmatpush1.msra.mxu0 0.0
    %444 = vmatprep.subr.mxu0 0.0
    %445 = vmatpush1.msra.mxu0 0.0
    %446 = vmatprep.subr.mxu0 0.0
    %447 = vmatpush1.msra.mxu0 0.0
    %448 = vmatprep.subr.mxu0 0.0
    %449 = vmatpush1.msra.mxu0 0.0
    %450 = vmatprep.subr.mxu0 0.0
    %451 = vmatpush1.msra.mxu0 0.0
    %452 = vmatprep.subr.mxu0 0.0
    %453 = vmatpush1.msra.mxu0 0.0
    %454 = vmatprep.subr.mxu0 0.0
    %455 = vmatpush1.msra.mxu0 0.0
    %456 = vmatprep.subr.mxu0 0.0
    %457 = vmatpush1.msra.mxu0 0.0
    %458 = vmatprep.subr.mxu0 0.0
    %459 = vmatpush1.msra.mxu0 %v421
    %460 = vmatprep.subr.mxu0 0.0
    %461 = vmatpush1.msra.mxu0 %v419
    %462 = vmatprep.subr.mxu0 0.0
    %463 = vmatpush2.msra.mxu0 0.0
    %464 = vmatprep.subr.mxu0 0.0
    %465 = vmatpush2.msra.mxu0 0.0
    %466 = vmatprep.subr.mxu0 0.0
    %467 = vmatpush2.msra.mxu0 0.0
    %468 = vmatprep.subr.mxu0 0.0
    %469 = vmatpush2.msra.mxu0 0.0
    %470 = vmatprep.subr.mxu0 0.0
    %471 = vmatpush2.msra.mxu0 0.0
    %472 = vmatprep.subr.mxu0 0.0
    %473 = vmatpush2.msra.mxu0 0.0
    %474 = vmatprep.subr.mxu0 0.0
    %475 = vmatpush2.msra.mxu0 0.0
    %476 = vmatprep.subr.mxu0 0.0
    %477 = vmatpush2.msra.mxu0 0.0
    %478 = vmatprep.subr.mxu0 0.0
    %479 = vmatpush2.msra.mxu0 0.0
    %480 = vmatprep.subr.mxu0 0.0
    %481 = vmatpush2.msra.mxu0 0.0
    %482 = vmatprep.subr.mxu0 0.0
    %483 = vmatpush2.msra.mxu0 0.0
    %484 = vmatprep.subr.mxu0 0.0
    %485 = vmatpush2.msra.mxu0 0.0
    %486 = vmatprep.subr.mxu0 0.0
    %487 = vmatpush2.msra.mxu0 0.0
    %488 = vmatprep.subr.mxu0 0.0
    %489 = vmatpush2.msra.mxu0 0.0
    %490 = vmatprep.subr.mxu0 0.0
    %491 = vmatpush2.msra.mxu0 0.0
    %492 = vmatprep.subr.mxu0 0.0
    %493 = vmatpush2.msra.mxu0 0.0
    %494 = vmatprep.mubr.f32.mxu0 0.0
    %495 = vmatmul.mubr.f32.gmra.mxu0 %v425
    %v496 = vpop.f32.mrf.mxu0
    %v497 = vadd.f32 0.0, %v496
    %v498 = vpop.f32.mrf.mxu0
    %499 = vmatprep.mubr.f32.mxu0 0.0
    %500 = vmatmul.mubr.f32.gmra.mxu0 %v428
    %v501 = vpop.f32.mrf.mxu0
    %v502 = vadd.f32 0.0, %v501
    %v503 = vpop.f32.mrf.mxu0
    %504 = vdwg.mxu0
    %v505 = vmul.f32 %v497, %v416
    %v506 = vmul.f32 %v502, %v417
    %507 = vrot.lane.b32.xlu0 %v294, 120
    %v508 = vpop.permute.xlu0 %507
    %509 = vrot.lane.b32.xlu0 %v299, 120
    %v510 = vpop.permute.xlu0 %509
    %511 = vrot.lane.b32.xlu0 %v294, 88
    %v512 = vpop.permute.xlu0 %511
    %513 = vrot.lane.b32.xlu0 %v299, 88
    %v514 = vpop.permute.xlu0 %513
    %v515 = vsel %vm313, %v508, 0
    %v517 = vsel %vm313, %v510, 0
    %v519 = vsel %vm313, %v512, 0
    %v521 = vsel %vm313, %v514, 0
    %523 = vmatprep.subr.mxu0 0.0
    %524 = vmatpush1.xpose.msra.mxu0 0.0
    %525 = vmatprep.subr.mxu0 0.0
    %526 = vmatpush1.xpose.msra.mxu0 0.0
    %527 = vmatprep.subr.mxu0 0.0
    %528 = vmatpush1.xpose.msra.mxu0 0.0
    %529 = vmatprep.subr.mxu0 0.0
    %530 = vmatpush1.xpose.msra.mxu0 0.0
    %531 = vmatprep.subr.mxu0 0.0
    %532 = vmatpush1.xpose.msra.mxu0 0.0
    %533 = vmatprep.subr.mxu0 0.0
    %534 = vmatpush1.xpose.msra.mxu0 0.0
    %535 = vmatprep.subr.mxu0 0.0
    %536 = vmatpush1.xpose.msra.mxu0 0.0
    %537 = vmatprep.subr.mxu0 0.0
    %538 = vmatpush1.xpose.msra.mxu0 0.0
    %539 = vmatprep.subr.mxu0 0.0
    %540 = vmatpush1.xpose.msra.mxu0 0.0
    %541 = vmatprep.subr.mxu0 0.0
    %542 = vmatpush1.xpose.msra.mxu0 0.0
    %543 = vmatprep.subr.mxu0 0.0
    %544 = vmatpush1.xpose.msra.mxu0 0.0
    %545 = vmatprep.subr.mxu0 0.0
    %546 = vmatpush1.xpose.msra.mxu0 0.0
    %547 = vmatprep.subr.mxu0 0.0
    %548 = vmatpush1.xpose.msra.mxu0 0.0
    %549 = vmatprep.subr.mxu0 0.0
    %550 = vmatpush1.xpose.msra.mxu0 0.0
    %551 = vmatprep.subr.mxu0 0.0
    %552 = vmatpush1.xpose.msra.mxu0 %v521
    %553 = vmatprep.subr.mxu0 0.0
    %554 = vmatpush1.xpose.msra.mxu0 %v519
    %555 = vmatprep.subr.mxu0 0.0
    %556 = vmatpush2.xpose.msra.mxu0 0.0
    %557 = vmatprep.subr.mxu0 0.0
    %558 = vmatpush2.xpose.msra.mxu0 0.0
    %559 = vmatprep.subr.mxu0 0.0
    %560 = vmatpush2.xpose.msra.mxu0 0.0
    %561 = vmatprep.subr.mxu0 0.0
    %562 = vmatpush2.xpose.msra.mxu0 0.0
    %563 = vmatprep.subr.mxu0 0.0
    %564 = vmatpush2.xpose.msra.mxu0 0.0
    %565 = vmatprep.subr.mxu0 0.0
    %566 = vmatpush2.xpose.msra.mxu0 0.0
    %567 = vmatprep.subr.mxu0 0.0
    %568 = vmatpush2.xpose.msra.mxu0 0.0
    %569 = vmatprep.subr.mxu0 0.0
    %570 = vmatpush2.xpose.msra.mxu0 0.0
    %571 = vmatprep.subr.mxu0 0.0
    %572 = vmatpush2.xpose.msra.mxu0 0.0
    %573 = vmatprep.subr.mxu0 0.0
    %574 = vmatpush2.xpose.msra.mxu0 0.0
    %575 = vmatprep.subr.mxu0 0.0
    %576 = vmatpush2.xpose.msra.mxu0 0.0
    %577 = vmatprep.subr.mxu0 0.0
    %578 = vmatpush2.xpose.msra.mxu0 0.0
    %579 = vmatprep.subr.mxu0 0.0
    %580 = vmatpush2.xpose.msra.mxu0 0.0
    %581 = vmatprep.subr.mxu0 0.0
    %582 = vmatpush2.xpose.msra.mxu0 0.0
    %583 = vmatprep.subr.mxu0 0.0
    %584 = vmatpush2.xpose.msra.mxu0 0.0
    %585 = vmatprep.subr.mxu0 0.0
    %586 = vmatpush2.xpose.msra.mxu0 0.0
    %587 = vmatprep.mubr.f32.mxu0 0.0
    %588 = vmatmul.mubr.f32.gmra.mxu0 %v515
    %v589 = vpop.f32.mrf.mxu0
    %v590 = vadd.f32 %v118, %v589
    %v591 = vpop.f32.mrf.mxu0
    %592 = vmatprep.mubr.f32.mxu0 0.0
    %593 = vmatmul.mubr.f32.gmra.mxu0 %v517
    %v594 = vpop.f32.mrf.mxu0
    %v595 = vadd.f32 %v119, %v594
    %v596 = vpop.f32.mrf.mxu0
    %597 = vdwg.mxu0
    %v598 = vsel %vm397, %v590, -inf
    %599 = vmax.xlane.f32.xlu0 %v598
    %v600 = vpop.xlane.xlu0 %599
    %v601 = vsel %vm397, %v595, -inf
    %602 = vmax.xlane.f32.xlu0 %v601
    %v603 = vpop.xlane.xlu0 %602
    %v604 = vsub.f32 %v590, %v600
    %v605 = vsub.f32 %v595, %v603
    %v606 = vmul.f32 %v604, 1.442695
    %v607 = vpow.pop %v606
    %v608 = vmul.f32 %v605, 1.442695
    %v609 = vpow.pop %v608
    %v610 = vsel %vm397, %v607, 0.0
    %611 = vadd.xlane.f32.xlu0 %v610
    %v612 = vpop.xlane.xlu0 %611
    %v613 = vsel %vm397, %v609, 0.0
    %614 = vadd.xlane.f32.xlu0 %v613
    %v615 = vpop.xlane.xlu0 %614
    %v616 = vrcp.pop %v612
    %v617 = vrcp.pop %v615
    %618 = vrot.lane.b32.xlu0 %v294, 56
    %v619 = vpop.permute.xlu0 %618
    %620 = vrot.lane.b32.xlu0 %v299, 56
    %v621 = vpop.permute.xlu0 %620
    %v625 = vsel %vm397, %v607, 0
    %v628 = vsel %vm397, %v609, 0
    %630 = vmatprep.subr.mxu0 0.0
    %631 = vmatpush1.msra.mxu0 0.0
    %632 = vmatprep.subr.mxu0 0.0
    %633 = vmatpush1.msra.mxu0 0.0
    %634 = vmatprep.subr.mxu0 0.0
    %635 = vmatpush1.msra.mxu0 0.0
    %636 = vmatprep.subr.mxu0 0.0
    %637 = vmatpush1.msra.mxu0 0.0
    %638 = vmatprep.subr.mxu0 0.0
    %639 = vmatpush1.msra.mxu0 0.0
    %640 = vmatprep.subr.mxu0 0.0
    %641 = vmatpush1.msra.mxu0 0.0
    %642 = vmatprep.subr.mxu0 0.0
    %643 = vmatpush1.msra.mxu0 0.0
    %644 = vmatprep.subr.mxu0 0.0
    %645 = vmatpush1.msra.mxu0 0.0
    %646 = vmatprep.subr.mxu0 0.0
    %647 = vmatpush1.msra.mxu0 0.0
    %648 = vmatprep.subr.mxu0 0.0
    %649 = vmatpush1.msra.mxu0 0.0
    %650 = vmatprep.subr.mxu0 0.0
    %651 = vmatpush1.msra.mxu0 0.0
    %652 = vmatprep.subr.mxu0 0.0
    %653 = vmatpush1.msra.mxu0 0.0
    %654 = vmatprep.subr.mxu0 0.0
    %655 = vmatpush1.msra.mxu0 0.0
    %656 = vmatprep.subr.mxu0 0.0
    %657 = vmatpush1.msra.mxu0 0.0
    %658 = vmatprep.subr.mxu0 0.0
    %659 = vmatpush1.msra.mxu0 %v621
    %660 = vmatprep.subr.mxu0 0.0
    %661 = vmatpush1.msra.mxu0 %v619
    %662 = vmatprep.subr.mxu0 0.0
    %663 = vmatpush2.msra.mxu0 0.0
    %664 = vmatprep.subr.mxu0 0.0
    %665 = vmatpush2.msra.mxu0 0.0
    %666 = vmatprep.subr.mxu0 0.0
    %667 = vmatpush2.msra.mxu0 0.0
    %668 = vmatprep.subr.mxu0 0.0
    %669 = vmatpush2.msra.mxu0 0.0
    %670 = vmatprep.subr.mxu0 0.0
    %671 = vmatpush2.msra.mxu0 0.0
    %672 = vmatprep.subr.mxu0 0.0
    %673 = vmatpush2.msra.mxu0 0.0
    %674 = vmatprep.subr.mxu0 0.0
    %675 = vmatpush2.msra.mxu0 0.0
    %676 = vmatprep.subr.mxu0 0.0
    %677 = vmatpush2.msra.mxu0 0.0
    %678 = vmatprep.subr.mxu0 0.0
    %679 = vmatpush2.msra.mxu0 0.0
    %680 = vmatprep.subr.mxu0 0.0
    %681 = vmatpush2.msra.mxu0 0.0
    %682 = vmatprep.subr.mxu0 0.0
    %683 = vmatpush2.msra.mxu0 0.0
    %684 = vmatprep.subr.mxu0 0.0
    %685 = vmatpush2.msra.mxu0 0.0
    %686 = vmatprep.subr.mxu0 0.0
    %687 = vmatpush2.msra.mxu0 0.0
    %688 = vmatprep.subr.mxu0 0.0
    %689 = vmatpush2.msra.mxu0 0.0
    %690 = vmatprep.subr.mxu0 0.0
    %691 = vmatpush2.msra.mxu0 0.0
    %692 = vmatprep.subr.mxu0 0.0
    %693 = vmatpush2.msra.mxu0 0.0
    %694 = vmatprep.mubr.f32.mxu0 0.0
    %695 = vmatmul.mubr.f32.gmra.mxu0 %v625
    %v696 = vpop.f32.mrf.mxu0
    %v697 = vadd.f32 0.0, %v696
    %v698 = vpop.f32.mrf.mxu0
    %699 = vmatprep.mubr.f32.mxu0 0.0
    %700 = vmatmul.mubr.f32.gmra.mxu0 %v628
    %v701 = vpop.f32.mrf.mxu0
    %v702 = vadd.f32 0.0, %v701
    %v703 = vpop.f32.mrf.mxu0
    %704 = vdwg.mxu0
    %v705 = vmul.f32 %v697, %v616
    %v706 = vmul.f32 %v702, %v617
    %707 = vrot.lane.b32.xlu0 %v294, 112
    %v708 = vpop.permute.xlu0 %707
    %709 = vrot.lane.b32.xlu0 %v299, 112
    %v710 = vpop.permute.xlu0 %709
    %711 = vrot.lane.b32.xlu0 %v294, 80
    %v712 = vpop.permute.xlu0 %711
    %713 = vrot.lane.b32.xlu0 %v299, 80
    %v714 = vpop.permute.xlu0 %713
    %v715 = vsel %vm313, %v708, 0
    %v717 = vsel %vm313, %v710, 0
    %v719 = vsel %vm313, %v712, 0
    %v721 = vsel %vm313, %v714, 0
    %723 = vmatprep.subr.mxu0 0.0
    %724 = vmatpush1.xpose.msra.mxu0 0.0
    %725 = vmatprep.subr.mxu0 0.0
    %726 = vmatpush1.xpose.msra.mxu0 0.0
    %727 = vmatprep.subr.mxu0 0.0
    %728 = vmatpush1.xpose.msra.mxu0 0.0
    %729 = vmatprep.subr.mxu0 0.0
    %730 = vmatpush1.xpose.msra.mxu0 0.0
    %731 = vmatprep.subr.mxu0 0.0
    %732 = vmatpush1.xpose.msra.mxu0 0.0
    %733 = vmatprep.subr.mxu0 0.0
    %734 = vmatpush1.xpose.msra.mxu0 0.0
    %735 = vmatprep.subr.mxu0 0.0
    %736 = vmatpush1.xpose.msra.mxu0 0.0
    %737 = vmatprep.subr.mxu0 0.0
    %738 = vmatpush1.xpose.msra.mxu0 0.0
    %739 = vmatprep.subr.mxu0 0.0
    %740 = vmatpush1.xpose.msra.mxu0 0.0
    %741 = vmatprep.subr.mxu0 0.0
    %742 = vmatpush1.xpose.msra.mxu0 0.0
    %743 = vmatprep.subr.mxu0 0.0
    %744 = vmatpush1.xpose.msra.mxu0 0.0
    %745 = vmatprep.subr.mxu0 0.0
    %746 = vmatpush1.xpose.msra.mxu0 0.0
    %747 = vmatprep.subr.mxu0 0.0
    %748 = vmatpush1.xpose.msra.mxu0 0.0
    %749 = vmatprep.subr.mxu0 0.0
    %750 = vmatpush1.xpose.msra.mxu0 0.0
    %751 = vmatprep.subr.mxu0 0.0
    %752 = vmatpush1.xpose.msra.mxu0 %v721
    %753 = vmatprep.subr.mxu0 0.0
    %754 = vmatpush1.xpose.msra.mxu0 %v719
    %755 = vmatprep.subr.mxu0 0.0
    %756 = vmatpush2.xpose.msra.mxu0 0.0
    %757 = vmatprep.subr.mxu0 0.0
    %758 = vmatpush2.xpose.msra.mxu0 0.0
    %759 = vmatprep.subr.mxu0 0.0
    %760 = vmatpush2.xpose.msra.mxu0 0.0
    %761 = vmatprep.subr.mxu0 0.0
    %762 = vmatpush2.xpose.msra.mxu0 0.0
    %763 = vmatprep.subr.mxu0 0.0
    %764 = vmatpush2.xpose.msra.mxu0 0.0
    %765 = vmatprep.subr.mxu0 0.0
    %766 = vmatpush2.xpose.msra.mxu0 0.0
    %767 = vmatprep.subr.mxu0 0.0
    %768 = vmatpush2.xpose.msra.mxu0 0.0
    %769 = vmatprep.subr.mxu0 0.0
    %770 = vmatpush2.xpose.msra.mxu0 0.0
    %771 = vmatprep.subr.mxu0 0.0
    %772 = vmatpush2.xpose.msra.mxu0 0.0
    %773 = vmatprep.subr.mxu0 0.0
    %774 = vmatpush2.xpose.msra.mxu0 0.0
    %775 = vmatprep.subr.mxu0 0.0
    %776 = vmatpush2.xpose.msra.mxu0 0.0
    %777 = vmatprep.subr.mxu0 0.0
    %778 = vmatpush2.xpose.msra.mxu0 0.0
    %779 = vmatprep.subr.mxu0 0.0
    %780 = vmatpush2.xpose.msra.mxu0 0.0
    %781 = vmatprep.subr.mxu0 0.0
    %782 = vmatpush2.xpose.msra.mxu0 0.0
    %783 = vmatprep.subr.mxu0 0.0
    %784 = vmatpush2.xpose.msra.mxu0 0.0
    %785 = vmatprep.subr.mxu0 0.0
    %786 = vmatpush2.xpose.msra.mxu0 0.0
    %787 = vmatprep.mubr.f32.mxu0 0.0
    %788 = vmatmul.mubr.f32.gmra.mxu0 %v715
    %v789 = vpop.f32.mrf.mxu0
    %v790 = vadd.f32 %v118, %v789
    %v791 = vpop.f32.mrf.mxu0
    %792 = vmatprep.mubr.f32.mxu0 0.0
    %793 = vmatmul.mubr.f32.gmra.mxu0 %v717
    %v794 = vpop.f32.mrf.mxu0
    %v795 = vadd.f32 %v119, %v794
    %v796 = vpop.f32.mrf.mxu0
    %797 = vdwg.mxu0
    %v798 = vsel %vm397, %v790, -inf
    %799 = vmax.xlane.f32.xlu0 %v798
    %v800 = vpop.xlane.xlu0 %799
    %v801 = vsel %vm397, %v795, -inf
    %802 = vmax.xlane.f32.xlu0 %v801
    %v803 = vpop.xlane.xlu0 %802
    %v804 = vsub.f32 %v790, %v800
    %v805 = vsub.f32 %v795, %v803
    %v806 = vmul.f32 %v804, 1.442695
    %v807 = vpow.pop %v806
    %v808 = vmul.f32 %v805, 1.442695
    %v809 = vpow.pop %v808
    %v810 = vsel %vm397, %v807, 0.0
    %811 = vadd.xlane.f32.xlu0 %v810
    %v812 = vpop.xlane.xlu0 %811
    %v813 = vsel %vm397, %v809, 0.0
    %814 = vadd.xlane.f32.xlu0 %v813
    %v815 = vpop.xlane.xlu0 %814
    %v816 = vrcp.pop %v812
    %v817 = vrcp.pop %v815
    %818 = vrot.lane.b32.xlu0 %v294, 48
    %v819 = vpop.permute.xlu0 %818
    %820 = vrot.lane.b32.xlu0 %v299, 48
    %v821 = vpop.permute.xlu0 %820
    %v825 = vsel %vm397, %v807, 0
    %v828 = vsel %vm397, %v809, 0
    %830 = vmatprep.subr.mxu0 0.0
    %831 = vmatpush1.msra.mxu0 0.0
    %832 = vmatprep.subr.mxu0 0.0
    %833 = vmatpush1.msra.mxu0 0.0
    %834 = vmatprep.subr.mxu0 0.0
    %835 = vmatpush1.msra.mxu0 0.0
    %836 = vmatprep.subr.mxu0 0.0
    %837 = vmatpush1.msra.mxu0 0.0
    %838 = vmatprep.subr.mxu0 0.0
    %839 = vmatpush1.msra.mxu0 0.0
    %840 = vmatprep.subr.mxu0 0.0
    %841 = vmatpush1.msra.mxu0 0.0
    %842 = vmatprep.subr.mxu0 0.0
    %843 = vmatpush1.msra.mxu0 0.0
    %844 = vmatprep.subr.mxu0 0.0
    %845 = vmatpush1.msra.mxu0 0.0
    %846 = vmatprep.subr.mxu0 0.0
    %847 = vmatpush1.msra.mxu0 0.0
    %848 = vmatprep.subr.mxu0 0.0
    %849 = vmatpush1.msra.mxu0 0.0
    %850 = vmatprep.subr.mxu0 0.0
    %851 = vmatpush1.msra.mxu0 0.0
    %852 = vmatprep.subr.mxu0 0.0
    %853 = vmatpush1.msra.mxu0 0.0
    %854 = vmatprep.subr.mxu0 0.0
    %855 = vmatpush1.msra.mxu0 0.0
    %856 = vmatprep.subr.mxu0 0.0
    %857 = vmatpush1.msra.mxu0 0.0
    %858 = vmatprep.subr.mxu0 0.0
    %859 = vmatpush1.msra.mxu0 %v821
    %860 = vmatprep.subr.mxu0 0.0
    %861 = vmatpush1.msra.mxu0 %v819
    %862 = vmatprep.subr.mxu0 0.0
    %863 = vmatpush2.msra.mxu0 0.0
    %864 = vmatprep.subr.mxu0 0.0
    %865 = vmatpush2.msra.mxu0 0.0
    %866 = vmatprep.subr.mxu0 0.0
    %867 = vmatpush2.msra.mxu0 0.0
    %868 = vmatprep.subr.mxu0 0.0
    %869 = vmatpush2.msra.mxu0 0.0
    %870 = vmatprep.subr.mxu0 0.0
    %871 = vmatpush2.msra.mxu0 0.0
    %872 = vmatprep.subr.mxu0 0.0
    %873 = vmatpush2.msra.mxu0 0.0
    %874 = vmatprep.subr.mxu0 0.0
    %875 = vmatpush2.msra.mxu0 0.0
    %876 = vmatprep.subr.mxu0 0.0
    %877 = vmatpush2.msra.mxu0 0.0
    %878 = vmatprep.subr.mxu0 0.0
    %879 = vmatpush2.msra.mxu0 0.0
    %880 = vmatprep.subr.mxu0 0.0
    %881 = vmatpush2.msra.mxu0 0.0
    %882 = vmatprep.subr.mxu0 0.0
    %883 = vmatpush2.msra.mxu0 0.0
    %884 = vmatprep.subr.mxu0 0.0
    %885 = vmatpush2.msra.mxu0 0.0
    %886 = vmatprep.subr.mxu0 0.0
    %887 = vmatpush2.msra.mxu0 0.0
    %888 = vmatprep.subr.mxu0 0.0
    %889 = vmatpush2.msra.mxu0 0.0
    %890 = vmatprep.subr.mxu0 0.0
    %891 = vmatpush2.msra.mxu0 0.0
    %892 = vmatprep.subr.mxu0 0.0
    %893 = vmatpush2.msra.mxu0 0.0
    %894 = vmatprep.mubr.f32.mxu0 0.0
    %895 = vmatmul.mubr.f32.gmra.mxu0 %v825
    %v896 = vpop.f32.mrf.mxu0
    %v897 = vadd.f32 0.0, %v896
    %v898 = vpop.f32.mrf.mxu0
    %899 = vmatprep.mubr.f32.mxu0 0.0
    %900 = vmatmul.mubr.f32.gmra.mxu0 %v828
    %v901 = vpop.f32.mrf.mxu0
    %v902 = vadd.f32 0.0, %v901
    %v903 = vpop.f32.mrf.mxu0
    %904 = vdwg.mxu0
    %v905 = vmul.f32 %v897, %v816
    %v906 = vmul.f32 %v902, %v817
    %907 = vrot.lane.b32.xlu0 %v294, 104
    %v908 = vpop.permute.xlu0 %907
    %909 = vrot.lane.b32.xlu0 %v299, 104
    %v910 = vpop.permute.xlu0 %909
    %911 = vrot.lane.b32.xlu0 %v294, 72
    %v912 = vpop.permute.xlu0 %911
    %913 = vrot.lane.b32.xlu0 %v299, 72
    %v914 = vpop.permute.xlu0 %913
    %v915 = vsel %vm313, %v908, 0
    %v917 = vsel %vm313, %v910, 0
    %v919 = vsel %vm313, %v912, 0
    %v921 = vsel %vm313, %v914, 0
    %923 = vmatprep.subr.mxu0 0.0
    %924 = vmatpush1.xpose.msra.mxu0 0.0
    %925 = vmatprep.subr.mxu0 0.0
    %926 = vmatpush1.xpose.msra.mxu0 0.0
    %927 = vmatprep.subr.mxu0 0.0
    %928 = vmatpush1.xpose.msra.mxu0 0.0
    %929 = vmatprep.subr.mxu0 0.0
    %930 = vmatpush1.xpose.msra.mxu0 0.0
    %931 = vmatprep.subr.mxu0 0.0
    %932 = vmatpush1.xpose.msra.mxu0 0.0
    %933 = vmatprep.subr.mxu0 0.0
    %934 = vmatpush1.xpose.msra.mxu0 0.0
    %935 = vmatprep.subr.mxu0 0.0
    %936 = vmatpush1.xpose.msra.mxu0 0.0
    %937 = vmatprep.subr.mxu0 0.0
    %938 = vmatpush1.xpose.msra.mxu0 0.0
    %939 = vmatprep.subr.mxu0 0.0
    %940 = vmatpush1.xpose.msra.mxu0 0.0
    %941 = vmatprep.subr.mxu0 0.0
    %942 = vmatpush1.xpose.msra.mxu0 0.0
    %943 = vmatprep.subr.mxu0 0.0
    %944 = vmatpush1.xpose.msra.mxu0 0.0
    %945 = vmatprep.subr.mxu0 0.0
    %946 = vmatpush1.xpose.msra.mxu0 0.0
    %947 = vmatprep.subr.mxu0 0.0
    %948 = vmatpush1.xpose.msra.mxu0 0.0
    %949 = vmatprep.subr.mxu0 0.0
    %950 = vmatpush1.xpose.msra.mxu0 0.0
    %951 = vmatprep.subr.mxu0 0.0
    %952 = vmatpush1.xpose.msra.mxu0 %v921
    %953 = vmatprep.subr.mxu0 0.0
    %954 = vmatpush1.xpose.msra.mxu0 %v919
    %955 = vmatprep.subr.mxu0 0.0
    %956 = vmatpush2.xpose.msra.mxu0 0.0
    %957 = vmatprep.subr.mxu0 0.0
    %958 = vmatpush2.xpose.msra.mxu0 0.0
    %959 = vmatprep.subr.mxu0 0.0
    %960 = vmatpush2.xpose.msra.mxu0 0.0
    %961 = vmatprep.subr.mxu0 0.0
    %962 = vmatpush2.xpose.msra.mxu0 0.0
    %963 = vmatprep.subr.mxu0 0.0
    %964 = vmatpush2.xpose.msra.mxu0 0.0
    %965 = vmatprep.subr.mxu0 0.0
    %966 = vmatpush2.xpose.msra.mxu0 0.0
    %967 = vmatprep.subr.mxu0 0.0
    %968 = vmatpush2.xpose.msra.mxu0 0.0
    %969 = vmatprep.subr.mxu0 0.0
    %970 = vmatpush2.xpose.msra.mxu0 0.0
    %971 = vmatprep.subr.mxu0 0.0
    %972 = vmatpush2.xpose.msra.mxu0 0.0
    %973 = vmatprep.subr.mxu0 0.0
    %974 = vmatpush2.xpose.msra.mxu0 0.0
    %975 = vmatprep.subr.mxu0 0.0
    %976 = vmatpush2.xpose.msra.mxu0 0.0
    %977 = vmatprep.subr.mxu0 0.0
    %978 = vmatpush2.xpose.msra.mxu0 0.0
    %979 = vmatprep.subr.mxu0 0.0
    %980 = vmatpush2.xpose.msra.mxu0 0.0
    %981 = vmatprep.subr.mxu0 0.0
    %982 = vmatpush2.xpose.msra.mxu0 0.0
    %983 = vmatprep.subr.mxu0 0.0
    %984 = vmatpush2.xpose.msra.mxu0 0.0
    %985 = vmatprep.subr.mxu0 0.0
    %986 = vmatpush2.xpose.msra.mxu0 0.0
    %987 = vmatprep.mubr.f32.mxu0 0.0
    %988 = vmatmul.mubr.f32.gmra.mxu0 %v915
    %v989 = vpop.f32.mrf.mxu0
    %v990 = vadd.f32 %v118, %v989
    %v991 = vpop.f32.mrf.mxu0
    %992 = vmatprep.mubr.f32.mxu0 0.0
    %993 = vmatmul.mubr.f32.gmra.mxu0 %v917
    %v994 = vpop.f32.mrf.mxu0
    %v995 = vadd.f32 %v119, %v994
    %v996 = vpop.f32.mrf.mxu0
    %997 = vdwg.mxu0
    %v998 = vsel %vm397, %v990, -inf
    %999 = vmax.xlane.f32.xlu0 %v998
    %v1000 = vpop.xlane.xlu0 %999
    %v1001 = vsel %vm397, %v995, -inf
    %1002 = vmax.xlane.f32.xlu0 %v1001
    %v1003 = vpop.xlane.xlu0 %1002
    %v1004 = vsub.f32 %v990, %v1000
    %v1005 = vsub.f32 %v995, %v1003
    %v1006 = vmul.f32 %v1004, 1.442695
    %v1007 = vpow.pop %v1006
    %v1008 = vmul.f32 %v1005, 1.442695
    %v1009 = vpow.pop %v1008
    %v1010 = vsel %vm397, %v1007, 0.0
    %1011 = vadd.xlane.f32.xlu0 %v1010
    %v1012 = vpop.xlane.xlu0 %1011
    %v1013 = vsel %vm397, %v1009, 0.0
    %1014 = vadd.xlane.f32.xlu0 %v1013
    %v1015 = vpop.xlane.xlu0 %1014
    %v1016 = vrcp.pop %v1012
    %v1017 = vrcp.pop %v1015
    %1018 = vrot.lane.b32.xlu0 %v294, 40
    %v1019 = vpop.permute.xlu0 %1018
    %1020 = vrot.lane.b32.xlu0 %v299, 40
    %v1021 = vpop.permute.xlu0 %1020
    %v1025 = vsel %vm397, %v1007, 0
    %v1028 = vsel %vm397, %v1009, 0
    %1030 = vmatprep.subr.mxu0 0.0
    %1031 = vmatpush1.msra.mxu0 0.0
    %1032 = vmatprep.subr.mxu0 0.0
    %1033 = vmatpush1.msra.mxu0 0.0
    %1034 = vmatprep.subr.mxu0 0.0
    %1035 = vmatpush1.msra.mxu0 0.0
    %1036 = vmatprep.subr.mxu0 0.0
    %1037 = vmatpush1.msra.mxu0 0.0
    %1038 = vmatprep.subr.mxu0 0.0
    %1039 = vmatpush1.msra.mxu0 0.0
    %1040 = vmatprep.subr.mxu0 0.0
    %1041 = vmatpush1.msra.mxu0 0.0
    %1042 = vmatprep.subr.mxu0 0.0
    %1043 = vmatpush1.msra.mxu0 0.0
    %1044 = vmatprep.subr.mxu0 0.0
    %1045 = vmatpush1.msra.mxu0 0.0
    %1046 = vmatprep.subr.mxu0 0.0
    %1047 = vmatpush1.msra.mxu0 0.0
    %1048 = vmatprep.subr.mxu0 0.0
    %1049 = vmatpush1.msra.mxu0 0.0
    %1050 = vmatprep.subr.mxu0 0.0
    %1051 = vmatpush1.msra.mxu0 0.0
    %1052 = vmatprep.subr.mxu0 0.0
    %1053 = vmatpush1.msra.mxu0 0.0
    %1054 = vmatprep.subr.mxu0 0.0
    %1055 = vmatpush1.msra.mxu0 0.0
    %1056 = vmatprep.subr.mxu0 0.0
    %1057 = vmatpush1.msra.mxu0 0.0
    %1058 = vmatprep.subr.mxu0 0.0
    %1059 = vmatpush1.msra.mxu0 %v1021
    %1060 = vmatprep.subr.mxu0 0.0
    %1061 = vmatpush1.msra.mxu0 %v1019
    %1062 = vmatprep.subr.mxu0 0.0
    %1063 = vmatpush2.msra.mxu0 0.0
    %1064 = vmatprep.subr.mxu0 0.0
    %1065 = vmatpush2.msra.mxu0 0.0
    %1066 = vmatprep.subr.mxu0 0.0
    %1067 = vmatpush2.msra.mxu0 0.0
    %1068 = vmatprep.subr.mxu0 0.0
    %1069 = vmatpush2.msra.mxu0 0.0
    %1070 = vmatprep.subr.mxu0 0.0
    %1071 = vmatpush2.msra.mxu0 0.0
    %1072 = vmatprep.subr.mxu0 0.0
    %1073 = vmatpush2.msra.mxu0 0.0
    %1074 = vmatprep.subr.mxu0 0.0
    %1075 = vmatpush2.msra.mxu0 0.0
    %1076 = vmatprep.subr.mxu0 0.0
    %1077 = vmatpush2.msra.mxu0 0.0
    %1078 = vmatprep.subr.mxu0 0.0
    %1079 = vmatpush2.msra.mxu0 0.0
    %1080 = vmatprep.subr.mxu0 0.0
    %1081 = vmatpush2.msra.mxu0 0.0
    %1082 = vmatprep.subr.mxu0 0.0
    %1083 = vmatpush2.msra.mxu0 0.0
    %1084 = vmatprep.subr.mxu0 0.0
    %1085 = vmatpush2.msra.mxu0 0.0
    %1086 = vmatprep.subr.mxu0 0.0
    %1087 = vmatpush2.msra.mxu0 0.0
    %1088 = vmatprep.subr.mxu0 0.0
    %1089 = vmatpush2.msra.mxu0 0.0
    %1090 = vmatprep.subr.mxu0 0.0
    %1091 = vmatpush2.msra.mxu0 0.0
    %1092 = vmatprep.subr.mxu0 0.0
    %1093 = vmatpush2.msra.mxu0 0.0
    %1094 = vmatprep.mubr.f32.mxu0 0.0
    %1095 = vmatmul.mubr.f32.gmra.mxu0 %v1025
    %v1096 = vpop.f32.mrf.mxu0
    %v1097 = vadd.f32 0.0, %v1096
    %v1098 = vpop.f32.mrf.mxu0
    %1099 = vmatprep.mubr.f32.mxu0 0.0
    %1100 = vmatmul.mubr.f32.gmra.mxu0 %v1028
    %v1101 = vpop.f32.mrf.mxu0
    %v1102 = vadd.f32 0.0, %v1101
    %v1103 = vpop.f32.mrf.mxu0
    %1104 = vdwg.mxu0
    %v1105 = vmul.f32 %v1097, %v1016
    %v1106 = vmul.f32 %v1102, %v1017
    %1109 = vrot.lane.b32.xlu0 %v705, 8
    %v1110 = vpop.permute.xlu0 %1109
    %1111 = vrot.lane.b32.xlu0 %v706, 8
    %v1112 = vpop.permute.xlu0 %1111
    %1117 = vrot.lane.b32.xlu0 %v905, 16
    %v1118 = vpop.permute.xlu0 %1117
    %1119 = vrot.lane.b32.xlu0 %v906, 16
    %v1120 = vpop.permute.xlu0 %1119
    %1125 = vrot.lane.b32.xlu0 %v1105, 24
    %v1126 = vpop.permute.xlu0 %1125
    %1127 = vrot.lane.b32.xlu0 %v1106, 24
    %v1128 = vpop.permute.xlu0 %1127
    %v1131 = vsel %vm313, %v505, %v1110
    %v1132 = vsel %vm313, %v506, %v1112
    %v1133 = vsel %vm397, %v1131, %v1118
    %v1134 = vsel %vm397, %v1132, %v1120
    %vm1135 = vcmask 195584
    %v1136 = vsel %vm1135, %v1133, %v1126
    %v1137 = vsel %vm1135, %v1134, %v1128
    %v1139 = vsel %vm135, %v1136, 0
    %v1142 = vsel %vm135, %v1137, 0
    %1144 = vmatprep.subr.mxu0 0.0
    %1145 = vmatpush1.msra.mxu0 0.0
    %1146 = vmatprep.subr.mxu0 0.0
    %1147 = vmatpush1.msra.mxu0 0.0
    %1148 = vmatprep.subr.mxu0 0.0
    %1149 = vmatpush1.msra.mxu0 0.0
    %1150 = vmatprep.subr.mxu0 0.0
    %1151 = vmatpush1.msra.mxu0 0.0
    %1152 = vmatprep.subr.mxu0 0.0
    %1153 = vmatpush1.msra.mxu0 0.0
    %1154 = vmatprep.subr.mxu0 0.0
    %1155 = vmatpush1.msra.mxu0 0.0
    %1156 = vmatprep.subr.mxu0 0.0
    %1157 = vmatpush1.msra.mxu0 0.0
    %1158 = vmatprep.subr.mxu0 0.0
    %1159 = vmatpush1.msra.mxu0 0.0
    %1160 = vmatprep.subr.mxu0 0.0
    %1161 = vmatpush1.msra.mxu0 0.0
    %1162 = vmatprep.subr.mxu0 0.0
    %1163 = vmatpush1.msra.mxu0 0.0
    %1164 = vmatprep.subr.mxu0 0.0
    %1165 = vmatpush1.msra.mxu0 0.0
    %1166 = vmatprep.subr.mxu0 0.0
    %1167 = vmatpush1.msra.mxu0 0.0
    %1168 = vmatprep.subr.mxu0 0.0
    %1169 = vmatpush1.msra.mxu0 %v306
    %1170 = vmatprep.subr.mxu0 0.0
    %1171 = vmatpush1.msra.mxu0 %v305
    %1172 = vmatprep.subr.mxu0 0.0
    %1173 = vmatpush1.msra.mxu0 %v304
    %1174 = vmatprep.subr.mxu0 0.0
    %1175 = vmatpush1.msra.mxu0 %v303
    %1176 = vmatprep.subr.mxu0 0.0
    %1177 = vmatpush2.msra.mxu0 0.0
    %1178 = vmatprep.subr.mxu0 0.0
    %1179 = vmatpush2.msra.mxu0 0.0
    %1180 = vmatprep.subr.mxu0 0.0
    %1181 = vmatpush2.msra.mxu0 0.0
    %1182 = vmatprep.subr.mxu0 0.0
    %1183 = vmatpush2.msra.mxu0 0.0
    %1184 = vmatprep.subr.mxu0 0.0
    %1185 = vmatpush2.msra.mxu0 0.0
    %1186 = vmatprep.subr.mxu0 0.0
    %1187 = vmatpush2.msra.mxu0 0.0
    %1188 = vmatprep.subr.mxu0 0.0
    %1189 = vmatpush2.msra.mxu0 0.0
    %1190 = vmatprep.subr.mxu0 0.0
    %1191 = vmatpush2.msra.mxu0 0.0
    %1192 = vmatprep.subr.mxu0 0.0
    %1193 = vmatpush2.msra.mxu0 0.0
    %1194 = vmatprep.subr.mxu0 0.0
    %1195 = vmatpush2.msra.mxu0 0.0
    %1196 = vmatprep.subr.mxu0 0.0
    %1197 = vmatpush2.msra.mxu0 0.0
    %1198 = vmatprep.subr.mxu0 0.0
    %1199 = vmatpush2.msra.mxu0 0.0
    %1200 = vmatprep.subr.mxu0 0.0
    %1201 = vmatpush2.msra.mxu0 0.0
    %1202 = vmatprep.subr.mxu0 0.0
    %1203 = vmatpush2.msra.mxu0 0.0
    %1204 = vmatprep.subr.mxu0 0.0
    %1205 = vmatpush2.msra.mxu0 0.0
    %1206 = vmatprep.subr.mxu0 0.0
    %1207 = vmatpush2.msra.mxu0 0.0
    %1208 = vmatprep.mubr.f32.mxu0 0.0
    %1209 = vmatmul.mubr.f32.gmra.mxu0 %v1139
    %v1210 = vpop.f32.mrf.mxu0
    %v1211 = vadd.f32 0.0, %v1210
    %v1212 = vpop.f32.mrf.mxu0
    %1213 = vmatprep.mubr.f32.mxu0 0.0
    %1214 = vmatmul.mubr.f32.gmra.mxu0 %v1142
    %v1215 = vpop.f32.mrf.mxu0
    %v1216 = vadd.f32 0.0, %v1215
    %v1217 = vpop.f32.mrf.mxu0
    %1218 = vdwg.mxu0
    %v1219 = vadd.f32 %v127, %v1211
    %v1220 = vadd.f32 %v128, %v1216
    %v1221 = vld [vmem:[%s9] sm:$0xff]
    %s1222 = scalar_lea.vmem %s9, 8
    %v1223 = vld [vmem:[%s1222] sm:$0xff]
    %v1224 = vmul.f32 %v1219, %v1219
    %v1225 = vmul.f32 %v1220, %v1220
    %v1226 = vsel %vm135, %v1219, 0.0
    %1227 = vadd.xlane.f32.xlu0 %v1226
    %v1228 = vpop.xlane.xlu0 %1227
    %v1229 = vsel %vm135, %v1220, 0.0
    %1230 = vadd.xlane.f32.xlu0 %v1229
    %v1231 = vpop.xlane.xlu0 %1230
    %v1232 = vsel %vm135, %v1224, 0.0
    %1233 = vadd.xlane.f32.xlu0 %v1232
    %v1234 = vpop.xlane.xlu0 %1233
    %v1235 = vsel %vm135, %v1225, 0.0
    %1236 = vadd.xlane.f32.xlu0 %v1235
    %v1237 = vpop.xlane.xlu0 %1236
    %v1238 = vrot.slane %v1228, 4
    %v1239 = vadd.f32 %v1228, %v1238
    %v1240 = vrot.slane %v1239, 2
    %v1241 = vadd.f32 %v1239, %v1240
    %v1242 = vrot.slane %v1241, 1
    %v1243 = vadd.f32 %v1241, %v1242
    %v1244 = vrot.slane %v1231, 4
    %v1245 = vadd.f32 %v1231, %v1244
    %v1246 = vrot.slane %v1245, 2
    %v1247 = vadd.f32 %v1245, %v1246
    %v1248 = vrot.slane %v1247, 1
    %v1249 = vadd.f32 %v1247, %v1248
    %v1250 = vrot.slane %v1234, 4
    %v1251 = vadd.f32 %v1234, %v1250
    %v1252 = vrot.slane %v1251, 2
    %v1253 = vadd.f32 %v1251, %v1252
    %v1254 = vrot.slane %v1253, 1
    %v1255 = vadd.f32 %v1253, %v1254
    %v1256 = vrot.slane %v1237, 4
    %v1257 = vadd.f32 %v1237, %v1256
    %v1258 = vrot.slane %v1257, 2
    %v1259 = vadd.f32 %v1257, %v1258
    %v1260 = vrot.slane %v1259, 1
    %v1261 = vadd.f32 %v1259, %v1260
    %v1262 = vrcp.pop 256.0
    %v1263 = vmul.f32 %v1243, %v1262
    %v1264 = vmul.f32 %v1249, %v1262
    %v1265 = vmul.f32 %v1263, 256.0
    %v1266 = vmul.f32 %v1264, 256.0
    %v1267 = vmul.f32 %v1265, %v1263
    %v1268 = vmul.f32 %v1266, %v1264
    %v1269 = vsub.f32 %v1255, %v1267
    %v1270 = vsub.f32 %v1261, %v1268
    %v1271 = vrcp.pop 255.0
    %v1272 = vmul.f32 %v1269, %v1271
    %v1273 = vmul.f32 %v1270, %v1271
    %v1274 = vadd.f32 %v1272, 1e-05
    %v1275 = vadd.f32 %v1273, 1e-05
    %v1276 = vrsqrt.pop %v1274
    %v1277 = vrsqrt.pop %v1275
    %v1278 = vsub.f32 %v1219, %v1263
    %v1279 = vsub.f32 %v1220, %v1264
    %v1280 = vmul.f32 %v1278, %v1276
    %v1281 = vmul.f32 %v1279, %v1277
    %v1282 = vmul.f32 %v1280, %v1221
    %v1283 = vmul.f32 %v1281, %v1221
    %v1284 = vadd.f32 %v1282, %v1223
    %v1285 = vadd.f32 %v1283, %v1223
    %v1286 = vld [vmem:[%s6] sm:$0xff]
    %v1287 = vld [vmem:[%s6 + $0x8] sm:$0xff]
    %v1288 = vld [vmem:[%s6 + $0x10] sm:$0xff]
    %v1289 = vld [vmem:[%s6 + $0x18] sm:$0xff]
    %v1291 = vsel %vm135, %v1284, 0
    %v1294 = vsel %vm135, %v1285, 0
    %1296 = vmatprep.subr.mxu0 0.0
    %1297 = vmatpush1.msra.mxu0 0.0
    %1298 = vmatprep.subr.mxu0 0.0
    %1299 = vmatpush1.msra.mxu0 0.0
    %1300 = vmatprep.subr.mxu0 0.0
    %1301 = vmatpush1.msra.mxu0 0.0
    %1302 = vmatprep.subr.mxu0 0.0
    %1303 = vmatpush1.msra.mxu0 0.0
    %1304 = vmatprep.subr.mxu0 0.0
    %1305 = vmatpush1.msra.mxu0 0.0
    %1306 = vmatprep.subr.mxu0 0.0
    %1307 = vmatpush1.msra.mxu0 0.0
    %1308 = vmatprep.subr.mxu0 0.0
    %1309 = vmatpush1.msra.mxu0 0.0
    %1310 = vmatprep.subr.mxu0 0.0
    %1311 = vmatpush1.msra.mxu0 0.0
    %1312 = vmatprep.subr.mxu0 0.0
    %1313 = vmatpush1.msra.mxu0 0.0
    %1314 = vmatprep.subr.mxu0 0.0
    %1315 = vmatpush1.msra.mxu0 0.0
    %1316 = vmatprep.subr.mxu0 0.0
    %1317 = vmatpush1.msra.mxu0 0.0
    %1318 = vmatprep.subr.mxu0 0.0
    %1319 = vmatpush1.msra.mxu0 0.0
    %1320 = vmatprep.subr.mxu0 0.0
    %1321 = vmatpush1.msra.mxu0 %v1289
    %1322 = vmatprep.subr.mxu0 0.0
    %1323 = vmatpush1.msra.mxu0 %v1288
    %1324 = vmatprep.subr.mxu0 0.0
    %1325 = vmatpush1.msra.mxu0 %v1287
    %1326 = vmatprep.subr.mxu0 0.0
    %1327 = vmatpush1.msra.mxu0 %v1286
    %1328 = vmatprep.subr.mxu0 0.0
    %1329 = vmatpush2.msra.mxu0 0.0
    %1330 = vmatprep.subr.mxu0 0.0
    %1331 = vmatpush2.msra.mxu0 0.0
    %1332 = vmatprep.subr.mxu0 0.0
    %1333 = vmatpush2.msra.mxu0 0.0
    %1334 = vmatprep.subr.mxu0 0.0
    %1335 = vmatpush2.msra.mxu0 0.0
    %1336 = vmatprep.subr.mxu0 0.0
    %1337 = vmatpush2.msra.mxu0 0.0
    %1338 = vmatprep.subr.mxu0 0.0
    %1339 = vmatpush2.msra.mxu0 0.0
    %1340 = vmatprep.subr.mxu0 0.0
    %1341 = vmatpush2.msra.mxu0 0.0
    %1342 = vmatprep.subr.mxu0 0.0
    %1343 = vmatpush2.msra.mxu0 0.0
    %1344 = vmatprep.subr.mxu0 0.0
    %1345 = vmatpush2.msra.mxu0 0.0
    %1346 = vmatprep.subr.mxu0 0.0
    %1347 = vmatpush2.msra.mxu0 0.0
    %1348 = vmatprep.subr.mxu0 0.0
    %1349 = vmatpush2.msra.mxu0 0.0
    %1350 = vmatprep.subr.mxu0 0.0
    %1351 = vmatpush2.msra.mxu0 0.0
    %1352 = vmatprep.subr.mxu0 0.0
    %1353 = vmatpush2.msra.mxu0 0.0
    %1354 = vmatprep.subr.mxu0 0.0
    %1355 = vmatpush2.msra.mxu0 0.0
    %1356 = vmatprep.subr.mxu0 0.0
    %1357 = vmatpush2.msra.mxu0 0.0
    %1358 = vmatprep.subr.mxu0 0.0
    %1359 = vmatpush2.msra.mxu0 0.0
    %1360 = vmatprep.mubr.f32.mxu0 0.0
    %1361 = vmatmul.mubr.f32.gmra.mxu0 %v1291
    %v1362 = vpop.f32.mrf.mxu0
    %v1363 = vadd.f32 0.0, %v1362
    %v1364 = vpop.f32.mrf.mxu0
    %1365 = vmatprep.mubr.f32.mxu0 0.0
    %1366 = vmatmul.mubr.f32.gmra.mxu0 %v1294
    %v1367 = vpop.f32.mrf.mxu0
    %v1368 = vadd.f32 0.0, %v1367
    %v1369 = vpop.f32.mrf.mxu0
    %1370 = vdwg.mxu0
    %s1371 = scalar_lea.vmem %s6, 64
    %v1372 = vld [vmem:[%s1371] sm:$0xff]
    %v1373 = vld [vmem:[%s1371 + $0x8] sm:$0xff]
    %v1374 = vld [vmem:[%s1371 + $0x10] sm:$0xff]
    %v1375 = vld [vmem:[%s1371 + $0x18] sm:$0xff]
    %v1377 = vsel %vm313, %v1363, 0
    %v1380 = vsel %vm313, %v1368, 0
    %v1383 = vsel %vm313, %v209, 0
    %v1386 = vsel %vm313, %v214, 0
    %1388 = vmatprep.subr.mxu0 0.0
    %1389 = vmatpush1.xpose.msra.mxu0 0.0
    %1390 = vmatprep.subr.mxu0 0.0
    %1391 = vmatpush1.xpose.msra.mxu0 0.0
    %1392 = vmatprep.subr.mxu0 0.0
    %1393 = vmatpush1.xpose.msra.mxu0 0.0
    %1394 = vmatprep.subr.mxu0 0.0
    %1395 = vmatpush1.xpose.msra.mxu0 0.0
    %1396 = vmatprep.subr.mxu0 0.0
    %1397 = vmatpush1.xpose.msra.mxu0 0.0
    %1398 = vmatprep.subr.mxu0 0.0
    %1399 = vmatpush1.xpose.msra.mxu0 0.0
    %1400 = vmatprep.subr.mxu0 0.0
    %1401 = vmatpush1.xpose.msra.mxu0 0.0
    %1402 = vmatprep.subr.mxu0 0.0
    %1403 = vmatpush1.xpose.msra.mxu0 0.0
    %1404 = vmatprep.subr.mxu0 0.0
    %1405 = vmatpush1.xpose.msra.mxu0 0.0
    %1406 = vmatprep.subr.mxu0 0.0
    %1407 = vmatpush1.xpose.msra.mxu0 0.0
    %1408 = vmatprep.subr.mxu0 0.0
    %1409 = vmatpush1.xpose.msra.mxu0 0.0
    %1410 = vmatprep.subr.mxu0 0.0
    %1411 = vmatpush1.xpose.msra.mxu0 0.0
    %1412 = vmatprep.subr.mxu0 0.0
    %1413 = vmatpush1.xpose.msra.mxu0 0.0
    %1414 = vmatprep.subr.mxu0 0.0
    %1415 = vmatpush1.xpose.msra.mxu0 0.0
    %1416 = vmatprep.subr.mxu0 0.0
    %1417 = vmatpush1.xpose.msra.mxu0 %v1386
    %1418 = vmatprep.subr.mxu0 0.0
    %1419 = vmatpush1.xpose.msra.mxu0 %v1383
    %1420 = vmatprep.subr.mxu0 0.0
    %1421 = vmatpush2.xpose.msra.mxu0 0.0
    %1422 = vmatprep.subr.mxu0 0.0
    %1423 = vmatpush2.xpose.msra.mxu0 0.0
    %1424 = vmatprep.subr.mxu0 0.0
    %1425 = vmatpush2.xpose.msra.mxu0 0.0
    %1426 = vmatprep.subr.mxu0 0.0
    %1427 = vmatpush2.xpose.msra.mxu0 0.0
    %1428 = vmatprep.subr.mxu0 0.0
    %1429 = vmatpush2.xpose.msra.mxu0 0.0
    %1430 = vmatprep.subr.mxu0 0.0
    %1431 = vmatpush2.xpose.msra.mxu0 0.0
    %1432 = vmatprep.subr.mxu0 0.0
    %1433 = vmatpush2.xpose.msra.mxu0 0.0
    %1434 = vmatprep.subr.mxu0 0.0
    %1435 = vmatpush2.xpose.msra.mxu0 0.0
    %1436 = vmatprep.subr.mxu0 0.0
    %1437 = vmatpush2.xpose.msra.mxu0 0.0
    %1438 = vmatprep.subr.mxu0 0.0
    %1439 = vmatpush2.xpose.msra.mxu0 0.0
    %1440 = vmatprep.subr.mxu0 0.0
    %1441 = vmatpush2.xpose.msra.mxu0 0.0
    %1442 = vmatprep.subr.mxu0 0.0
    %1443 = vmatpush2.xpose.msra.mxu0 0.0
    %1444 = vmatprep.subr.mxu0 0.0
    %1445 = vmatpush2.xpose.msra.mxu0 0.0
    %1446 = vmatprep.subr.mxu0 0.0
    %1447 = vmatpush2.xpose.msra.mxu0 0.0
    %1448 = vmatprep.subr.mxu0 0.0
    %1449 = vmatpush2.xpose.msra.mxu0 0.0
    %1450 = vmatprep.subr.mxu0 0.0
    %1451 = vmatpush2.xpose.msra.mxu0 0.0
    %1452 = vmatprep.mubr.f32.mxu0 0.0
    %1453 = vmatmul.mubr.f32.gmra.mxu0 %v1377
    %v1454 = vpop.f32.mrf.mxu0
    %v1455 = vadd.f32 %v121, %v1454
    %v1456 = vpop.f32.mrf.mxu0
    %1457 = vmatprep.mubr.f32.mxu0 0.0
    %1458 = vmatmul.mubr.f32.gmra.mxu0 %v1380
    %v1459 = vpop.f32.mrf.mxu0
    %v1460 = vadd.f32 %v122, %v1459
    %v1461 = vpop.f32.mrf.mxu0
    %1462 = vdwg.mxu0
    %v1463 = vsel %vm397, %v1455, -inf
    %1464 = vmax.xlane.f32.xlu0 %v1463
    %v1465 = vpop.xlane.xlu0 %1464
    %v1466 = vsel %vm397, %v1460, -inf
    %1467 = vmax.xlane.f32.xlu0 %v1466
    %v1468 = vpop.xlane.xlu0 %1467
    %v1469 = vsub.f32 %v1455, %v1465
    %v1470 = vsub.f32 %v1460, %v1468
    %v1471 = vmul.f32 %v1469, 1.442695
    %v1472 = vpow.pop %v1471
    %v1473 = vmul.f32 %v1470, 1.442695
    %v1474 = vpow.pop %v1473
    %v1475 = vsel %vm397, %v1472, 0.0
    %1476 = vadd.xlane.f32.xlu0 %v1475
    %v1477 = vpop.xlane.xlu0 %1476
    %v1478 = vsel %vm397, %v1474, 0.0
    %1479 = vadd.xlane.f32.xlu0 %v1478
    %v1480 = vpop.xlane.xlu0 %1479
    %v1481 = vrcp.pop %v1477
    %v1482 = vrcp.pop %v1480
    %1483 = vrot.lane.b32.xlu0 %v209, 96
    %v1484 = vpop.permute.xlu0 %1483
    %1485 = vrot.lane.b32.xlu0 %v214, 96
    %v1486 = vpop.permute.xlu0 %1485
    %v1490 = vsel %vm397, %v1472, 0
    %v1493 = vsel %vm397, %v1474, 0
    %1495 = vmatprep.subr.mxu0 0.0
    %1496 = vmatpush1.msra.mxu0 0.0
    %1497 = vmatprep.subr.mxu0 0.0
    %1498 = vmatpush1.msra.mxu0 0.0
    %1499 = vmatprep.subr.mxu0 0.0
    %1500 = vmatpush1.msra.mxu0 0.0
    %1501 = vmatprep.subr.mxu0 0.0
    %1502 = vmatpush1.msra.mxu0 0.0
    %1503 = vmatprep.subr.mxu0 0.0
    %1504 = vmatpush1.msra.mxu0 0.0
    %1505 = vmatprep.subr.mxu0 0.0
    %1506 = vmatpush1.msra.mxu0 0.0
    %1507 = vmatprep.subr.mxu0 0.0
    %1508 = vmatpush1.msra.mxu0 0.0
    %1509 = vmatprep.subr.mxu0 0.0
    %1510 = vmatpush1.msra.mxu0 0.0
    %1511 = vmatprep.subr.mxu0 0.0
    %1512 = vmatpush1.msra.mxu0 0.0
    %1513 = vmatprep.subr.mxu0 0.0
    %1514 = vmatpush1.msra.mxu0 0.0
    %1515 = vmatprep.subr.mxu0 0.0
    %1516 = vmatpush1.msra.mxu0 0.0
    %1517 = vmatprep.subr.mxu0 0.0
    %1518 = vmatpush1.msra.mxu0 0.0
    %1519 = vmatprep.subr.mxu0 0.0
    %1520 = vmatpush1.msra.mxu0 0.0
    %1521 = vmatprep.subr.mxu0 0.0
    %1522 = vmatpush1.msra.mxu0 0.0
    %1523 = vmatprep.subr.mxu0 0.0
    %1524 = vmatpush1.msra.mxu0 %v1486
    %1525 = vmatprep.subr.mxu0 0.0
    %1526 = vmatpush1.msra.mxu0 %v1484
    %1527 = vmatprep.subr.mxu0 0.0
    %1528 = vmatpush2.msra.mxu0 0.0
    %1529 = vmatprep.subr.mxu0 0.0
    %1530 = vmatpush2.msra.mxu0 0.0
    %1531 = vmatprep.subr.mxu0 0.0
    %1532 = vmatpush2.msra.mxu0 0.0
    %1533 = vmatprep.subr.mxu0 0.0
    %1534 = vmatpush2.msra.mxu0 0.0
    %1535 = vmatprep.subr.mxu0 0.0
    %1536 = vmatpush2.msra.mxu0 0.0
    %1537 = vmatprep.subr.mxu0 0.0
    %1538 = vmatpush2.msra.mxu0 0.0
    %1539 = vmatprep.subr.mxu0 0.0
    %1540 = vmatpush2.msra.mxu0 0.0
    %1541 = vmatprep.subr.mxu0 0.0
    %1542 = vmatpush2.msra.mxu0 0.0
    %1543 = vmatprep.subr.mxu0 0.0
    %1544 = vmatpush2.msra.mxu0 0.0
    %1545 = vmatprep.subr.mxu0 0.0
    %1546 = vmatpush2.msra.mxu0 0.0
    %1547 = vmatprep.subr.mxu0 0.0
    %1548 = vmatpush2.msra.mxu0 0.0
    %1549 = vmatprep.subr.mxu0 0.0
    %1550 = vmatpush2.msra.mxu0 0.0
    %1551 = vmatprep.subr.mxu0 0.0
    %1552 = vmatpush2.msra.mxu0 0.0
    %1553 = vmatprep.subr.mxu0 0.0
    %1554 = vmatpush2.msra.mxu0 0.0
    %1555 = vmatprep.subr.mxu0 0.0
    %1556 = vmatpush2.msra.mxu0 0.0
    %1557 = vmatprep.subr.mxu0 0.0
    %1558 = vmatpush2.msra.mxu0 0.0
    %1559 = vmatprep.mubr.f32.mxu0 0.0
    %1560 = vmatmul.mubr.f32.gmra.mxu0 %v1490
    %v1561 = vpop.f32.mrf.mxu0
    %v1562 = vadd.f32 0.0, %v1561
    %v1563 = vpop.f32.mrf.mxu0
    %1564 = vmatprep.mubr.f32.mxu0 0.0
    %1565 = vmatmul.mubr.f32.gmra.mxu0 %v1493
    %v1566 = vpop.f32.mrf.mxu0
    %v1567 = vadd.f32 0.0, %v1566
    %v1568 = vpop.f32.mrf.mxu0
    %1569 = vdwg.mxu0
    %v1570 = vmul.f32 %v1562, %v1481
    %v1571 = vmul.f32 %v1567, %v1482
    %1572 = vrot.lane.b32.xlu0 %v1363, 120
    %v1573 = vpop.permute.xlu0 %1572
    %1574 = vrot.lane.b32.xlu0 %v1368, 120
    %v1575 = vpop.permute.xlu0 %1574
    %1576 = vrot.lane.b32.xlu0 %v209, 120
    %v1577 = vpop.permute.xlu0 %1576
    %1578 = vrot.lane.b32.xlu0 %v214, 120
    %v1579 = vpop.permute.xlu0 %1578
    %v1580 = vsel %vm313, %v1573, 0
    %v1582 = vsel %vm313, %v1575, 0
    %v1584 = vsel %vm313, %v1577, 0
    %v1586 = vsel %vm313, %v1579, 0
    %1588 = vmatprep.subr.mxu0 0.0
    %1589 = vmatpush1.xpose.msra.mxu0 0.0
    %1590 = vmatprep.subr.mxu0 0.0
    %1591 = vmatpush1.xpose.msra.mxu0 0.0
    %1592 = vmatprep.subr.mxu0 0.0
    %1593 = vmatpush1.xpose.msra.mxu0 0.0
    %1594 = vmatprep.subr.mxu0 0.0
    %1595 = vmatpush1.xpose.msra.mxu0 0.0
    %1596 = vmatprep.subr.mxu0 0.0
    %1597 = vmatpush1.xpose.msra.mxu0 0.0
    %1598 = vmatprep.subr.mxu0 0.0
    %1599 = vmatpush1.xpose.msra.mxu0 0.0
    %1600 = vmatprep.subr.mxu0 0.0
    %1601 = vmatpush1.xpose.msra.mxu0 0.0
    %1602 = vmatprep.subr.mxu0 0.0
    %1603 = vmatpush1.xpose.msra.mxu0 0.0
    %1604 = vmatprep.subr.mxu0 0.0
    %1605 = vmatpush1.xpose.msra.mxu0 0.0
    %1606 = vmatprep.subr.mxu0 0.0
    %1607 = vmatpush1.xpose.msra.mxu0 0.0
    %1608 = vmatprep.subr.mxu0 0.0
    %1609 = vmatpush1.xpose.msra.mxu0 0.0
    %1610 = vmatprep.subr.mxu0 0.0
    %1611 = vmatpush1.xpose.msra.mxu0 0.0
    %1612 = vmatprep.subr.mxu0 0.0
    %1613 = vmatpush1.xpose.msra.mxu0 0.0
    %1614 = vmatprep.subr.mxu0 0.0
    %1615 = vmatpush1.xpose.msra.mxu0 0.0
    %1616 = vmatprep.subr.mxu0 0.0
    %1617 = vmatpush1.xpose.msra.mxu0 %v1586
    %1618 = vmatprep.subr.mxu0 0.0
    %1619 = vmatpush1.xpose.msra.mxu0 %v1584
    %1620 = vmatprep.subr.mxu0 0.0
    %1621 = vmatpush2.xpose.msra.mxu0 0.0
    %1622 = vmatprep.subr.mxu0 0.0
    %1623 = vmatpush2.xpose.msra.mxu0 0.0
    %1624 = vmatprep.subr.mxu0 0.0
    %1625 = vmatpush2.xpose.msra.mxu0 0.0
    %1626 = vmatprep.subr.mxu0 0.0
    %1627 = vmatpush2.xpose.msra.mxu0 0.0
    %1628 = vmatprep.subr.mxu0 0.0
    %1629 = vmatpush2.xpose.msra.mxu0 0.0
    %1630 = vmatprep.subr.mxu0 0.0
    %1631 = vmatpush2.xpose.msra.mxu0 0.0
    %1632 = vmatprep.subr.mxu0 0.0
    %1633 = vmatpush2.xpose.msra.mxu0 0.0
    %1634 = vmatprep.subr.mxu0 0.0
    %1635 = vmatpush2.xpose.msra.mxu0 0.0
    %1636 = vmatprep.subr.mxu0 0.0
    %1637 = vmatpush2.xpose.msra.mxu0 0.0
    %1638 = vmatprep.subr.mxu0 0.0
    %1639 = vmatpush2.xpose.msra.mxu0 0.0
    %1640 = vmatprep.subr.mxu0 0.0
    %1641 = vmatpush2.xpose.msra.mxu0 0.0
    %1642 = vmatprep.subr.mxu0 0.0
    %1643 = vmatpush2.xpose.msra.mxu0 0.0
    %1644 = vmatprep.subr.mxu0 0.0
    %1645 = vmatpush2.xpose.msra.mxu0 0.0
    %1646 = vmatprep.subr.mxu0 0.0
    %1647 = vmatpush2.xpose.msra.mxu0 0.0
    %1648 = vmatprep.subr.mxu0 0.0
    %1649 = vmatpush2.xpose.msra.mxu0 0.0
    %1650 = vmatprep.subr.mxu0 0.0
    %1651 = vmatpush2.xpose.msra.mxu0 0.0
    %1652 = vmatprep.mubr.f32.mxu0 0.0
    %1653 = vmatmul.mubr.f32.gmra.mxu0 %v1580
    %v1654 = vpop.f32.mrf.mxu0
    %v1655 = vadd.f32 %v121, %v1654
    %v1656 = vpop.f32.mrf.mxu0
    %1657 = vmatprep.mubr.f32.mxu0 0.0
    %1658 = vmatmul.mubr.f32.gmra.mxu0 %v1582
    %v1659 = vpop.f32.mrf.mxu0
    %v1660 = vadd.f32 %v122, %v1659
    %v1661 = vpop.f32.mrf.mxu0
    %1662 = vdwg.mxu0
    %v1663 = vsel %vm397, %v1655, -inf
    %1664 = vmax.xlane.f32.xlu0 %v1663
    %v1665 = vpop.xlane.xlu0 %1664
    %v1666 = vsel %vm397, %v1660, -inf
    %1667 = vmax.xlane.f32.xlu0 %v1666
    %v1668 = vpop.xlane.xlu0 %1667
    %v1669 = vsub.f32 %v1655, %v1665
    %v1670 = vsub.f32 %v1660, %v1668
    %v1671 = vmul.f32 %v1669, 1.442695
    %v1672 = vpow.pop %v1671
    %v1673 = vmul.f32 %v1670, 1.442695
    %v1674 = vpow.pop %v1673
    %v1675 = vsel %vm397, %v1672, 0.0
    %1676 = vadd.xlane.f32.xlu0 %v1675
    %v1677 = vpop.xlane.xlu0 %1676
    %v1678 = vsel %vm397, %v1674, 0.0
    %1679 = vadd.xlane.f32.xlu0 %v1678
    %v1680 = vpop.xlane.xlu0 %1679
    %v1681 = vrcp.pop %v1677
    %v1682 = vrcp.pop %v1680
    %1683 = vrot.lane.b32.xlu0 %v209, 88
    %v1684 = vpop.permute.xlu0 %1683
    %1685 = vrot.lane.b32.xlu0 %v214, 88
    %v1686 = vpop.permute.xlu0 %1685
    %v1690 = vsel %vm397, %v1672, 0
    %v1693 = vsel %vm397, %v1674, 0
    %1695 = vmatprep.subr.mxu0 0.0
    %1696 = vmatpush1.msra.mxu0 0.0
    %1697 = vmatprep.subr.mxu0 0.0
    %1698 = vmatpush1.msra.mxu0 0.0
    %1699 = vmatprep.subr.mxu0 0.0
    %1700 = vmatpush1.msra.mxu0 0.0
    %1701 = vmatprep.subr.mxu0 0.0
    %1702 = vmatpush1.msra.mxu0 0.0
    %1703 = vmatprep.subr.mxu0 0.0
    %1704 = vmatpush1.msra.mxu0 0.0
    %1705 = vmatprep.subr.mxu0 0.0
    %1706 = vmatpush1.msra.mxu0 0.0
    %1707 = vmatprep.subr.mxu0 0.0
    %1708 = vmatpush1.msra.mxu0 0.0
    %1709 = vmatprep.subr.mxu0 0.0
    %1710 = vmatpush1.msra.mxu0 0.0
    %1711 = vmatprep.subr.mxu0 0.0
    %1712 = vmatpush1.msra.mxu0 0.0
    %1713 = vmatprep.subr.mxu0 0.0
    %1714 = vmatpush1.msra.mxu0 0.0
    %1715 = vmatprep.subr.mxu0 0.0
    %1716 = vmatpush1.msra.mxu0 0.0
    %1717 = vmatprep.subr.mxu0 0.0
    %1718 = vmatpush1.msra.mxu0 0.0
    %1719 = vmatprep.subr.mxu0 0.0
    %1720 = vmatpush1.msra.mxu0 0.0
    %1721 = vmatprep.subr.mxu0 0.0
    %1722 = vmatpush1.msra.mxu0 0.0
    %1723 = vmatprep.subr.mxu0 0.0
    %1724 = vmatpush1.msra.mxu0 %v1686
    %1725 = vmatprep.subr.mxu0 0.0
    %1726 = vmatpush1.msra.mxu0 %v1684
    %1727 = vmatprep.subr.mxu0 0.0
    %1728 = vmatpush2.msra.mxu0 0.0
    %1729 = vmatprep.subr.mxu0 0.0
    %1730 = vmatpush2.msra.mxu0 0.0
    %1731 = vmatprep.subr.mxu0 0.0
    %1732 = vmatpush2.msra.mxu0 0.0
    %1733 = vmatprep.subr.mxu0 0.0
    %1734 = vmatpush2.msra.mxu0 0.0
    %1735 = vmatprep.subr.mxu0 0.0
    %1736 = vmatpush2.msra.mxu0 0.0
    %1737 = vmatprep.subr.mxu0 0.0
    %1738 = vmatpush2.msra.mxu0 0.0
    %1739 = vmatprep.subr.mxu0 0.0
    %1740 = vmatpush2.msra.mxu0 0.0
    %1741 = vmatprep.subr.mxu0 0.0
    %1742 = vmatpush2.msra.mxu0 0.0
    %1743 = vmatprep.subr.mxu0 0.0
    %1744 = vmatpush2.msra.mxu0 0.0
    %1745 = vmatprep.subr.mxu0 0.0
    %1746 = vmatpush2.msra.mxu0 0.0
    %1747 = vmatprep.subr.mxu0 0.0
    %1748 = vmatpush2.msra.mxu0 0.0
    %1749 = vmatprep.subr.mxu0 0.0
    %1750 = vmatpush2.msra.mxu0 0.0
    %1751 = vmatprep.subr.mxu0 0.0
    %1752 = vmatpush2.msra.mxu0 0.0
    %1753 = vmatprep.subr.mxu0 0.0
    %1754 = vmatpush2.msra.mxu0 0.0
    %1755 = vmatprep.subr.mxu0 0.0
    %1756 = vmatpush2.msra.mxu0 0.0
    %1757 = vmatprep.subr.mxu0 0.0
    %1758 = vmatpush2.msra.mxu0 0.0
    %1759 = vmatprep.mubr.f32.mxu0 0.0
    %1760 = vmatmul.mubr.f32.gmra.mxu0 %v1690
    %v1761 = vpop.f32.mrf.mxu0
    %v1762 = vadd.f32 0.0, %v1761
    %v1763 = vpop.f32.mrf.mxu0
    %1764 = vmatprep.mubr.f32.mxu0 0.0
    %1765 = vmatmul.mubr.f32.gmra.mxu0 %v1693
    %v1766 = vpop.f32.mrf.mxu0
    %v1767 = vadd.f32 0.0, %v1766
    %v1768 = vpop.f32.mrf.mxu0
    %1769 = vdwg.mxu0
    %v1770 = vmul.f32 %v1762, %v1681
    %v1771 = vmul.f32 %v1767, %v1682
    %1772 = vrot.lane.b32.xlu0 %v1363, 112
    %v1773 = vpop.permute.xlu0 %1772
    %1774 = vrot.lane.b32.xlu0 %v1368, 112
    %v1775 = vpop.permute.xlu0 %1774
    %1776 = vrot.lane.b32.xlu0 %v209, 112
    %v1777 = vpop.permute.xlu0 %1776
    %1778 = vrot.lane.b32.xlu0 %v214, 112
    %v1779 = vpop.permute.xlu0 %1778
    %v1780 = vsel %vm313, %v1773, 0
    %v1782 = vsel %vm313, %v1775, 0
    %v1784 = vsel %vm313, %v1777, 0
    %v1786 = vsel %vm313, %v1779, 0
    %1788 = vmatprep.subr.mxu0 0.0
    %1789 = vmatpush1.xpose.msra.mxu0 0.0
    %1790 = vmatprep.subr.mxu0 0.0
    %1791 = vmatpush1.xpose.msra.mxu0 0.0
    %1792 = vmatprep.subr.mxu0 0.0
    %1793 = vmatpush1.xpose.msra.mxu0 0.0
    %1794 = vmatprep.subr.mxu0 0.0
    %1795 = vmatpush1.xpose.msra.mxu0 0.0
    %1796 = vmatprep.subr.mxu0 0.0
    %1797 = vmatpush1.xpose.msra.mxu0 0.0
    %1798 = vmatprep.subr.mxu0 0.0
    %1799 = vmatpush1.xpose.msra.mxu0 0.0
    %1800 = vmatprep.subr.mxu0 0.0
    %1801 = vmatpush1.xpose.msra.mxu0 0.0
    %1802 = vmatprep.subr.mxu0 0.0
    %1803 = vmatpush1.xpose.msra.mxu0 0.0
    %1804 = vmatprep.subr.mxu0 0.0
    %1805 = vmatpush1.xpose.msra.mxu0 0.0
    %1806 = vmatprep.subr.mxu0 0.0
    %1807 = vmatpush1.xpose.msra.mxu0 0.0
    %1808 = vmatprep.subr.mxu0 0.0
    %1809 = vmatpush1.xpose.msra.mxu0 0.0
    %1810 = vmatprep.subr.mxu0 0.0
    %1811 = vmatpush1.xpose.msra.mxu0 0.0
    %1812 = vmatprep.subr.mxu0 0.0
    %1813 = vmatpush1.xpose.msra.mxu0 0.0
    %1814 = vmatprep.subr.mxu0 0.0
    %1815 = vmatpush1.xpose.msra.mxu0 0.0
    %1816 = vmatprep.subr.mxu0 0.0
    %1817 = vmatpush1.xpose.msra.mxu0 %v1786
    %1818 = vmatprep.subr.mxu0 0.0
    %1819 = vmatpush1.xpose.msra.mxu0 %v1784
    %1820 = vmatprep.subr.mxu0 0.0
    %1821 = vmatpush2.xpose.msra.mxu0 0.0
    %1822 = vmatprep.subr.mxu0 0.0
    %1823 = vmatpush2.xpose.msra.mxu0 0.0
    %1824 = vmatprep.subr.mxu0 0.0
    %1825 = vmatpush2.xpose.msra.mxu0 0.0
    %1826 = vmatprep.subr.mxu0 0.0
    %1827 = vmatpush2.xpose.msra.mxu0 0.0
    %1828 = vmatprep.subr.mxu0 0.0
    %1829 = vmatpush2.xpose.msra.mxu0 0.0
    %1830 = vmatprep.subr.mxu0 0.0
    %1831 = vmatpush2.xpose.msra.mxu0 0.0
    %1832 = vmatprep.subr.mxu0 0.0
    %1833 = vmatpush2.xpose.msra.mxu0 0.0
    %1834 = vmatprep.subr.mxu0 0.0
    %1835 = vmatpush2.xpose.msra.mxu0 0.0
    %1836 = vmatprep.subr.mxu0 0.0
    %1837 = vmatpush2.xpose.msra.mxu0 0.0
    %1838 = vmatprep.subr.mxu0 0.0
    %1839 = vmatpush2.xpose.msra.mxu0 0.0
    %1840 = vmatprep.subr.mxu0 0.0
    %1841 = vmatpush2.xpose.msra.mxu0 0.0
    %1842 = vmatprep.subr.mxu0 0.0
    %1843 = vmatpush2.xpose.msra.mxu0 0.0
    %1844 = vmatprep.subr.mxu0 0.0
    %1845 = vmatpush2.xpose.msra.mxu0 0.0
    %1846 = vmatprep.subr.mxu0 0.0
    %1847 = vmatpush2.xpose.msra.mxu0 0.0
    %1848 = vmatprep.subr.mxu0 0.0
    %1849 = vmatpush2.xpose.msra.mxu0 0.0
    %1850 = vmatprep.subr.mxu0 0.0
    %1851 = vmatpush2.xpose.msra.mxu0 0.0
    %1852 = vmatprep.mubr.f32.mxu0 0.0
    %1853 = vmatmul.mubr.f32.gmra.mxu0 %v1780
    %v1854 = vpop.f32.mrf.mxu0
    %v1855 = vadd.f32 %v121, %v1854
    %v1856 = vpop.f32.mrf.mxu0
    %1857 = vmatprep.mubr.f32.mxu0 0.0
    %1858 = vmatmul.mubr.f32.gmra.mxu0 %v1782
    %v1859 = vpop.f32.mrf.mxu0
    %v1860 = vadd.f32 %v122, %v1859
    %v1861 = vpop.f32.mrf.mxu0
    %1862 = vdwg.mxu0
    %v1863 = vsel %vm397, %v1855, -inf
    %1864 = vmax.xlane.f32.xlu0 %v1863
    %v1865 = vpop.xlane.xlu0 %1864
    %v1866 = vsel %vm397, %v1860, -inf
    %1867 = vmax.xlane.f32.xlu0 %v1866
    %v1868 = vpop.xlane.xlu0 %1867
    %v1869 = vsub.f32 %v1855, %v1865
    %v1870 = vsub.f32 %v1860, %v1868
    %v1871 = vmul.f32 %v1869, 1.442695
    %v1872 = vpow.pop %v1871
    %v1873 = vmul.f32 %v1870, 1.442695
    %v1874 = vpow.pop %v1873
    %v1875 = vsel %vm397, %v1872, 0.0
    %1876 = vadd.xlane.f32.xlu0 %v1875
    %v1877 = vpop.xlane.xlu0 %1876
    %v1878 = vsel %vm397, %v1874, 0.0
    %1879 = vadd.xlane.f32.xlu0 %v1878
    %v1880 = vpop.xlane.xlu0 %1879
    %v1881 = vrcp.pop %v1877
    %v1882 = vrcp.pop %v1880
    %1883 = vrot.lane.b32.xlu0 %v209, 80
    %v1884 = vpop.permute.xlu0 %1883
    %1885 = vrot.lane.b32.xlu0 %v214, 80
    %v1886 = vpop.permute.xlu0 %1885
    %v1890 = vsel %vm397, %v1872, 0
    %v1893 = vsel %vm397, %v1874, 0
    %1895 = vmatprep.subr.mxu0 0.0
    %1896 = vmatpush1.msra.mxu0 0.0
    %1897 = vmatprep.subr.mxu0 0.0
    %1898 = vmatpush1.msra.mxu0 0.0
    %1899 = vmatprep.subr.mxu0 0.0
    %1900 = vmatpush1.msra.mxu0 0.0
    %1901 = vmatprep.subr.mxu0 0.0
    %1902 = vmatpush1.msra.mxu0 0.0
    %1903 = vmatprep.subr.mxu0 0.0
    %1904 = vmatpush1.msra.mxu0 0.0
    %1905 = vmatprep.subr.mxu0 0.0
    %1906 = vmatpush1.msra.mxu0 0.0
    %1907 = vmatprep.subr.mxu0 0.0
    %1908 = vmatpush1.msra.mxu0 0.0
    %1909 = vmatprep.subr.mxu0 0.0
    %1910 = vmatpush1.msra.mxu0 0.0
    %1911 = vmatprep.subr.mxu0 0.0
    %1912 = vmatpush1.msra.mxu0 0.0
    %1913 = vmatprep.subr.mxu0 0.0
    %1914 = vmatpush1.msra.mxu0 0.0
    %1915 = vmatprep.subr.mxu0 0.0
    %1916 = vmatpush1.msra.mxu0 0.0
    %1917 = vmatprep.subr.mxu0 0.0
    %1918 = vmatpush1.msra.mxu0 0.0
    %1919 = vmatprep.subr.mxu0 0.0
    %1920 = vmatpush1.msra.mxu0 0.0
    %1921 = vmatprep.subr.mxu0 0.0
    %1922 = vmatpush1.msra.mxu0 0.0
    %1923 = vmatprep.subr.mxu0 0.0
    %1924 = vmatpush1.msra.mxu0 %v1886
    %1925 = vmatprep.subr.mxu0 0.0
    %1926 = vmatpush1.msra.mxu0 %v1884
    %1927 = vmatprep.subr.mxu0 0.0
    %1928 = vmatpush2.msra.mxu0 0.0
    %1929 = vmatprep.subr.mxu0 0.0
    %1930 = vmatpush2.msra.mxu0 0.0
    %1931 = vmatprep.subr.mxu0 0.0
    %1932 = vmatpush2.msra.mxu0 0.0
    %1933 = vmatprep.subr.mxu0 0.0
    %1934 = vmatpush2.msra.mxu0 0.0
    %1935 = vmatprep.subr.mxu0 0.0
    %1936 = vmatpush2.msra.mxu0 0.0
    %1937 = vmatprep.subr.mxu0 0.0
    %1938 = vmatpush2.msra.mxu0 0.0
    %1939 = vmatprep.subr.mxu0 0.0
    %1940 = vmatpush2.msra.mxu0 0.0
    %1941 = vmatprep.subr.mxu0 0.0
    %1942 = vmatpush2.msra.mxu0 0.0
    %1943 = vmatprep.subr.mxu0 0.0
    %1944 = vmatpush2.msra.mxu0 0.0
    %1945 = vmatprep.subr.mxu0 0.0
    %1946 = vmatpush2.msra.mxu0 0.0
    %1947 = vmatprep.subr.mxu0 0.0
    %1948 = vmatpush2.msra.mxu0 0.0
    %1949 = vmatprep.subr.mxu0 0.0
    %1950 = vmatpush2.msra.mxu0 0.0
    %1951 = vmatprep.subr.mxu0 0.0
    %1952 = vmatpush2.msra.mxu0 0.0
    %1953 = vmatprep.subr.mxu0 0.0
    %1954 = vmatpush2.msra.mxu0 0.0
    %1955 = vmatprep.subr.mxu0 0.0
    %1956 = vmatpush2.msra.mxu0 0.0
    %1957 = vmatprep.subr.mxu0 0.0
    %1958 = vmatpush2.msra.mxu0 0.0
    %1959 = vmatprep.mubr.f32.mxu0 0.0
    %1960 = vmatmul.mubr.f32.gmra.mxu0 %v1890
    %v1961 = vpop.f32.mrf.mxu0
    %v1962 = vadd.f32 0.0, %v1961
    %v1963 = vpop.f32.mrf.mxu0
    %1964 = vmatprep.mubr.f32.mxu0 0.0
    %1965 = vmatmul.mubr.f32.gmra.mxu0 %v1893
    %v1966 = vpop.f32.mrf.mxu0
    %v1967 = vadd.f32 0.0, %v1966
    %v1968 = vpop.f32.mrf.mxu0
    %1969 = vdwg.mxu0
    %v1970 = vmul.f32 %v1962, %v1881
    %v1971 = vmul.f32 %v1967, %v1882
    %1972 = vrot.lane.b32.xlu0 %v1363, 104
    %v1973 = vpop.permute.xlu0 %1972
    %1974 = vrot.lane.b32.xlu0 %v1368, 104
    %v1975 = vpop.permute.xlu0 %1974
    %1976 = vrot.lane.b32.xlu0 %v209, 104
    %v1977 = vpop.permute.xlu0 %1976
    %1978 = vrot.lane.b32.xlu0 %v214, 104
    %v1979 = vpop.permute.xlu0 %1978
    %v1980 = vsel %vm313, %v1973, 0
    %v1982 = vsel %vm313, %v1975, 0
    %v1984 = vsel %vm313, %v1977, 0
    %v1986 = vsel %vm313, %v1979, 0
    %1988 = vmatprep.subr.mxu0 0.0
    %1989 = vmatpush1.xpose.msra.mxu0 0.0
    %1990 = vmatprep.subr.mxu0 0.0
    %1991 = vmatpush1.xpose.msra.mxu0 0.0
    %1992 = vmatprep.subr.mxu0 0.0
    %1993 = vmatpush1.xpose.msra.mxu0 0.0
    %1994 = vmatprep.subr.mxu0 0.0
    %1995 = vmatpush1.xpose.msra.mxu0 0.0
    %1996 = vmatprep.subr.mxu0 0.0
    %1997 = vmatpush1.xpose.msra.mxu0 0.0
    %1998 = vmatprep.subr.mxu0 0.0
    %1999 = vmatpush1.xpose.msra.mxu0 0.0
    %2000 = vmatprep.subr.mxu0 0.0
    %2001 = vmatpush1.xpose.msra.mxu0 0.0
    %2002 = vmatprep.subr.mxu0 0.0
    %2003 = vmatpush1.xpose.msra.mxu0 0.0
    %2004 = vmatprep.subr.mxu0 0.0
    %2005 = vmatpush1.xpose.msra.mxu0 0.0
    %2006 = vmatprep.subr.mxu0 0.0
    %2007 = vmatpush1.xpose.msra.mxu0 0.0
    %2008 = vmatprep.subr.mxu0 0.0
    %2009 = vmatpush1.xpose.msra.mxu0 0.0
    %2010 = vmatprep.subr.mxu0 0.0
    %2011 = vmatpush1.xpose.msra.mxu0 0.0
    %2012 = vmatprep.subr.mxu0 0.0
    %2013 = vmatpush1.xpose.msra.mxu0 0.0
    %2014 = vmatprep.subr.mxu0 0.0
    %2015 = vmatpush1.xpose.msra.mxu0 0.0
    %2016 = vmatprep.subr.mxu0 0.0
    %2017 = vmatpush1.xpose.msra.mxu0 %v1986
    %2018 = vmatprep.subr.mxu0 0.0
    %2019 = vmatpush1.xpose.msra.mxu0 %v1984
    %2020 = vmatprep.subr.mxu0 0.0
    %2021 = vmatpush2.xpose.msra.mxu0 0.0
    %2022 = vmatprep.subr.mxu0 0.0
    %2023 = vmatpush2.xpose.msra.mxu0 0.0
    %2024 = vmatprep.subr.mxu0 0.0
    %2025 = vmatpush2.xpose.msra.mxu0 0.0
    %2026 = vmatprep.subr.mxu0 0.0
    %2027 = vmatpush2.xpose.msra.mxu0 0.0
    %2028 = vmatprep.subr.mxu0 0.0
    %2029 = vmatpush2.xpose.msra.mxu0 0.0
    %2030 = vmatprep.subr.mxu0 0.0
    %2031 = vmatpush2.xpose.msra.mxu0 0.0
    %2032 = vmatprep.subr.mxu0 0.0
    %2033 = vmatpush2.xpose.msra.mxu0 0.0
    %2034 = vmatprep.subr.mxu0 0.0
    %2035 = vmatpush2.xpose.msra.mxu0 0.0
    %2036 = vmatprep.subr.mxu0 0.0
    %2037 = vmatpush2.xpose.msra.mxu0 0.0
    %2038 = vmatprep.subr.mxu0 0.0
    %2039 = vmatpush2.xpose.msra.mxu0 0.0
    %2040 = vmatprep.subr.mxu0 0.0
    %2041 = vmatpush2.xpose.msra.mxu0 0.0
    %2042 = vmatprep.subr.mxu0 0.0
    %2043 = vmatpush2.xpose.msra.mxu0 0.0
    %2044 = vmatprep.subr.mxu0 0.0
    %2045 = vmatpush2.xpose.msra.mxu0 0.0
    %2046 = vmatprep.subr.mxu0 0.0
    %2047 = vmatpush2.xpose.msra.mxu0 0.0
    %2048 = vmatprep.subr.mxu0 0.0
    %2049 = vmatpush2.xpose.msra.mxu0 0.0
    %2050 = vmatprep.subr.mxu0 0.0
    %2051 = vmatpush2.xpose.msra.mxu0 0.0
    %2052 = vmatprep.mubr.f32.mxu0 0.0
    %2053 = vmatmul.mubr.f32.gmra.mxu0 %v1980
    %v2054 = vpop.f32.mrf.mxu0
    %v2055 = vadd.f32 %v121, %v2054
    %v2056 = vpop.f32.mrf.mxu0
    %2057 = vmatprep.mubr.f32.mxu0 0.0
    %2058 = vmatmul.mubr.f32.gmra.mxu0 %v1982
    %v2059 = vpop.f32.mrf.mxu0
    %v2060 = vadd.f32 %v122, %v2059
    %v2061 = vpop.f32.mrf.mxu0
    %2062 = vdwg.mxu0
    %v2063 = vsel %vm397, %v2055, -inf
    %2064 = vmax.xlane.f32.xlu0 %v2063
    %v2065 = vpop.xlane.xlu0 %2064
    %v2066 = vsel %vm397, %v2060, -inf
    %2067 = vmax.xlane.f32.xlu0 %v2066
    %v2068 = vpop.xlane.xlu0 %2067
    %v2069 = vsub.f32 %v2055, %v2065
    %v2070 = vsub.f32 %v2060, %v2068
    %v2071 = vmul.f32 %v2069, 1.442695
    %v2072 = vpow.pop %v2071
    %v2073 = vmul.f32 %v2070, 1.442695
    %v2074 = vpow.pop %v2073
    %v2075 = vsel %vm397, %v2072, 0.0
    %2076 = vadd.xlane.f32.xlu0 %v2075
    %v2077 = vpop.xlane.xlu0 %2076
    %v2078 = vsel %vm397, %v2074, 0.0
    %2079 = vadd.xlane.f32.xlu0 %v2078
    %v2080 = vpop.xlane.xlu0 %2079
    %v2081 = vrcp.pop %v2077
    %v2082 = vrcp.pop %v2080
    %2083 = vrot.lane.b32.xlu0 %v209, 72
    %v2084 = vpop.permute.xlu0 %2083
    %2085 = vrot.lane.b32.xlu0 %v214, 72
    %v2086 = vpop.permute.xlu0 %2085
    %v2090 = vsel %vm397, %v2072, 0
    %v2093 = vsel %vm397, %v2074, 0
    %2095 = vmatprep.subr.mxu0 0.0
    %2096 = vmatpush1.msra.mxu0 0.0
    %2097 = vmatprep.subr.mxu0 0.0
    %2098 = vmatpush1.msra.mxu0 0.0
    %2099 = vmatprep.subr.mxu0 0.0
    %2100 = vmatpush1.msra.mxu0 0.0
    %2101 = vmatprep.subr.mxu0 0.0
    %2102 = vmatpush1.msra.mxu0 0.0
    %2103 = vmatprep.subr.mxu0 0.0
    %2104 = vmatpush1.msra.mxu0 0.0
    %2105 = vmatprep.subr.mxu0 0.0
    %2106 = vmatpush1.msra.mxu0 0.0
    %2107 = vmatprep.subr.mxu0 0.0
    %2108 = vmatpush1.msra.mxu0 0.0
    %2109 = vmatprep.subr.mxu0 0.0
    %2110 = vmatpush1.msra.mxu0 0.0
    %2111 = vmatprep.subr.mxu0 0.0
    %2112 = vmatpush1.msra.mxu0 0.0
    %2113 = vmatprep.subr.mxu0 0.0
    %2114 = vmatpush1.msra.mxu0 0.0
    %2115 = vmatprep.subr.mxu0 0.0
    %2116 = vmatpush1.msra.mxu0 0.0
    %2117 = vmatprep.subr.mxu0 0.0
    %2118 = vmatpush1.msra.mxu0 0.0
    %2119 = vmatprep.subr.mxu0 0.0
    %2120 = vmatpush1.msra.mxu0 0.0
    %2121 = vmatprep.subr.mxu0 0.0
    %2122 = vmatpush1.msra.mxu0 0.0
    %2123 = vmatprep.subr.mxu0 0.0
    %2124 = vmatpush1.msra.mxu0 %v2086
    %2125 = vmatprep.subr.mxu0 0.0
    %2126 = vmatpush1.msra.mxu0 %v2084
    %2127 = vmatprep.subr.mxu0 0.0
    %2128 = vmatpush2.msra.mxu0 0.0
    %2129 = vmatprep.subr.mxu0 0.0
    %2130 = vmatpush2.msra.mxu0 0.0
    %2131 = vmatprep.subr.mxu0 0.0
    %2132 = vmatpush2.msra.mxu0 0.0
    %2133 = vmatprep.subr.mxu0 0.0
    %2134 = vmatpush2.msra.mxu0 0.0
    %2135 = vmatprep.subr.mxu0 0.0
    %2136 = vmatpush2.msra.mxu0 0.0
    %2137 = vmatprep.subr.mxu0 0.0
    %2138 = vmatpush2.msra.mxu0 0.0
    %2139 = vmatprep.subr.mxu0 0.0
    %2140 = vmatpush2.msra.mxu0 0.0
    %2141 = vmatprep.subr.mxu0 0.0
    %2142 = vmatpush2.msra.mxu0 0.0
    %2143 = vmatprep.subr.mxu0 0.0
    %2144 = vmatpush2.msra.mxu0 0.0
    %2145 = vmatprep.subr.mxu0 0.0
    %2146 = vmatpush2.msra.mxu0 0.0
    %2147 = vmatprep.subr.mxu0 0.0
    %2148 = vmatpush2.msra.mxu0 0.0
    %2149 = vmatprep.subr.mxu0 0.0
    %2150 = vmatpush2.msra.mxu0 0.0
    %2151 = vmatprep.subr.mxu0 0.0
    %2152 = vmatpush2.msra.mxu0 0.0
    %2153 = vmatprep.subr.mxu0 0.0
    %2154 = vmatpush2.msra.mxu0 0.0
    %2155 = vmatprep.subr.mxu0 0.0
    %2156 = vmatpush2.msra.mxu0 0.0
    %2157 = vmatprep.subr.mxu0 0.0
    %2158 = vmatpush2.msra.mxu0 0.0
    %2159 = vmatprep.mubr.f32.mxu0 0.0
    %2160 = vmatmul.mubr.f32.gmra.mxu0 %v2090
    %v2161 = vpop.f32.mrf.mxu0
    %v2162 = vadd.f32 0.0, %v2161
    %v2163 = vpop.f32.mrf.mxu0
    %2164 = vmatprep.mubr.f32.mxu0 0.0
    %2165 = vmatmul.mubr.f32.gmra.mxu0 %v2093
    %v2166 = vpop.f32.mrf.mxu0
    %v2167 = vadd.f32 0.0, %v2166
    %v2168 = vpop.f32.mrf.mxu0
    %2169 = vdwg.mxu0
    %v2170 = vmul.f32 %v2162, %v2081
    %v2171 = vmul.f32 %v2167, %v2082
    %2174 = vrot.lane.b32.xlu0 %v1770, 8
    %v2175 = vpop.permute.xlu0 %2174
    %2176 = vrot.lane.b32.xlu0 %v1771, 8
    %v2177 = vpop.permute.xlu0 %2176
    %2182 = vrot.lane.b32.xlu0 %v1970, 16
    %v2183 = vpop.permute.xlu0 %2182
    %2184 = vrot.lane.b32.xlu0 %v1971, 16
    %v2185 = vpop.permute.xlu0 %2184
    %2190 = vrot.lane.b32.xlu0 %v2170, 24
    %v2191 = vpop.permute.xlu0 %2190
    %2192 = vrot.lane.b32.xlu0 %v2171, 24
    %v2193 = vpop.permute.xlu0 %2192
    %v2196 = vsel %vm313, %v1570, %v2175
    %v2197 = vsel %vm313, %v1571, %v2177
    %v2198 = vsel %vm397, %v2196, %v2183
    %v2199 = vsel %vm397, %v2197, %v2185
    %v2200 = vsel %vm1135, %v2198, %v2191
    %v2201 = vsel %vm1135, %v2199, %v2193
    %v2203 = vsel %vm135, %v2200, 0
    %v2206 = vsel %vm135, %v2201, 0
    %2208 = vmatprep.subr.mxu0 0.0
    %2209 = vmatpush1.msra.mxu0 0.0
    %2210 = vmatprep.subr.mxu0 0.0
    %2211 = vmatpush1.msra.mxu0 0.0
    %2212 = vmatprep.subr.mxu0 0.0
    %2213 = vmatpush1.msra.mxu0 0.0
    %2214 = vmatprep.subr.mxu0 0.0
    %2215 = vmatpush1.msra.mxu0 0.0
    %2216 = vmatprep.subr.mxu0 0.0
    %2217 = vmatpush1.msra.mxu0 0.0
    %2218 = vmatprep.subr.mxu0 0.0
    %2219 = vmatpush1.msra.mxu0 0.0
    %2220 = vmatprep.subr.mxu0 0.0
    %2221 = vmatpush1.msra.mxu0 0.0
    %2222 = vmatprep.subr.mxu0 0.0
    %2223 = vmatpush1.msra.mxu0 0.0
    %2224 = vmatprep.subr.mxu0 0.0
    %2225 = vmatpush1.msra.mxu0 0.0
    %2226 = vmatprep.subr.mxu0 0.0
    %2227 = vmatpush1.msra.mxu0 0.0
    %2228 = vmatprep.subr.mxu0 0.0
    %2229 = vmatpush1.msra.mxu0 0.0
    %2230 = vmatprep.subr.mxu0 0.0
    %2231 = vmatpush1.msra.mxu0 0.0
    %2232 = vmatprep.subr.mxu0 0.0
    %2233 = vmatpush1.msra.mxu0 %v1375
    %2234 = vmatprep.subr.mxu0 0.0
    %2235 = vmatpush1.msra.mxu0 %v1374
    %2236 = vmatprep.subr.mxu0 0.0
    %2237 = vmatpush1.msra.mxu0 %v1373
    %2238 = vmatprep.subr.mxu0 0.0
    %2239 = vmatpush1.msra.mxu0 %v1372
    %2240 = vmatprep.subr.mxu0 0.0
    %2241 = vmatpush2.msra.mxu0 0.0
    %2242 = vmatprep.subr.mxu0 0.0
    %2243 = vmatpush2.msra.mxu0 0.0
    %2244 = vmatprep.subr.mxu0 0.0
    %2245 = vmatpush2.msra.mxu0 0.0
    %2246 = vmatprep.subr.mxu0 0.0
    %2247 = vmatpush2.msra.mxu0 0.0
    %2248 = vmatprep.subr.mxu0 0.0
    %2249 = vmatpush2.msra.mxu0 0.0
    %2250 = vmatprep.subr.mxu0 0.0
    %2251 = vmatpush2.msra.mxu0 0.0
    %2252 = vmatprep.subr.mxu0 0.0
    %2253 = vmatpush2.msra.mxu0 0.0
    %2254 = vmatprep.subr.mxu0 0.0
    %2255 = vmatpush2.msra.mxu0 0.0
    %2256 = vmatprep.subr.mxu0 0.0
    %2257 = vmatpush2.msra.mxu0 0.0
    %2258 = vmatprep.subr.mxu0 0.0
    %2259 = vmatpush2.msra.mxu0 0.0
    %2260 = vmatprep.subr.mxu0 0.0
    %2261 = vmatpush2.msra.mxu0 0.0
    %2262 = vmatprep.subr.mxu0 0.0
    %2263 = vmatpush2.msra.mxu0 0.0
    %2264 = vmatprep.subr.mxu0 0.0
    %2265 = vmatpush2.msra.mxu0 0.0
    %2266 = vmatprep.subr.mxu0 0.0
    %2267 = vmatpush2.msra.mxu0 0.0
    %2268 = vmatprep.subr.mxu0 0.0
    %2269 = vmatpush2.msra.mxu0 0.0
    %2270 = vmatprep.subr.mxu0 0.0
    %2271 = vmatpush2.msra.mxu0 0.0
    %2272 = vmatprep.mubr.f32.mxu0 0.0
    %2273 = vmatmul.mubr.f32.gmra.mxu0 %v2203
    %v2274 = vpop.f32.mrf.mxu0
    %v2275 = vadd.f32 0.0, %v2274
    %v2276 = vpop.f32.mrf.mxu0
    %2277 = vmatprep.mubr.f32.mxu0 0.0
    %2278 = vmatmul.mubr.f32.gmra.mxu0 %v2206
    %v2279 = vpop.f32.mrf.mxu0
    %v2280 = vadd.f32 0.0, %v2279
    %v2281 = vpop.f32.mrf.mxu0
    %2282 = vdwg.mxu0
    %v2283 = vadd.f32 %v1284, %v2275
    %v2284 = vadd.f32 %v1285, %v2280
    %s2285 = scalar_lea.vmem %s9, 16
    %v2286 = vld [vmem:[%s2285] sm:$0xff]
    %s2287 = scalar_lea.vmem %s9, 24
    %v2288 = vld [vmem:[%s2287] sm:$0xff]
    %v2289 = vmul.f32 %v2283, %v2283
    %v2290 = vmul.f32 %v2284, %v2284
    %v2291 = vsel %vm135, %v2283, 0.0
    %2292 = vadd.xlane.f32.xlu0 %v2291
    %v2293 = vpop.xlane.xlu0 %2292
    %v2294 = vsel %vm135, %v2284, 0.0
    %2295 = vadd.xlane.f32.xlu0 %v2294
    %v2296 = vpop.xlane.xlu0 %2295
    %v2297 = vsel %vm135, %v2289, 0.0
    %2298 = vadd.xlane.f32.xlu0 %v2297
    %v2299 = vpop.xlane.xlu0 %2298
    %v2300 = vsel %vm135, %v2290, 0.0
    %2301 = vadd.xlane.f32.xlu0 %v2300
    %v2302 = vpop.xlane.xlu0 %2301
    %v2303 = vrot.slane %v2293, 4
    %v2304 = vadd.f32 %v2293, %v2303
    %v2305 = vrot.slane %v2304, 2
    %v2306 = vadd.f32 %v2304, %v2305
    %v2307 = vrot.slane %v2306, 1
    %v2308 = vadd.f32 %v2306, %v2307
    %v2309 = vrot.slane %v2296, 4
    %v2310 = vadd.f32 %v2296, %v2309
    %v2311 = vrot.slane %v2310, 2
    %v2312 = vadd.f32 %v2310, %v2311
    %v2313 = vrot.slane %v2312, 1
    %v2314 = vadd.f32 %v2312, %v2313
    %v2315 = vrot.slane %v2299, 4
    %v2316 = vadd.f32 %v2299, %v2315
    %v2317 = vrot.slane %v2316, 2
    %v2318 = vadd.f32 %v2316, %v2317
    %v2319 = vrot.slane %v2318, 1
    %v2320 = vadd.f32 %v2318, %v2319
    %v2321 = vrot.slane %v2302, 4
    %v2322 = vadd.f32 %v2302, %v2321
    %v2323 = vrot.slane %v2322, 2
    %v2324 = vadd.f32 %v2322, %v2323
    %v2325 = vrot.slane %v2324, 1
    %v2326 = vadd.f32 %v2324, %v2325
    %v2327 = vmul.f32 %v2308, %v1262
    %v2328 = vmul.f32 %v2314, %v1262
    %v2329 = vmul.f32 %v2327, 256.0
    %v2330 = vmul.f32 %v2328, 256.0
    %v2331 = vmul.f32 %v2329, %v2327
    %v2332 = vmul.f32 %v2330, %v2328
    %v2333 = vsub.f32 %v2320, %v2331
    %v2334 = vsub.f32 %v2326, %v2332
    %v2335 = vmul.f32 %v2333, %v1271
    %v2336 = vmul.f32 %v2334, %v1271
    %v2337 = vadd.f32 %v2335, 1e-05
    %v2338 = vadd.f32 %v2336, 1e-05
    %v2339 = vrsqrt.pop %v2337
    %v2340 = vrsqrt.pop %v2338
    %v2341 = vsub.f32 %v2283, %v2327
    %v2342 = vsub.f32 %v2284, %v2328
    %v2343 = vmul.f32 %v2341, %v2339
    %v2344 = vmul.f32 %v2342, %v2340
    %v2345 = vmul.f32 %v2343, %v2286
    %v2346 = vmul.f32 %v2344, %v2286
    %v2347 = vadd.f32 %v2345, %v2288
    %v2348 = vadd.f32 %v2346, %v2288
    %v2349 = vld [vmem:[#allocation11] sm:$0xff]
    %v2350 = vld [vmem:[#allocation11 + $0x8] sm:$0xff]
    %v2351 = vld [vmem:[#allocation11 + $0x10] sm:$0xff]
    %v2352 = vld [vmem:[#allocation11 + $0x18] sm:$0xff]
    %v2354 = vsel %vm135, %v2347, 0
    %v2357 = vsel %vm135, %v2348, 0
    %2359 = vmatprep.subr.mxu0 0.0
    %2360 = vmatpush1.msra.mxu0 0.0
    %2361 = vmatprep.subr.mxu0 0.0
    %2362 = vmatpush1.msra.mxu0 0.0
    %2363 = vmatprep.subr.mxu0 0.0
    %2364 = vmatpush1.msra.mxu0 0.0
    %2365 = vmatprep.subr.mxu0 0.0
    %2366 = vmatpush1.msra.mxu0 0.0
    %2367 = vmatprep.subr.mxu0 0.0
    %2368 = vmatpush1.msra.mxu0 0.0
    %2369 = vmatprep.subr.mxu0 0.0
    %2370 = vmatpush1.msra.mxu0 0.0
    %2371 = vmatprep.subr.mxu0 0.0
    %2372 = vmatpush1.msra.mxu0 0.0
    %2373 = vmatprep.subr.mxu0 0.0
    %2374 = vmatpush1.msra.mxu0 0.0
    %2375 = vmatprep.subr.mxu0 0.0
    %2376 = vmatpush1.msra.mxu0 0.0
    %2377 = vmatprep.subr.mxu0 0.0
    %2378 = vmatpush1.msra.mxu0 0.0
    %2379 = vmatprep.subr.mxu0 0.0
    %2380 = vmatpush1.msra.mxu0 0.0
    %2381 = vmatprep.subr.mxu0 0.0
    %2382 = vmatpush1.msra.mxu0 0.0
    %2383 = vmatprep.subr.mxu0 0.0
    %2384 = vmatpush1.msra.mxu0 %v2352
    %2385 = vmatprep.subr.mxu0 0.0
    %2386 = vmatpush1.msra.mxu0 %v2351
    %2387 = vmatprep.subr.mxu0 0.0
    %2388 = vmatpush1.msra.mxu0 %v2350
    %2389 = vmatprep.subr.mxu0 0.0
    %2390 = vmatpush1.msra.mxu0 %v2349
    %2391 = vmatprep.subr.mxu0 0.0
    %2392 = vmatpush2.msra.mxu0 0.0
    %2393 = vmatprep.subr.mxu0 0.0
    %2394 = vmatpush2.msra.mxu0 0.0
    %2395 = vmatprep.subr.mxu0 0.0
    %2396 = vmatpush2.msra.mxu0 0.0
    %2397 = vmatprep.subr.mxu0 0.0
    %2398 = vmatpush2.msra.mxu0 0.0
    %2399 = vmatprep.subr.mxu0 0.0
    %2400 = vmatpush2.msra.mxu0 0.0
    %2401 = vmatprep.subr.mxu0 0.0
    %2402 = vmatpush2.msra.mxu0 0.0
    %2403 = vmatprep.subr.mxu0 0.0
    %2404 = vmatpush2.msra.mxu0 0.0
    %2405 = vmatprep.subr.mxu0 0.0
    %2406 = vmatpush2.msra.mxu0 0.0
    %2407 = vmatprep.subr.mxu0 0.0
    %2408 = vmatpush2.msra.mxu0 0.0
    %2409 = vmatprep.subr.mxu0 0.0
    %2410 = vmatpush2.msra.mxu0 0.0
    %2411 = vmatprep.subr.mxu0 0.0
    %2412 = vmatpush2.msra.mxu0 0.0
    %2413 = vmatprep.subr.mxu0 0.0
    %2414 = vmatpush2.msra.mxu0 0.0
    %2415 = vmatprep.subr.mxu0 0.0
    %2416 = vmatpush2.msra.mxu0 0.0
    %2417 = vmatprep.subr.mxu0 0.0
    %2418 = vmatpush2.msra.mxu0 0.0
    %2419 = vmatprep.subr.mxu0 0.0
    %2420 = vmatpush2.msra.mxu0 0.0
    %2421 = vmatprep.subr.mxu0 0.0
    %2422 = vmatpush2.msra.mxu0 0.0
    %2423 = vmatprep.mubr.f32.mxu0 0.0
    %2424 = vmatmul.mubr.f32.gmra.mxu0 %v2354
    %v2425 = vpop.f32.mrf.mxu0
    %v2426 = vadd.f32 0.0, %v2425
    %v2427 = vpop.f32.mrf.mxu0
    %2428 = vmatprep.mubr.f32.mxu0 0.0
    %2429 = vmatmul.mubr.f32.gmra.mxu0 %v2357
    %v2430 = vpop.f32.mrf.mxu0
    %v2431 = vadd.f32 0.0, %v2430
    %v2432 = vpop.f32.mrf.mxu0
    %2433 = vdwg.mxu0
    %v2434 = vmax.f32 %v2426, 0.0
    %v2435 = vmax.f32 %v2431, 0.0
    %v2436 = vld [vmem:[%s8] sm:$0xff]
    %v2437 = vld [vmem:[%s8 + $0x8] sm:$0xff]
    %v2438 = vld [vmem:[%s8 + $0x10] sm:$0xff]
    %v2439 = vld [vmem:[%s8 + $0x18] sm:$0xff]
    %v2440 = vld [vmem:[%s8 + $0x20] sm:$0xff]
    %v2441 = vld [vmem:[%s8 + $0x28] sm:$0xff]
    %v2442 = vld [vmem:[%s8 + $0x30] sm:$0xff]
    %v2443 = vld [vmem:[%s8 + $0x38] sm:$0xff]
    %v2444 = vld [vmem:[%s8 + $0x40] sm:$0xff]
    %v2445 = vld [vmem:[%s8 + $0x48] sm:$0xff]
    %v2446 = vld [vmem:[%s8 + $0x50] sm:$0xff]
    %v2447 = vld [vmem:[%s8 + $0x58] sm:$0xff]
    %v2448 = vld [vmem:[%s8 + $0x60] sm:$0xff]
    %v2449 = vld [vmem:[%s8 + $0x68] sm:$0xff]
    %v2450 = vld [vmem:[%s8 + $0x70] sm:$0xff]
    %v2451 = vld [vmem:[%s8 + $0x78] sm:$0xff]
    %2452 = vmatprep.subr.mxu0 0.0
    %2453 = vmatpush1.msra.mxu0 %v2451
    %2454 = vmatprep.subr.mxu0 0.0
    %2455 = vmatpush1.msra.mxu0 %v2450
    %2456 = vmatprep.subr.mxu0 0.0
    %2457 = vmatpush1.msra.mxu0 %v2449
    %2458 = vmatprep.subr.mxu0 0.0
    %2459 = vmatpush1.msra.mxu0 %v2448
    %2460 = vmatprep.subr.mxu0 0.0
    %2461 = vmatpush1.msra.mxu0 %v2447
    %2462 = vmatprep.subr.mxu0 0.0
    %2463 = vmatpush1.msra.mxu0 %v2446
    %2464 = vmatprep.subr.mxu0 0.0
    %2465 = vmatpush1.msra.mxu0 %v2445
    %2466 = vmatprep.subr.mxu0 0.0
    %2467 = vmatpush1.msra.mxu0 %v2444
    %2468 = vmatprep.subr.mxu0 0.0
    %2469 = vmatpush1.msra.mxu0 %v2443
    %2470 = vmatprep.subr.mxu0 0.0
    %2471 = vmatpush1.msra.mxu0 %v2442
    %2472 = vmatprep.subr.mxu0 0.0
    %2473 = vmatpush1.msra.mxu0 %v2441
    %2474 = vmatprep.subr.mxu0 0.0
    %2475 = vmatpush1.msra.mxu0 %v2440
    %2476 = vmatprep.subr.mxu0 0.0
    %2477 = vmatpush1.msra.mxu0 %v2439
    %2478 = vmatprep.subr.mxu0 0.0
    %2479 = vmatpush1.msra.mxu0 %v2438
    %2480 = vmatprep.subr.mxu0 0.0
    %2481 = vmatpush1.msra.mxu0 %v2437
    %2482 = vmatprep.subr.mxu0 0.0
    %2483 = vmatpush1.msra.mxu0 %v2436
    %2484 = vmatprep.subr.mxu0 0.0
    %2485 = vmatpush2.msra.mxu0 0.0
    %2486 = vmatprep.subr.mxu0 0.0
    %2487 = vmatpush2.msra.mxu0 0.0
    %2488 = vmatprep.subr.mxu0 0.0
    %2489 = vmatpush2.msra.mxu0 0.0
    %2490 = vmatprep.subr.mxu0 0.0
    %2491 = vmatpush2.msra.mxu0 0.0
    %2492 = vmatprep.subr.mxu0 0.0
    %2493 = vmatpush2.msra.mxu0 0.0
    %2494 = vmatprep.subr.mxu0 0.0
    %2495 = vmatpush2.msra.mxu0 0.0
    %2496 = vmatprep.subr.mxu0 0.0
    %2497 = vmatpush2.msra.mxu0 0.0
    %2498 = vmatprep.subr.mxu0 0.0
    %2499 = vmatpush2.msra.mxu0 0.0
    %2500 = vmatprep.subr.mxu0 0.0
    %2501 = vmatpush2.msra.mxu0 0.0
    %2502 = vmatprep.subr.mxu0 0.0
    %2503 = vmatpush2.msra.mxu0 0.0
    %2504 = vmatprep.subr.mxu0 0.0
    %2505 = vmatpush2.msra.mxu0 0.0
    %2506 = vmatprep.subr.mxu0 0.0
    %2507 = vmatpush2.msra.mxu0 0.0
    %2508 = vmatprep.subr.mxu0 0.0
    %2509 = vmatpush2.msra.mxu0 0.0
    %2510 = vmatprep.subr.mxu0 0.0
    %2511 = vmatpush2.msra.mxu0 0.0
    %2512 = vmatprep.subr.mxu0 0.0
    %2513 = vmatpush2.msra.mxu0 0.0
    %2514 = vmatprep.subr.mxu0 0.0
    %2515 = vmatpush2.msra.mxu0 0.0
    %2516 = vmatprep.mubr.f32.mxu0 0.0
    %2517 = vmatmul.mubr.f32.gmra.mxu0 %v2434
    %v2518 = vpop.f32.mrf.mxu0
    %v2519 = vadd.f32 0.0, %v2518
    %v2520 = vpop.f32.mrf.mxu0
    %2521 = vmatprep.mubr.f32.mxu0 0.0
    %2522 = vmatmul.mubr.f32.gmra.mxu0 %v2435
    %v2523 = vpop.f32.mrf.mxu0
    %v2524 = vadd.f32 0.0, %v2523
    %v2525 = vpop.f32.mrf.mxu0
    %2526 = vdwg.mxu0
    %v2527 = vadd.f32 %v2347, %v2519
    %v2528 = vadd.f32 %v2348, %v2524
    %s2529 = scalar_lea.vmem %s9, 32
    %v2530 = vld [vmem:[%s2529] sm:$0xff]
    %s2531 = scalar_lea.vmem %s9, 40
    %v2532 = vld [vmem:[%s2531] sm:$0xff]
    %v2533 = vmul.f32 %v2527, %v2527
    %v2534 = vmul.f32 %v2528, %v2528
    %v2535 = vsel %vm135, %v2527, 0.0
    %2536 = vadd.xlane.f32.xlu0 %v2535
    %v2537 = vpop.xlane.xlu0 %2536
    %v2538 = vsel %vm135, %v2528, 0.0
    %2539 = vadd.xlane.f32.xlu0 %v2538
    %v2540 = vpop.xlane.xlu0 %2539
    %v2541 = vsel %vm135, %v2533, 0.0
    %2542 = vadd.xlane.f32.xlu0 %v2541
    %v2543 = vpop.xlane.xlu0 %2542
    %v2544 = vsel %vm135, %v2534, 0.0
    %2545 = vadd.xlane.f32.xlu0 %v2544
    %v2546 = vpop.xlane.xlu0 %2545
    %v2547 = vrot.slane %v2537, 4
    %v2548 = vadd.f32 %v2537, %v2547
    %v2549 = vrot.slane %v2548, 2
    %v2550 = vadd.f32 %v2548, %v2549
    %v2551 = vrot.slane %v2550, 1
    %v2552 = vadd.f32 %v2550, %v2551
    %v2553 = vrot.slane %v2540, 4
    %v2554 = vadd.f32 %v2540, %v2553
    %v2555 = vrot.slane %v2554, 2
    %v2556 = vadd.f32 %v2554, %v2555
    %v2557 = vrot.slane %v2556, 1
    %v2558 = vadd.f32 %v2556, %v2557
    %v2559 = vrot.slane %v2543, 4
    %v2560 = vadd.f32 %v2543, %v2559
    %v2561 = vrot.slane %v2560, 2
    %v2562 = vadd.f32 %v2560, %v2561
    %v2563 = vrot.slane %v2562, 1
    %v2564 = vadd.f32 %v2562, %v2563
    %v2565 = vrot.slane %v2546, 4
    %v2566 = vadd.f32 %v2546, %v2565
    %v2567 = vrot.slane %v2566, 2
    %v2568 = vadd.f32 %v2566, %v2567
    %v2569 = vrot.slane %v2568, 1
    %v2570 = vadd.f32 %v2568, %v2569
    %v2571 = vmul.f32 %v2552, %v1262
    %v2572 = vmul.f32 %v2558, %v1262
    %v2573 = vmul.f32 %v2571, 256.0
    %v2574 = vmul.f32 %v2572, 256.0
    %v2575 = vmul.f32 %v2573, %v2571
    %v2576 = vmul.f32 %v2574, %v2572
    %v2577 = vsub.f32 %v2564, %v2575
    %v2578 = vsub.f32 %v2570, %v2576
    %v2579 = vmul.f32 %v2577, %v1271
    %v2580 = vmul.f32 %v2578, %v1271
    %v2581 = vadd.f32 %v2579, 1e-05
    %v2582 = vadd.f32 %v2580, 1e-05
    %v2583 = vrsqrt.pop %v2581
    %v2584 = vrsqrt.pop %v2582
    %v2585 = vsub.f32 %v2527, %v2571
    %v2586 = vsub.f32 %v2528, %v2572
    %v2587 = vmul.f32 %v2585, %v2583
    %v2588 = vmul.f32 %v2586, %v2584
    %v2589 = vmul.f32 %v2587, %v2530
    %v2590 = vmul.f32 %v2588, %v2530
    %v2591 = vadd.f32 %v2589, %v2532
    %v2592 = vadd.f32 %v2590, %v2532
    %s2593 = scalar_lea.vmem [#allocation8], 32
    %v2594 = vld [vmem:[%s2593] sm:$0xff]
    %v2595 = vld [vmem:[%s2593 + $0x8] sm:$0xff]
    %v2596 = vld [vmem:[%s2593 + $0x10] sm:$0xff]
    %v2597 = vld [vmem:[%s2593 + $0x18] sm:$0xff]
    %v2599 = vsel %vm135, %v2591, 0
    %v2602 = vsel %vm135, %v2592, 0
    %2604 = vmatprep.subr.mxu0 0.0
    %2605 = vmatpush1.msra.mxu0 0.0
    %2606 = vmatprep.subr.mxu0 0.0
    %2607 = vmatpush1.msra.mxu0 0.0
    %2608 = vmatprep.subr.mxu0 0.0
    %2609 = vmatpush1.msra.mxu0 0.0
    %2610 = vmatprep.subr.mxu0 0.0
    %2611 = vmatpush1.msra.mxu0 0.0
    %2612 = vmatprep.subr.mxu0 0.0
    %2613 = vmatpush1.msra.mxu0 0.0
    %2614 = vmatprep.subr.mxu0 0.0
    %2615 = vmatpush1.msra.mxu0 0.0
    %2616 = vmatprep.subr.mxu0 0.0
    %2617 = vmatpush1.msra.mxu0 0.0
    %2618 = vmatprep.subr.mxu0 0.0
    %2619 = vmatpush1.msra.mxu0 0.0
    %2620 = vmatprep.subr.mxu0 0.0
    %2621 = vmatpush1.msra.mxu0 0.0
    %2622 = vmatprep.subr.mxu0 0.0
    %2623 = vmatpush1.msra.mxu0 0.0
    %2624 = vmatprep.subr.mxu0 0.0
    %2625 = vmatpush1.msra.mxu0 0.0
    %2626 = vmatprep.subr.mxu0 0.0
    %2627 = vmatpush1.msra.mxu0 0.0
    %2628 = vmatprep.subr.mxu0 0.0
    %2629 = vmatpush1.msra.mxu0 %v2597
    %2630 = vmatprep.subr.mxu0 0.0
    %2631 = vmatpush1.msra.mxu0 %v2596
    %2632 = vmatprep.subr.mxu0 0.0
    %2633 = vmatpush1.msra.mxu0 %v2595
    %2634 = vmatprep.subr.mxu0 0.0
    %2635 = vmatpush1.msra.mxu0 %v2594
    %2636 = vmatprep.subr.mxu0 0.0
    %2637 = vmatpush2.msra.mxu0 0.0
    %2638 = vmatprep.subr.mxu0 0.0
    %2639 = vmatpush2.msra.mxu0 0.0
    %2640 = vmatprep.subr.mxu0 0.0
    %2641 = vmatpush2.msra.mxu0 0.0
    %2642 = vmatprep.subr.mxu0 0.0
    %2643 = vmatpush2.msra.mxu0 0.0
    %2644 = vmatprep.subr.mxu0 0.0
    %2645 = vmatpush2.msra.mxu0 0.0
    %2646 = vmatprep.subr.mxu0 0.0
    %2647 = vmatpush2.msra.mxu0 0.0
    %2648 = vmatprep.subr.mxu0 0.0
    %2649 = vmatpush2.msra.mxu0 0.0
    %2650 = vmatprep.subr.mxu0 0.0
    %2651 = vmatpush2.msra.mxu0 0.0
    %2652 = vmatprep.subr.mxu0 0.0
    %2653 = vmatpush2.msra.mxu0 0.0
    %2654 = vmatprep.subr.mxu0 0.0
    %2655 = vmatpush2.msra.mxu0 0.0
    %2656 = vmatprep.subr.mxu0 0.0
    %2657 = vmatpush2.msra.mxu0 0.0
    %2658 = vmatprep.subr.mxu0 0.0
    %2659 = vmatpush2.msra.mxu0 0.0
    %2660 = vmatprep.subr.mxu0 0.0
    %2661 = vmatpush2.msra.mxu0 0.0
    %2662 = vmatprep.subr.mxu0 0.0
    %2663 = vmatpush2.msra.mxu0 0.0
    %2664 = vmatprep.subr.mxu0 0.0
    %2665 = vmatpush2.msra.mxu0 0.0
    %2666 = vmatprep.subr.mxu0 0.0
    %2667 = vmatpush2.msra.mxu0 0.0
    %2668 = vmatprep.mubr.f32.mxu0 0.0
    %2669 = vmatmul.mubr.f32.gmra.mxu0 %v2599
    %v2670 = vpop.f32.mrf.mxu0
    %v2671 = vadd.f32 0.0, %v2670
    %v2672 = vpop.f32.mrf.mxu0
    %2673 = vmatprep.mubr.f32.mxu0 0.0
    %2674 = vmatmul.mubr.f32.gmra.mxu0 %v2602
    %v2675 = vpop.f32.mrf.mxu0
    %v2676 = vadd.f32 0.0, %v2675
    %v2677 = vpop.f32.mrf.mxu0
    %2678 = vdwg.mxu0
    %s2679 = scalar_lea.vmem %s6, 128
    %v2680 = vld [vmem:[%s2679] sm:$0xff]
    %v2681 = vld [vmem:[%s2679 + $0x8] sm:$0xff]
    %v2682 = vld [vmem:[%s2679 + $0x10] sm:$0xff]
    %v2683 = vld [vmem:[%s2679 + $0x18] sm:$0xff]
    %2686 = vrot.lane.b32.xlu0 %v2671, 96
    %v2687 = vpop.permute.xlu0 %2686
    %2688 = vrot.lane.b32.xlu0 %v2676, 96
    %v2689 = vpop.permute.xlu0 %2688
    %v2690 = vsel %vm313, %v2671, 0
    %v2692 = vsel %vm313, %v2676, 0
    %v2694 = vsel %vm313, %v2687, 0
    %v2696 = vsel %vm313, %v2689, 0
    %2698 = vmatprep.subr.mxu0 0.0
    %2699 = vmatpush1.xpose.msra.mxu0 0.0
    %2700 = vmatprep.subr.mxu0 0.0
    %2701 = vmatpush1.xpose.msra.mxu0 0.0
    %2702 = vmatprep.subr.mxu0 0.0
    %2703 = vmatpush1.xpose.msra.mxu0 0.0
    %2704 = vmatprep.subr.mxu0 0.0
    %2705 = vmatpush1.xpose.msra.mxu0 0.0
    %2706 = vmatprep.subr.mxu0 0.0
    %2707 = vmatpush1.xpose.msra.mxu0 0.0
    %2708 = vmatprep.subr.mxu0 0.0
    %2709 = vmatpush1.xpose.msra.mxu0 0.0
    %2710 = vmatprep.subr.mxu0 0.0
    %2711 = vmatpush1.xpose.msra.mxu0 0.0
    %2712 = vmatprep.subr.mxu0 0.0
    %2713 = vmatpush1.xpose.msra.mxu0 0.0
    %2714 = vmatprep.subr.mxu0 0.0
    %2715 = vmatpush1.xpose.msra.mxu0 0.0
    %2716 = vmatprep.subr.mxu0 0.0
    %2717 = vmatpush1.xpose.msra.mxu0 0.0
    %2718 = vmatprep.subr.mxu0 0.0
    %2719 = vmatpush1.xpose.msra.mxu0 0.0
    %2720 = vmatprep.subr.mxu0 0.0
    %2721 = vmatpush1.xpose.msra.mxu0 0.0
    %2722 = vmatprep.subr.mxu0 0.0
    %2723 = vmatpush1.xpose.msra.mxu0 0.0
    %2724 = vmatprep.subr.mxu0 0.0
    %2725 = vmatpush1.xpose.msra.mxu0 0.0
    %2726 = vmatprep.subr.mxu0 0.0
    %2727 = vmatpush1.xpose.msra.mxu0 %v2696
    %2728 = vmatprep.subr.mxu0 0.0
    %2729 = vmatpush1.xpose.msra.mxu0 %v2694
    %2730 = vmatprep.subr.mxu0 0.0
    %2731 = vmatpush2.xpose.msra.mxu0 0.0
    %2732 = vmatprep.subr.mxu0 0.0
    %2733 = vmatpush2.xpose.msra.mxu0 0.0
    %2734 = vmatprep.subr.mxu0 0.0
    %2735 = vmatpush2.xpose.msra.mxu0 0.0
    %2736 = vmatprep.subr.mxu0 0.0
    %2737 = vmatpush2.xpose.msra.mxu0 0.0
    %2738 = vmatprep.subr.mxu0 0.0
    %2739 = vmatpush2.xpose.msra.mxu0 0.0
    %2740 = vmatprep.subr.mxu0 0.0
    %2741 = vmatpush2.xpose.msra.mxu0 0.0
    %2742 = vmatprep.subr.mxu0 0.0
    %2743 = vmatpush2.xpose.msra.mxu0 0.0
    %2744 = vmatprep.subr.mxu0 0.0
    %2745 = vmatpush2.xpose.msra.mxu0 0.0
    %2746 = vmatprep.subr.mxu0 0.0
    %2747 = vmatpush2.xpose.msra.mxu0 0.0
    %2748 = vmatprep.subr.mxu0 0.0
    %2749 = vmatpush2.xpose.msra.mxu0 0.0
    %2750 = vmatprep.subr.mxu0 0.0
    %2751 = vmatpush2.xpose.msra.mxu0 0.0
    %2752 = vmatprep.subr.mxu0 0.0
    %2753 = vmatpush2.xpose.msra.mxu0 0.0
    %2754 = vmatprep.subr.mxu0 0.0
    %2755 = vmatpush2.xpose.msra.mxu0 0.0
    %2756 = vmatprep.subr.mxu0 0.0
    %2757 = vmatpush2.xpose.msra.mxu0 0.0
    %2758 = vmatprep.subr.mxu0 0.0
    %2759 = vmatpush2.xpose.msra.mxu0 0.0
    %2760 = vmatprep.subr.mxu0 0.0
    %2761 = vmatpush2.xpose.msra.mxu0 0.0
    %2762 = vmatprep.mubr.f32.mxu0 0.0
    %2763 = vmatmul.mubr.f32.gmra.mxu0 %v2690
    %v2764 = vpop.f32.mrf.mxu0
    %v2765 = vadd.f32 %v118, %v2764
    %v2766 = vpop.f32.mrf.mxu0
    %2767 = vmatprep.mubr.f32.mxu0 0.0
    %2768 = vmatmul.mubr.f32.gmra.mxu0 %v2692
    %v2769 = vpop.f32.mrf.mxu0
    %v2770 = vadd.f32 %v119, %v2769
    %v2771 = vpop.f32.mrf.mxu0
    %2772 = vdwg.mxu0
    %v2773 = vsel %vm397, %v2765, -inf
    %2774 = vmax.xlane.f32.xlu0 %v2773
    %v2775 = vpop.xlane.xlu0 %2774
    %v2776 = vsel %vm397, %v2770, -inf
    %2777 = vmax.xlane.f32.xlu0 %v2776
    %v2778 = vpop.xlane.xlu0 %2777
    %v2779 = vsub.f32 %v2765, %v2775
    %v2780 = vsub.f32 %v2770, %v2778
    %v2781 = vmul.f32 %v2779, 1.442695
    %v2782 = vpow.pop %v2781
    %v2783 = vmul.f32 %v2780, 1.442695
    %v2784 = vpow.pop %v2783
    %v2785 = vsel %vm397, %v2782, 0.0
    %2786 = vadd.xlane.f32.xlu0 %v2785
    %v2787 = vpop.xlane.xlu0 %2786
    %v2788 = vsel %vm397, %v2784, 0.0
    %2789 = vadd.xlane.f32.xlu0 %v2788
    %v2790 = vpop.xlane.xlu0 %2789
    %v2791 = vrcp.pop %v2787
    %v2792 = vrcp.pop %v2790
    %2793 = vrot.lane.b32.xlu0 %v2671, 64
    %v2794 = vpop.permute.xlu0 %2793
    %2795 = vrot.lane.b32.xlu0 %v2676, 64
    %v2796 = vpop.permute.xlu0 %2795
    %v2800 = vsel %vm397, %v2782, 0
    %v2803 = vsel %vm397, %v2784, 0
    %2805 = vmatprep.subr.mxu0 0.0
    %2806 = vmatpush1.msra.mxu0 0.0
    %2807 = vmatprep.subr.mxu0 0.0
    %2808 = vmatpush1.msra.mxu0 0.0
    %2809 = vmatprep.subr.mxu0 0.0
    %2810 = vmatpush1.msra.mxu0 0.0
    %2811 = vmatprep.subr.mxu0 0.0
    %2812 = vmatpush1.msra.mxu0 0.0
    %2813 = vmatprep.subr.mxu0 0.0
    %2814 = vmatpush1.msra.mxu0 0.0
    %2815 = vmatprep.subr.mxu0 0.0
    %2816 = vmatpush1.msra.mxu0 0.0
    %2817 = vmatprep.subr.mxu0 0.0
    %2818 = vmatpush1.msra.mxu0 0.0
    %2819 = vmatprep.subr.mxu0 0.0
    %2820 = vmatpush1.msra.mxu0 0.0
    %2821 = vmatprep.subr.mxu0 0.0
    %2822 = vmatpush1.msra.mxu0 0.0
    %2823 = vmatprep.subr.mxu0 0.0
    %2824 = vmatpush1.msra.mxu0 0.0
    %2825 = vmatprep.subr.mxu0 0.0
    %2826 = vmatpush1.msra.mxu0 0.0
    %2827 = vmatprep.subr.mxu0 0.0
    %2828 = vmatpush1.msra.mxu0 0.0
    %2829 = vmatprep.subr.mxu0 0.0
    %2830 = vmatpush1.msra.mxu0 0.0
    %2831 = vmatprep.subr.mxu0 0.0
    %2832 = vmatpush1.msra.mxu0 0.0
    %2833 = vmatprep.subr.mxu0 0.0
    %2834 = vmatpush1.msra.mxu0 %v2796
    %2835 = vmatprep.subr.mxu0 0.0
    %2836 = vmatpush1.msra.mxu0 %v2794
    %2837 = vmatprep.subr.mxu0 0.0
    %2838 = vmatpush2.msra.mxu0 0.0
    %2839 = vmatprep.subr.mxu0 0.0
    %2840 = vmatpush2.msra.mxu0 0.0
    %2841 = vmatprep.subr.mxu0 0.0
    %2842 = vmatpush2.msra.mxu0 0.0
    %2843 = vmatprep.subr.mxu0 0.0
    %2844 = vmatpush2.msra.mxu0 0.0
    %2845 = vmatprep.subr.mxu0 0.0
    %2846 = vmatpush2.msra.mxu0 0.0
    %2847 = vmatprep.subr.mxu0 0.0
    %2848 = vmatpush2.msra.mxu0 0.0
    %2849 = vmatprep.subr.mxu0 0.0
    %2850 = vmatpush2.msra.mxu0 0.0
    %2851 = vmatprep.subr.mxu0 0.0
    %2852 = vmatpush2.msra.mxu0 0.0
    %2853 = vmatprep.subr.mxu0 0.0
    %2854 = vmatpush2.msra.mxu0 0.0
    %2855 = vmatprep.subr.mxu0 0.0
    %2856 = vmatpush2.msra.mxu0 0.0
    %2857 = vmatprep.subr.mxu0 0.0
    %2858 = vmatpush2.msra.mxu0 0.0
    %2859 = vmatprep.subr.mxu0 0.0
    %2860 = vmatpush2.msra.mxu0 0.0
    %2861 = vmatprep.subr.mxu0 0.0
    %2862 = vmatpush2.msra.mxu0 0.0
    %2863 = vmatprep.subr.mxu0 0.0
    %2864 = vmatpush2.msra.mxu0 0.0
    %2865 = vmatprep.subr.mxu0 0.0
    %2866 = vmatpush2.msra.mxu0 0.0
    %2867 = vmatprep.subr.mxu0 0.0
    %2868 = vmatpush2.msra.mxu0 0.0
    %2869 = vmatprep.mubr.f32.mxu0 0.0
    %2870 = vmatmul.mubr.f32.gmra.mxu0 %v2800
    %v2871 = vpop.f32.mrf.mxu0
    %v2872 = vadd.f32 0.0, %v2871
    %v2873 = vpop.f32.mrf.mxu0
    %2874 = vmatprep.mubr.f32.mxu0 0.0
    %2875 = vmatmul.mubr.f32.gmra.mxu0 %v2803
    %v2876 = vpop.f32.mrf.mxu0
    %v2877 = vadd.f32 0.0, %v2876
    %v2878 = vpop.f32.mrf.mxu0
    %2879 = vdwg.mxu0
    %v2880 = vmul.f32 %v2872, %v2791
    %v2881 = vmul.f32 %v2877, %v2792
    %2882 = vrot.lane.b32.xlu0 %v2671, 120
    %v2883 = vpop.permute.xlu0 %2882
    %2884 = vrot.lane.b32.xlu0 %v2676, 120
    %v2885 = vpop.permute.xlu0 %2884
    %2886 = vrot.lane.b32.xlu0 %v2671, 88
    %v2887 = vpop.permute.xlu0 %2886
    %2888 = vrot.lane.b32.xlu0 %v2676, 88
    %v2889 = vpop.permute.xlu0 %2888
    %v2890 = vsel %vm313, %v2883, 0
    %v2892 = vsel %vm313, %v2885, 0
    %v2894 = vsel %vm313, %v2887, 0
    %v2896 = vsel %vm313, %v2889, 0
    %2898 = vmatprep.subr.mxu0 0.0
    %2899 = vmatpush1.xpose.msra.mxu0 0.0
    %2900 = vmatprep.subr.mxu0 0.0
    %2901 = vmatpush1.xpose.msra.mxu0 0.0
    %2902 = vmatprep.subr.mxu0 0.0
    %2903 = vmatpush1.xpose.msra.mxu0 0.0
    %2904 = vmatprep.subr.mxu0 0.0
    %2905 = vmatpush1.xpose.msra.mxu0 0.0
    %2906 = vmatprep.subr.mxu0 0.0
    %2907 = vmatpush1.xpose.msra.mxu0 0.0
    %2908 = vmatprep.subr.mxu0 0.0
    %2909 = vmatpush1.xpose.msra.mxu0 0.0
    %2910 = vmatprep.subr.mxu0 0.0
    %2911 = vmatpush1.xpose.msra.mxu0 0.0
    %2912 = vmatprep.subr.mxu0 0.0
    %2913 = vmatpush1.xpose.msra.mxu0 0.0
    %2914 = vmatprep.subr.mxu0 0.0
    %2915 = vmatpush1.xpose.msra.mxu0 0.0
    %2916 = vmatprep.subr.mxu0 0.0
    %2917 = vmatpush1.xpose.msra.mxu0 0.0
    %2918 = vmatprep.subr.mxu0 0.0
    %2919 = vmatpush1.xpose.msra.mxu0 0.0
    %2920 = vmatprep.subr.mxu0 0.0
    %2921 = vmatpush1.xpose.msra.mxu0 0.0
    %2922 = vmatprep.subr.mxu0 0.0
    %2923 = vmatpush1.xpose.msra.mxu0 0.0
    %2924 = vmatprep.subr.mxu0 0.0
    %2925 = vmatpush1.xpose.msra.mxu0 0.0
    %2926 = vmatprep.subr.mxu0 0.0
    %2927 = vmatpush1.xpose.msra.mxu0 %v2896
    %2928 = vmatprep.subr.mxu0 0.0
    %2929 = vmatpush1.xpose.msra.mxu0 %v2894
    %2930 = vmatprep.subr.mxu0 0.0
    %2931 = vmatpush2.xpose.msra.mxu0 0.0
    %2932 = vmatprep.subr.mxu0 0.0
    %2933 = vmatpush2.xpose.msra.mxu0 0.0
    %2934 = vmatprep.subr.mxu0 0.0
    %2935 = vmatpush2.xpose.msra.mxu0 0.0
    %2936 = vmatprep.subr.mxu0 0.0
    %2937 = vmatpush2.xpose.msra.mxu0 0.0
    %2938 = vmatprep.subr.mxu0 0.0
    %2939 = vmatpush2.xpose.msra.mxu0 0.0
    %2940 = vmatprep.subr.mxu0 0.0
    %2941 = vmatpush2.xpose.msra.mxu0 0.0
    %2942 = vmatprep.subr.mxu0 0.0
    %2943 = vmatpush2.xpose.msra.mxu0 0.0
    %2944 = vmatprep.subr.mxu0 0.0
    %2945 = vmatpush2.xpose.msra.mxu0 0.0
    %2946 = vmatprep.subr.mxu0 0.0
    %2947 = vmatpush2.xpose.msra.mxu0 0.0
    %2948 = vmatprep.subr.mxu0 0.0
    %2949 = vmatpush2.xpose.msra.mxu0 0.0
    %2950 = vmatprep.subr.mxu0 0.0
    %2951 = vmatpush2.xpose.msra.mxu0 0.0
    %2952 = vmatprep.subr.mxu0 0.0
    %2953 = vmatpush2.xpose.msra.mxu0 0.0
    %2954 = vmatprep.subr.mxu0 0.0
    %2955 = vmatpush2.xpose.msra.mxu0 0.0
    %2956 = vmatprep.subr.mxu0 0.0
    %2957 = vmatpush2.xpose.msra.mxu0 0.0
    %2958 = vmatprep.subr.mxu0 0.0
    %2959 = vmatpush2.xpose.msra.mxu0 0.0
    %2960 = vmatprep.subr.mxu0 0.0
    %2961 = vmatpush2.xpose.msra.mxu0 0.0
    %2962 = vmatprep.mubr.f32.mxu0 0.0
    %2963 = vmatmul.mubr.f32.gmra.mxu0 %v2890
    %v2964 = vpop.f32.mrf.mxu0
    %v2965 = vadd.f32 %v118, %v2964
    %v2966 = vpop.f32.mrf.mxu0
    %2967 = vmatprep.mubr.f32.mxu0 0.0
    %2968 = vmatmul.mubr.f32.gmra.mxu0 %v2892
    %v2969 = vpop.f32.mrf.mxu0
    %v2970 = vadd.f32 %v119, %v2969
    %v2971 = vpop.f32.mrf.mxu0
    %2972 = vdwg.mxu0
    %v2973 = vsel %vm397, %v2965, -inf
    %2974 = vmax.xlane.f32.xlu0 %v2973
    %v2975 = vpop.xlane.xlu0 %2974
    %v2976 = vsel %vm397, %v2970, -inf
    %2977 = vmax.xlane.f32.xlu0 %v2976
    %v2978 = vpop.xlane.xlu0 %2977
    %v2979 = vsub.f32 %v2965, %v2975
    %v2980 = vsub.f32 %v2970, %v2978
    %v2981 = vmul.f32 %v2979, 1.442695
    %v2982 = vpow.pop %v2981
    %v2983 = vmul.f32 %v2980, 1.442695
    %v2984 = vpow.pop %v2983
    %v2985 = vsel %vm397, %v2982, 0.0
    %2986 = vadd.xlane.f32.xlu0 %v2985
    %v2987 = vpop.xlane.xlu0 %2986
    %v2988 = vsel %vm397, %v2984, 0.0
    %2989 = vadd.xlane.f32.xlu0 %v2988
    %v2990 = vpop.xlane.xlu0 %2989
    %v2991 = vrcp.pop %v2987
    %v2992 = vrcp.pop %v2990
    %2993 = vrot.lane.b32.xlu0 %v2671, 56
    %v2994 = vpop.permute.xlu0 %2993
    %2995 = vrot.lane.b32.xlu0 %v2676, 56
    %v2996 = vpop.permute.xlu0 %2995
    %v3000 = vsel %vm397, %v2982, 0
    %v3003 = vsel %vm397, %v2984, 0
    %3005 = vmatprep.subr.mxu0 0.0
    %3006 = vmatpush1.msra.mxu0 0.0
    %3007 = vmatprep.subr.mxu0 0.0
    %3008 = vmatpush1.msra.mxu0 0.0
    %3009 = vmatprep.subr.mxu0 0.0
    %3010 = vmatpush1.msra.mxu0 0.0
    %3011 = vmatprep.subr.mxu0 0.0
    %3012 = vmatpush1.msra.mxu0 0.0
    %3013 = vmatprep.subr.mxu0 0.0
    %3014 = vmatpush1.msra.mxu0 0.0
    %3015 = vmatprep.subr.mxu0 0.0
    %3016 = vmatpush1.msra.mxu0 0.0
    %3017 = vmatprep.subr.mxu0 0.0
    %3018 = vmatpush1.msra.mxu0 0.0
    %3019 = vmatprep.subr.mxu0 0.0
    %3020 = vmatpush1.msra.mxu0 0.0
    %3021 = vmatprep.subr.mxu0 0.0
    %3022 = vmatpush1.msra.mxu0 0.0
    %3023 = vmatprep.subr.mxu0 0.0
    %3024 = vmatpush1.msra.mxu0 0.0
    %3025 = vmatprep.subr.mxu0 0.0
    %3026 = vmatpush1.msra.mxu0 0.0
    %3027 = vmatprep.subr.mxu0 0.0
    %3028 = vmatpush1.msra.mxu0 0.0
    %3029 = vmatprep.subr.mxu0 0.0
    %3030 = vmatpush1.msra.mxu0 0.0
    %3031 = vmatprep.subr.mxu0 0.0
    %3032 = vmatpush1.msra.mxu0 0.0
    %3033 = vmatprep.subr.mxu0 0.0
    %3034 = vmatpush1.msra.mxu0 %v2996
    %3035 = vmatprep.subr.mxu0 0.0
    %3036 = vmatpush1.msra.mxu0 %v2994
    %3037 = vmatprep.subr.mxu0 0.0
    %3038 = vmatpush2.msra.mxu0 0.0
    %3039 = vmatprep.subr.mxu0 0.0
    %3040 = vmatpush2.msra.mxu0 0.0
    %3041 = vmatprep.subr.mxu0 0.0
    %3042 = vmatpush2.msra.mxu0 0.0
    %3043 = vmatprep.subr.mxu0 0.0
    %3044 = vmatpush2.msra.mxu0 0.0
    %3045 = vmatprep.subr.mxu0 0.0
    %3046 = vmatpush2.msra.mxu0 0.0
    %3047 = vmatprep.subr.mxu0 0.0
    %3048 = vmatpush2.msra.mxu0 0.0
    %3049 = vmatprep.subr.mxu0 0.0
    %3050 = vmatpush2.msra.mxu0 0.0
    %3051 = vmatprep.subr.mxu0 0.0
    %3052 = vmatpush2.msra.mxu0 0.0
    %3053 = vmatprep.subr.mxu0 0.0
    %3054 = vmatpush2.msra.mxu0 0.0
    %3055 = vmatprep.subr.mxu0 0.0
    %3056 = vmatpush2.msra.mxu0 0.0
    %3057 = vmatprep.subr.mxu0 0.0
    %3058 = vmatpush2.msra.mxu0 0.0
    %3059 = vmatprep.subr.mxu0 0.0
    %3060 = vmatpush2.msra.mxu0 0.0
    %3061 = vmatprep.subr.mxu0 0.0
    %3062 = vmatpush2.msra.mxu0 0.0
    %3063 = vmatprep.subr.mxu0 0.0
    %3064 = vmatpush2.msra.mxu0 0.0
    %3065 = vmatprep.subr.mxu0 0.0
    %3066 = vmatpush2.msra.mxu0 0.0
    %3067 = vmatprep.subr.mxu0 0.0
    %3068 = vmatpush2.msra.mxu0 0.0
    %3069 = vmatprep.mubr.f32.mxu0 0.0
    %3070 = vmatmul.mubr.f32.gmra.mxu0 %v3000
    %v3071 = vpop.f32.mrf.mxu0
    %v3072 = vadd.f32 0.0, %v3071
    %v3073 = vpop.f32.mrf.mxu0
    %3074 = vmatprep.mubr.f32.mxu0 0.0
    %3075 = vmatmul.mubr.f32.gmra.mxu0 %v3003
    %v3076 = vpop.f32.mrf.mxu0
    %v3077 = vadd.f32 0.0, %v3076
    %v3078 = vpop.f32.mrf.mxu0
    %3079 = vdwg.mxu0
    %v3080 = vmul.f32 %v3072, %v2991
    %v3081 = vmul.f32 %v3077, %v2992
    %3082 = vrot.lane.b32.xlu0 %v2671, 112
    %v3083 = vpop.permute.xlu0 %3082
    %3084 = vrot.lane.b32.xlu0 %v2676, 112
    %v3085 = vpop.permute.xlu0 %3084
    %3086 = vrot.lane.b32.xlu0 %v2671, 80
    %v3087 = vpop.permute.xlu0 %3086
    %3088 = vrot.lane.b32.xlu0 %v2676, 80
    %v3089 = vpop.permute.xlu0 %3088
    %v3090 = vsel %vm313, %v3083, 0
    %v3092 = vsel %vm313, %v3085, 0
    %v3094 = vsel %vm313, %v3087, 0
    %v3096 = vsel %vm313, %v3089, 0
    %3098 = vmatprep.subr.mxu0 0.0
    %3099 = vmatpush1.xpose.msra.mxu0 0.0
    %3100 = vmatprep.subr.mxu0 0.0
    %3101 = vmatpush1.xpose.msra.mxu0 0.0
    %3102 = vmatprep.subr.mxu0 0.0
    %3103 = vmatpush1.xpose.msra.mxu0 0.0
    %3104 = vmatprep.subr.mxu0 0.0
    %3105 = vmatpush1.xpose.msra.mxu0 0.0
    %3106 = vmatprep.subr.mxu0 0.0
    %3107 = vmatpush1.xpose.msra.mxu0 0.0
    %3108 = vmatprep.subr.mxu0 0.0
    %3109 = vmatpush1.xpose.msra.mxu0 0.0
    %3110 = vmatprep.subr.mxu0 0.0
    %3111 = vmatpush1.xpose.msra.mxu0 0.0
    %3112 = vmatprep.subr.mxu0 0.0
    %3113 = vmatpush1.xpose.msra.mxu0 0.0
    %3114 = vmatprep.subr.mxu0 0.0
    %3115 = vmatpush1.xpose.msra.mxu0 0.0
    %3116 = vmatprep.subr.mxu0 0.0
    %3117 = vmatpush1.xpose.msra.mxu0 0.0
    %3118 = vmatprep.subr.mxu0 0.0
    %3119 = vmatpush1.xpose.msra.mxu0 0.0
    %3120 = vmatprep.subr.mxu0 0.0
    %3121 = vmatpush1.xpose.msra.mxu0 0.0
    %3122 = vmatprep.subr.mxu0 0.0
    %3123 = vmatpush1.xpose.msra.mxu0 0.0
    %3124 = vmatprep.subr.mxu0 0.0
    %3125 = vmatpush1.xpose.msra.mxu0 0.0
    %3126 = vmatprep.subr.mxu0 0.0
    %3127 = vmatpush1.xpose.msra.mxu0 %v3096
    %3128 = vmatprep.subr.mxu0 0.0
    %3129 = vmatpush1.xpose.msra.mxu0 %v3094
    %3130 = vmatprep.subr.mxu0 0.0
    %3131 = vmatpush2.xpose.msra.mxu0 0.0
    %3132 = vmatprep.subr.mxu0 0.0
    %3133 = vmatpush2.xpose.msra.mxu0 0.0
    %3134 = vmatprep.subr.mxu0 0.0
    %3135 = vmatpush2.xpose.msra.mxu0 0.0
    %3136 = vmatprep.subr.mxu0 0.0
    %3137 = vmatpush2.xpose.msra.mxu0 0.0
    %3138 = vmatprep.subr.mxu0 0.0
    %3139 = vmatpush2.xpose.msra.mxu0 0.0
    %3140 = vmatprep.subr.mxu0 0.0
    %3141 = vmatpush2.xpose.msra.mxu0 0.0
    %3142 = vmatprep.subr.mxu0 0.0
    %3143 = vmatpush2.xpose.msra.mxu0 0.0
    %3144 = vmatprep.subr.mxu0 0.0
    %3145 = vmatpush2.xpose.msra.mxu0 0.0
    %3146 = vmatprep.subr.mxu0 0.0
    %3147 = vmatpush2.xpose.msra.mxu0 0.0
    %3148 = vmatprep.subr.mxu0 0.0
    %3149 = vmatpush2.xpose.msra.mxu0 0.0
    %3150 = vmatprep.subr.mxu0 0.0
    %3151 = vmatpush2.xpose.msra.mxu0 0.0
    %3152 = vmatprep.subr.mxu0 0.0
    %3153 = vmatpush2.xpose.msra.mxu0 0.0
    %3154 = vmatprep.subr.mxu0 0.0
    %3155 = vmatpush2.xpose.msra.mxu0 0.0
    %3156 = vmatprep.subr.mxu0 0.0
    %3157 = vmatpush2.xpose.msra.mxu0 0.0
    %3158 = vmatprep.subr.mxu0 0.0
    %3159 = vmatpush2.xpose.msra.mxu0 0.0
    %3160 = vmatprep.subr.mxu0 0.0
    %3161 = vmatpush2.xpose.msra.mxu0 0.0
    %3162 = vmatprep.mubr.f32.mxu0 0.0
    %3163 = vmatmul.mubr.f32.gmra.mxu0 %v3090
    %v3164 = vpop.f32.mrf.mxu0
    %v3165 = vadd.f32 %v118, %v3164
    %v3166 = vpop.f32.mrf.mxu0
    %3167 = vmatprep.mubr.f32.mxu0 0.0
    %3168 = vmatmul.mubr.f32.gmra.mxu0 %v3092
    %v3169 = vpop.f32.mrf.mxu0
    %v3170 = vadd.f32 %v119, %v3169
    %v3171 = vpop.f32.mrf.mxu0
    %3172 = vdwg.mxu0
    %v3173 = vsel %vm397, %v3165, -inf
    %3174 = vmax.xlane.f32.xlu0 %v3173
    %v3175 = vpop.xlane.xlu0 %3174
    %v3176 = vsel %vm397, %v3170, -inf
    %3177 = vmax.xlane.f32.xlu0 %v3176
    %v3178 = vpop.xlane.xlu0 %3177
    %v3179 = vsub.f32 %v3165, %v3175
    %v3180 = vsub.f32 %v3170, %v3178
    %v3181 = vmul.f32 %v3179, 1.442695
    %v3182 = vpow.pop %v3181
    %v3183 = vmul.f32 %v3180, 1.442695
    %v3184 = vpow.pop %v3183
    %v3185 = vsel %vm397, %v3182, 0.0
    %3186 = vadd.xlane.f32.xlu0 %v3185
    %v3187 = vpop.xlane.xlu0 %3186
    %v3188 = vsel %vm397, %v3184, 0.0
    %3189 = vadd.xlane.f32.xlu0 %v3188
    %v3190 = vpop.xlane.xlu0 %3189
    %v3191 = vrcp.pop %v3187
    %v3192 = vrcp.pop %v3190
    %3193 = vrot.lane.b32.xlu0 %v2671, 48
    %v3194 = vpop.permute.xlu0 %3193
    %3195 = vrot.lane.b32.xlu0 %v2676, 48
    %v3196 = vpop.permute.xlu0 %3195
    %v3200 = vsel %vm397, %v3182, 0
    %v3203 = vsel %vm397, %v3184, 0
    %3205 = vmatprep.subr.mxu0 0.0
    %3206 = vmatpush1.msra.mxu0 0.0
    %3207 = vmatprep.subr.mxu0 0.0
    %3208 = vmatpush1.msra.mxu0 0.0
    %3209 = vmatprep.subr.mxu0 0.0
    %3210 = vmatpush1.msra.mxu0 0.0
    %3211 = vmatprep.subr.mxu0 0.0
    %3212 = vmatpush1.msra.mxu0 0.0
    %3213 = vmatprep.subr.mxu0 0.0
    %3214 = vmatpush1.msra.mxu0 0.0
    %3215 = vmatprep.subr.mxu0 0.0
    %3216 = vmatpush1.msra.mxu0 0.0
    %3217 = vmatprep.subr.mxu0 0.0
    %3218 = vmatpush1.msra.mxu0 0.0
    %3219 = vmatprep.subr.mxu0 0.0
    %3220 = vmatpush1.msra.mxu0 0.0
    %3221 = vmatprep.subr.mxu0 0.0
    %3222 = vmatpush1.msra.mxu0 0.0
    %3223 = vmatprep.subr.mxu0 0.0
    %3224 = vmatpush1.msra.mxu0 0.0
    %3225 = vmatprep.subr.mxu0 0.0
    %3226 = vmatpush1.msra.mxu0 0.0
    %3227 = vmatprep.subr.mxu0 0.0
    %3228 = vmatpush1.msra.mxu0 0.0
    %3229 = vmatprep.subr.mxu0 0.0
    %3230 = vmatpush1.msra.mxu0 0.0
    %3231 = vmatprep.subr.mxu0 0.0
    %3232 = vmatpush1.msra.mxu0 0.0
    %3233 = vmatprep.subr.mxu0 0.0
    %3234 = vmatpush1.msra.mxu0 %v3196
    %3235 = vmatprep.subr.mxu0 0.0
    %3236 = vmatpush1.msra.mxu0 %v3194
    %3237 = vmatprep.subr.mxu0 0.0
    %3238 = vmatpush2.msra.mxu0 0.0
    %3239 = vmatprep.subr.mxu0 0.0
    %3240 = vmatpush2.msra.mxu0 0.0
    %3241 = vmatprep.subr.mxu0 0.0
    %3242 = vmatpush2.msra.mxu0 0.0
    %3243 = vmatprep.subr.mxu0 0.0
    %3244 = vmatpush2.msra.mxu0 0.0
    %3245 = vmatprep.subr.mxu0 0.0
    %3246 = vmatpush2.msra.mxu0 0.0
    %3247 = vmatprep.subr.mxu0 0.0
    %3248 = vmatpush2.msra.mxu0 0.0
    %3249 = vmatprep.subr.mxu0 0.0
    %3250 = vmatpush2.msra.mxu0 0.0
    %3251 = vmatprep.subr.mxu0 0.0
    %3252 = vmatpush2.msra.mxu0 0.0
    %3253 = vmatprep.subr.mxu0 0.0
    %3254 = vmatpush2.msra.mxu0 0.0
    %3255 = vmatprep.subr.mxu0 0.0
    %3256 = vmatpush2.msra.mxu0 0.0
    %3257 = vmatprep.subr.mxu0 0.0
    %3258 = vmatpush2.msra.mxu0 0.0
    %3259 = vmatprep.subr.mxu0 0.0
    %3260 = vmatpush2.msra.mxu0 0.0
    %3261 = vmatprep.subr.mxu0 0.0
    %3262 = vmatpush2.msra.mxu0 0.0
    %3263 = vmatprep.subr.mxu0 0.0
    %3264 = vmatpush2.msra.mxu0 0.0
    %3265 = vmatprep.subr.mxu0 0.0
    %3266 = vmatpush2.msra.mxu0 0.0
    %3267 = vmatprep.subr.mxu0 0.0
    %3268 = vmatpush2.msra.mxu0 0.0
    %3269 = vmatprep.mubr.f32.mxu0 0.0
    %3270 = vmatmul.mubr.f32.gmra.mxu0 %v3200
    %v3271 = vpop.f32.mrf.mxu0
    %v3272 = vadd.f32 0.0, %v3271
    %v3273 = vpop.f32.mrf.mxu0
    %3274 = vmatprep.mubr.f32.mxu0 0.0
    %3275 = vmatmul.mubr.f32.gmra.mxu0 %v3203
    %v3276 = vpop.f32.mrf.mxu0
    %v3277 = vadd.f32 0.0, %v3276
    %v3278 = vpop.f32.mrf.mxu0
    %3279 = vdwg.mxu0
    %v3280 = vmul.f32 %v3272, %v3191
    %v3281 = vmul.f32 %v3277, %v3192
    %3282 = vrot.lane.b32.xlu0 %v2671, 104
    %v3283 = vpop.permute.xlu0 %3282
    %3284 = vrot.lane.b32.xlu0 %v2676, 104
    %v3285 = vpop.permute.xlu0 %3284
    %3286 = vrot.lane.b32.xlu0 %v2671, 72
    %v3287 = vpop.permute.xlu0 %3286
    %3288 = vrot.lane.b32.xlu0 %v2676, 72
    %v3289 = vpop.permute.xlu0 %3288
    %v3290 = vsel %vm313, %v3283, 0
    %v3292 = vsel %vm313, %v3285, 0
    %v3294 = vsel %vm313, %v3287, 0
    %v3296 = vsel %vm313, %v3289, 0
    %3298 = vmatprep.subr.mxu0 0.0
    %3299 = vmatpush1.xpose.msra.mxu0 0.0
    %3300 = vmatprep.subr.mxu0 0.0
    %3301 = vmatpush1.xpose.msra.mxu0 0.0
    %3302 = vmatprep.subr.mxu0 0.0
    %3303 = vmatpush1.xpose.msra.mxu0 0.0
    %3304 = vmatprep.subr.mxu0 0.0
    %3305 = vmatpush1.xpose.msra.mxu0 0.0
    %3306 = vmatprep.subr.mxu0 0.0
    %3307 = vmatpush1.xpose.msra.mxu0 0.0
    %3308 = vmatprep.subr.mxu0 0.0
    %3309 = vmatpush1.xpose.msra.mxu0 0.0
    %3310 = vmatprep.subr.mxu0 0.0
    %3311 = vmatpush1.xpose.msra.mxu0 0.0
    %3312 = vmatprep.subr.mxu0 0.0
    %3313 = vmatpush1.xpose.msra.mxu0 0.0
    %3314 = vmatprep.subr.mxu0 0.0
    %3315 = vmatpush1.xpose.msra.mxu0 0.0
    %3316 = vmatprep.subr.mxu0 0.0
    %3317 = vmatpush1.xpose.msra.mxu0 0.0
    %3318 = vmatprep.subr.mxu0 0.0
    %3319 = vmatpush1.xpose.msra.mxu0 0.0
    %3320 = vmatprep.subr.mxu0 0.0
    %3321 = vmatpush1.xpose.msra.mxu0 0.0
    %3322 = vmatprep.subr.mxu0 0.0
    %3323 = vmatpush1.xpose.msra.mxu0 0.0
    %3324 = vmatprep.subr.mxu0 0.0
    %3325 = vmatpush1.xpose.msra.mxu0 0.0
    %3326 = vmatprep.subr.mxu0 0.0
    %3327 = vmatpush1.xpose.msra.mxu0 %v3296
    %3328 = vmatprep.subr.mxu0 0.0
    %3329 = vmatpush1.xpose.msra.mxu0 %v3294
    %3330 = vmatprep.subr.mxu0 0.0
    %3331 = vmatpush2.xpose.msra.mxu0 0.0
    %3332 = vmatprep.subr.mxu0 0.0
    %3333 = vmatpush2.xpose.msra.mxu0 0.0
    %3334 = vmatprep.subr.mxu0 0.0
    %3335 = vmatpush2.xpose.msra.mxu0 0.0
    %3336 = vmatprep.subr.mxu0 0.0
    %3337 = vmatpush2.xpose.msra.mxu0 0.0
    %3338 = vmatprep.subr.mxu0 0.0
    %3339 = vmatpush2.xpose.msra.mxu0 0.0
    %3340 = vmatprep.subr.mxu0 0.0
    %3341 = vmatpush2.xpose.msra.mxu0 0.0
    %3342 = vmatprep.subr.mxu0 0.0
    %3343 = vmatpush2.xpose.msra.mxu0 0.0
    %3344 = vmatprep.subr.mxu0 0.0
    %3345 = vmatpush2.xpose.msra.mxu0 0.0
    %3346 = vmatprep.subr.mxu0 0.0
    %3347 = vmatpush2.xpose.msra.mxu0 0.0
    %3348 = vmatprep.subr.mxu0 0.0
    %3349 = vmatpush2.xpose.msra.mxu0 0.0
    %3350 = vmatprep.subr.mxu0 0.0
    %3351 = vmatpush2.xpose.msra.mxu0 0.0
    %3352 = vmatprep.subr.mxu0 0.0
    %3353 = vmatpush2.xpose.msra.mxu0 0.0
    %3354 = vmatprep.subr.mxu0 0.0
    %3355 = vmatpush2.xpose.msra.mxu0 0.0
    %3356 = vmatprep.subr.mxu0 0.0
    %3357 = vmatpush2.xpose.msra.mxu0 0.0
    %3358 = vmatprep.subr.mxu0 0.0
    %3359 = vmatpush2.xpose.msra.mxu0 0.0
    %3360 = vmatprep.subr.mxu0 0.0
    %3361 = vmatpush2.xpose.msra.mxu0 0.0
    %3362 = vmatprep.mubr.f32.mxu0 0.0
    %3363 = vmatmul.mubr.f32.gmra.mxu0 %v3290
    %v3364 = vpop.f32.mrf.mxu0
    %v3365 = vadd.f32 %v118, %v3364
    %v3366 = vpop.f32.mrf.mxu0
    %3367 = vmatprep.mubr.f32.mxu0 0.0
    %3368 = vmatmul.mubr.f32.gmra.mxu0 %v3292
    %v3369 = vpop.f32.mrf.mxu0
    %v3370 = vadd.f32 %v119, %v3369
    %v3371 = vpop.f32.mrf.mxu0
    %3372 = vdwg.mxu0
    %v3373 = vsel %vm397, %v3365, -inf
    %3374 = vmax.xlane.f32.xlu0 %v3373
    %v3375 = vpop.xlane.xlu0 %3374
    %v3376 = vsel %vm397, %v3370, -inf
    %3377 = vmax.xlane.f32.xlu0 %v3376
    %v3378 = vpop.xlane.xlu0 %3377
    %v3379 = vsub.f32 %v3365, %v3375
    %v3380 = vsub.f32 %v3370, %v3378
    %v3381 = vmul.f32 %v3379, 1.442695
    %v3382 = vpow.pop %v3381
    %v3383 = vmul.f32 %v3380, 1.442695
    %v3384 = vpow.pop %v3383
    %v3385 = vsel %vm397, %v3382, 0.0
    %3386 = vadd.xlane.f32.xlu0 %v3385
    %v3387 = vpop.xlane.xlu0 %3386
    %v3388 = vsel %vm397, %v3384, 0.0
    %3389 = vadd.xlane.f32.xlu0 %v3388
    %v3390 = vpop.xlane.xlu0 %3389
    %v3391 = vrcp.pop %v3387
    %v3392 = vrcp.pop %v3390
    %3393 = vrot.lane.b32.xlu0 %v2671, 40
    %v3394 = vpop.permute.xlu0 %3393
    %3395 = vrot.lane.b32.xlu0 %v2676, 40
    %v3396 = vpop.permute.xlu0 %3395
    %v3400 = vsel %vm397, %v3382, 0
    %v3403 = vsel %vm397, %v3384, 0
    %3405 = vmatprep.subr.mxu0 0.0
    %3406 = vmatpush1.msra.mxu0 0.0
    %3407 = vmatprep.subr.mxu0 0.0
    %3408 = vmatpush1.msra.mxu0 0.0
    %3409 = vmatprep.subr.mxu0 0.0
    %3410 = vmatpush1.msra.mxu0 0.0
    %3411 = vmatprep.subr.mxu0 0.0
    %3412 = vmatpush1.msra.mxu0 0.0
    %3413 = vmatprep.subr.mxu0 0.0
    %3414 = vmatpush1.msra.mxu0 0.0
    %3415 = vmatprep.subr.mxu0 0.0
    %3416 = vmatpush1.msra.mxu0 0.0
    %3417 = vmatprep.subr.mxu0 0.0
    %3418 = vmatpush1.msra.mxu0 0.0
    %3419 = vmatprep.subr.mxu0 0.0
    %3420 = vmatpush1.msra.mxu0 0.0
    %3421 = vmatprep.subr.mxu0 0.0
    %3422 = vmatpush1.msra.mxu0 0.0
    %3423 = vmatprep.subr.mxu0 0.0
    %3424 = vmatpush1.msra.mxu0 0.0
    %3425 = vmatprep.subr.mxu0 0.0
    %3426 = vmatpush1.msra.mxu0 0.0
    %3427 = vmatprep.subr.mxu0 0.0
    %3428 = vmatpush1.msra.mxu0 0.0
    %3429 = vmatprep.subr.mxu0 0.0
    %3430 = vmatpush1.msra.mxu0 0.0
    %3431 = vmatprep.subr.mxu0 0.0
    %3432 = vmatpush1.msra.mxu0 0.0
    %3433 = vmatprep.subr.mxu0 0.0
    %3434 = vmatpush1.msra.mxu0 %v3396
    %3435 = vmatprep.subr.mxu0 0.0
    %3436 = vmatpush1.msra.mxu0 %v3394
    %3437 = vmatprep.subr.mxu0 0.0
    %3438 = vmatpush2.msra.mxu0 0.0
    %3439 = vmatprep.subr.mxu0 0.0
    %3440 = vmatpush2.msra.mxu0 0.0
    %3441 = vmatprep.subr.mxu0 0.0
    %3442 = vmatpush2.msra.mxu0 0.0
    %3443 = vmatprep.subr.mxu0 0.0
    %3444 = vmatpush2.msra.mxu0 0.0
    %3445 = vmatprep.subr.mxu0 0.0
    %3446 = vmatpush2.msra.mxu0 0.0
    %3447 = vmatprep.subr.mxu0 0.0
    %3448 = vmatpush2.msra.mxu0 0.0
    %3449 = vmatprep.subr.mxu0 0.0
    %3450 = vmatpush2.msra.mxu0 0.0
    %3451 = vmatprep.subr.mxu0 0.0
    %3452 = vmatpush2.msra.mxu0 0.0
    %3453 = vmatprep.subr.mxu0 0.0
    %3454 = vmatpush2.msra.mxu0 0.0
    %3455 = vmatprep.subr.mxu0 0.0
    %3456 = vmatpush2.msra.mxu0 0.0
    %3457 = vmatprep.subr.mxu0 0.0
    %3458 = vmatpush2.msra.mxu0 0.0
    %3459 = vmatprep.subr.mxu0 0.0
    %3460 = vmatpush2.msra.mxu0 0.0
    %3461 = vmatprep.subr.mxu0 0.0
    %3462 = vmatpush2.msra.mxu0 0.0
    %3463 = vmatprep.subr.mxu0 0.0
    %3464 = vmatpush2.msra.mxu0 0.0
    %3465 = vmatprep.subr.mxu0 0.0
    %3466 = vmatpush2.msra.mxu0 0.0
    %3467 = vmatprep.subr.mxu0 0.0
    %3468 = vmatpush2.msra.mxu0 0.0
    %3469 = vmatprep.mubr.f32.mxu0 0.0
    %3470 = vmatmul.mubr.f32.gmra.mxu0 %v3400
    %v3471 = vpop.f32.mrf.mxu0
    %v3472 = vadd.f32 0.0, %v3471
    %v3473 = vpop.f32.mrf.mxu0
    %3474 = vmatprep.mubr.f32.mxu0 0.0
    %3475 = vmatmul.mubr.f32.gmra.mxu0 %v3403
    %v3476 = vpop.f32.mrf.mxu0
    %v3477 = vadd.f32 0.0, %v3476
    %v3478 = vpop.f32.mrf.mxu0
    %3479 = vdwg.mxu0
    %v3480 = vmul.f32 %v3472, %v3391
    %v3481 = vmul.f32 %v3477, %v3392
    %3484 = vrot.lane.b32.xlu0 %v3080, 8
    %v3485 = vpop.permute.xlu0 %3484
    %3486 = vrot.lane.b32.xlu0 %v3081, 8
    %v3487 = vpop.permute.xlu0 %3486
    %3492 = vrot.lane.b32.xlu0 %v3280, 16
    %v3493 = vpop.permute.xlu0 %3492
    %3494 = vrot.lane.b32.xlu0 %v3281, 16
    %v3495 = vpop.permute.xlu0 %3494
    %3500 = vrot.lane.b32.xlu0 %v3480, 24
    %v3501 = vpop.permute.xlu0 %3500
    %3502 = vrot.lane.b32.xlu0 %v3481, 24
    %v3503 = vpop.permute.xlu0 %3502
    %v3506 = vsel %vm313, %v2880, %v3485
    %v3507 = vsel %vm313, %v2881, %v3487
    %v3508 = vsel %vm397, %v3506, %v3493
    %v3509 = vsel %vm397, %v3507, %v3495
    %v3510 = vsel %vm1135, %v3508, %v3501
    %v3511 = vsel %vm1135, %v3509, %v3503
    %v3513 = vsel %vm135, %v3510, 0
    %v3516 = vsel %vm135, %v3511, 0
    %3518 = vmatprep.subr.mxu0 0.0
    %3519 = vmatpush1.msra.mxu0 0.0
    %3520 = vmatprep.subr.mxu0 0.0
    %3521 = vmatpush1.msra.mxu0 0.0
    %3522 = vmatprep.subr.mxu0 0.0
    %3523 = vmatpush1.msra.mxu0 0.0
    %3524 = vmatprep.subr.mxu0 0.0
    %3525 = vmatpush1.msra.mxu0 0.0
    %3526 = vmatprep.subr.mxu0 0.0
    %3527 = vmatpush1.msra.mxu0 0.0
    %3528 = vmatprep.subr.mxu0 0.0
    %3529 = vmatpush1.msra.mxu0 0.0
    %3530 = vmatprep.subr.mxu0 0.0
    %3531 = vmatpush1.msra.mxu0 0.0
    %3532 = vmatprep.subr.mxu0 0.0
    %3533 = vmatpush1.msra.mxu0 0.0
    %3534 = vmatprep.subr.mxu0 0.0
    %3535 = vmatpush1.msra.mxu0 0.0
    %3536 = vmatprep.subr.mxu0 0.0
    %3537 = vmatpush1.msra.mxu0 0.0
    %3538 = vmatprep.subr.mxu0 0.0
    %3539 = vmatpush1.msra.mxu0 0.0
    %3540 = vmatprep.subr.mxu0 0.0
    %3541 = vmatpush1.msra.mxu0 0.0
    %3542 = vmatprep.subr.mxu0 0.0
    %3543 = vmatpush1.msra.mxu0 %v2683
    %3544 = vmatprep.subr.mxu0 0.0
    %3545 = vmatpush1.msra.mxu0 %v2682
    %3546 = vmatprep.subr.mxu0 0.0
    %3547 = vmatpush1.msra.mxu0 %v2681
    %3548 = vmatprep.subr.mxu0 0.0
    %3549 = vmatpush1.msra.mxu0 %v2680
    %3550 = vmatprep.subr.mxu0 0.0
    %3551 = vmatpush2.msra.mxu0 0.0
    %3552 = vmatprep.subr.mxu0 0.0
    %3553 = vmatpush2.msra.mxu0 0.0
    %3554 = vmatprep.subr.mxu0 0.0
    %3555 = vmatpush2.msra.mxu0 0.0
    %3556 = vmatprep.subr.mxu0 0.0
    %3557 = vmatpush2.msra.mxu0 0.0
    %3558 = vmatprep.subr.mxu0 0.0
    %3559 = vmatpush2.msra.mxu0 0.0
    %3560 = vmatprep.subr.mxu0 0.0
    %3561 = vmatpush2.msra.mxu0 0.0
    %3562 = vmatprep.subr.mxu0 0.0
    %3563 = vmatpush2.msra.mxu0 0.0
    %3564 = vmatprep.subr.mxu0 0.0
    %3565 = vmatpush2.msra.mxu0 0.0
    %3566 = vmatprep.subr.mxu0 0.0
    %3567 = vmatpush2.msra.mxu0 0.0
    %3568 = vmatprep.subr.mxu0 0.0
    %3569 = vmatpush2.msra.mxu0 0.0
    %3570 = vmatprep.subr.mxu0 0.0
    %3571 = vmatpush2.msra.mxu0 0.0
    %3572 = vmatprep.subr.mxu0 0.0
    %3573 = vmatpush2.msra.mxu0 0.0
    %3574 = vmatprep.subr.mxu0 0.0
    %3575 = vmatpush2.msra.mxu0 0.0
    %3576 = vmatprep.subr.mxu0 0.0
    %3577 = vmatpush2.msra.mxu0 0.0
    %3578 = vmatprep.subr.mxu0 0.0
    %3579 = vmatpush2.msra.mxu0 0.0
    %3580 = vmatprep.subr.mxu0 0.0
    %3581 = vmatpush2.msra.mxu0 0.0
    %3582 = vmatprep.mubr.f32.mxu0 0.0
    %3583 = vmatmul.mubr.f32.gmra.mxu0 %v3513
    %v3584 = vpop.f32.mrf.mxu0
    %v3585 = vadd.f32 0.0, %v3584
    %v3586 = vpop.f32.mrf.mxu0
    %3587 = vmatprep.mubr.f32.mxu0 0.0
    %3588 = vmatmul.mubr.f32.gmra.mxu0 %v3516
    %v3589 = vpop.f32.mrf.mxu0
    %v3590 = vadd.f32 0.0, %v3589
    %v3591 = vpop.f32.mrf.mxu0
    %3592 = vdwg.mxu0
    %v3593 = vadd.f32 %v2591, %v3585
    %v3594 = vadd.f32 %v2592, %v3590
    %s3595 = scalar_lea.vmem %s9, 48
    %v3596 = vld [vmem:[%s3595] sm:$0xff]
    %s3597 = scalar_lea.vmem %s9, 56
    %v3598 = vld [vmem:[%s3597] sm:$0xff]
    %v3599 = vmul.f32 %v3593, %v3593
    %v3600 = vmul.f32 %v3594, %v3594
    %v3601 = vsel %vm135, %v3593, 0.0
    %3602 = vadd.xlane.f32.xlu0 %v3601
    %v3603 = vpop.xlane.xlu0 %3602
    %v3604 = vsel %vm135, %v3594, 0.0
    %3605 = vadd.xlane.f32.xlu0 %v3604
    %v3606 = vpop.xlane.xlu0 %3605
    %v3607 = vsel %vm135, %v3599, 0.0
    %3608 = vadd.xlane.f32.xlu0 %v3607
    %v3609 = vpop.xlane.xlu0 %3608
    %v3610 = vsel %vm135, %v3600, 0.0
    %3611 = vadd.xlane.f32.xlu0 %v3610
    %v3612 = vpop.xlane.xlu0 %3611
    %v3613 = vrot.slane %v3603, 4
    %v3614 = vadd.f32 %v3603, %v3613
    %v3615 = vrot.slane %v3614, 2
    %v3616 = vadd.f32 %v3614, %v3615
    %v3617 = vrot.slane %v3616, 1
    %v3618 = vadd.f32 %v3616, %v3617
    %v3619 = vrot.slane %v3606, 4
    %v3620 = vadd.f32 %v3606, %v3619
    %v3621 = vrot.slane %v3620, 2
    %v3622 = vadd.f32 %v3620, %v3621
    %v3623 = vrot.slane %v3622, 1
    %v3624 = vadd.f32 %v3622, %v3623
    %v3625 = vrot.slane %v3609, 4
    %v3626 = vadd.f32 %v3609, %v3625
    %v3627 = vrot.slane %v3626, 2
    %v3628 = vadd.f32 %v3626, %v3627
    %v3629 = vrot.slane %v3628, 1
    %v3630 = vadd.f32 %v3628, %v3629
    %v3631 = vrot.slane %v3612, 4
    %v3632 = vadd.f32 %v3612, %v3631
    %v3633 = vrot.slane %v3632, 2
    %v3634 = vadd.f32 %v3632, %v3633
    %v3635 = vrot.slane %v3634, 1
    %v3636 = vadd.f32 %v3634, %v3635
    %v3637 = vmul.f32 %v3618, %v1262
    %v3638 = vmul.f32 %v3624, %v1262
    %v3639 = vmul.f32 %v3637, 256.0
    %v3640 = vmul.f32 %v3638, 256.0
    %v3641 = vmul.f32 %v3639, %v3637
    %v3642 = vmul.f32 %v3640, %v3638
    %v3643 = vsub.f32 %v3630, %v3641
    %v3644 = vsub.f32 %v3636, %v3642
    %v3645 = vmul.f32 %v3643, %v1271
    %v3646 = vmul.f32 %v3644, %v1271
    %v3647 = vadd.f32 %v3645, 1e-05
    %v3648 = vadd.f32 %v3646, 1e-05
    %v3649 = vrsqrt.pop %v3647
    %v3650 = vrsqrt.pop %v3648
    %v3651 = vsub.f32 %v3593, %v3637
    %v3652 = vsub.f32 %v3594, %v3638
    %v3653 = vmul.f32 %v3651, %v3649
    %v3654 = vmul.f32 %v3652, %v3650
    %v3655 = vmul.f32 %v3653, %v3596
    %v3656 = vmul.f32 %v3654, %v3596
    %v3657 = vadd.f32 %v3655, %v3598
    %v3658 = vadd.f32 %v3656, %v3598
    %s3659 = scalar_lea.vmem %s6, 96
    %v3660 = vld [vmem:[%s3659] sm:$0xff]
    %v3661 = vld [vmem:[%s3659 + $0x8] sm:$0xff]
    %v3662 = vld [vmem:[%s3659 + $0x10] sm:$0xff]
    %v3663 = vld [vmem:[%s3659 + $0x18] sm:$0xff]
    %v3665 = vsel %vm135, %v3657, 0
    %v3668 = vsel %vm135, %v3658, 0
    %3670 = vmatprep.subr.mxu0 0.0
    %3671 = vmatpush1.msra.mxu0 0.0
    %3672 = vmatprep.subr.mxu0 0.0
    %3673 = vmatpush1.msra.mxu0 0.0
    %3674 = vmatprep.subr.mxu0 0.0
    %3675 = vmatpush1.msra.mxu0 0.0
    %3676 = vmatprep.subr.mxu0 0.0
    %3677 = vmatpush1.msra.mxu0 0.0
    %3678 = vmatprep.subr.mxu0 0.0
    %3679 = vmatpush1.msra.mxu0 0.0
    %3680 = vmatprep.subr.mxu0 0.0
    %3681 = vmatpush1.msra.mxu0 0.0
    %3682 = vmatprep.subr.mxu0 0.0
    %3683 = vmatpush1.msra.mxu0 0.0
    %3684 = vmatprep.subr.mxu0 0.0
    %3685 = vmatpush1.msra.mxu0 0.0
    %3686 = vmatprep.subr.mxu0 0.0
    %3687 = vmatpush1.msra.mxu0 0.0
    %3688 = vmatprep.subr.mxu0 0.0
    %3689 = vmatpush1.msra.mxu0 0.0
    %3690 = vmatprep.subr.mxu0 0.0
    %3691 = vmatpush1.msra.mxu0 0.0
    %3692 = vmatprep.subr.mxu0 0.0
    %3693 = vmatpush1.msra.mxu0 0.0
    %3694 = vmatprep.subr.mxu0 0.0
    %3695 = vmatpush1.msra.mxu0 %v3663
    %3696 = vmatprep.subr.mxu0 0.0
    %3697 = vmatpush1.msra.mxu0 %v3662
    %3698 = vmatprep.subr.mxu0 0.0
    %3699 = vmatpush1.msra.mxu0 %v3661
    %3700 = vmatprep.subr.mxu0 0.0
    %3701 = vmatpush1.msra.mxu0 %v3660
    %3702 = vmatprep.subr.mxu0 0.0
    %3703 = vmatpush2.msra.mxu0 0.0
    %3704 = vmatprep.subr.mxu0 0.0
    %3705 = vmatpush2.msra.mxu0 0.0
    %3706 = vmatprep.subr.mxu0 0.0
    %3707 = vmatpush2.msra.mxu0 0.0
    %3708 = vmatprep.subr.mxu0 0.0
    %3709 = vmatpush2.msra.mxu0 0.0
    %3710 = vmatprep.subr.mxu0 0.0
    %3711 = vmatpush2.msra.mxu0 0.0
    %3712 = vmatprep.subr.mxu0 0.0
    %3713 = vmatpush2.msra.mxu0 0.0
    %3714 = vmatprep.subr.mxu0 0.0
    %3715 = vmatpush2.msra.mxu0 0.0
    %3716 = vmatprep.subr.mxu0 0.0
    %3717 = vmatpush2.msra.mxu0 0.0
    %3718 = vmatprep.subr.mxu0 0.0
    %3719 = vmatpush2.msra.mxu0 0.0
    %3720 = vmatprep.subr.mxu0 0.0
    %3721 = vmatpush2.msra.mxu0 0.0
    %3722 = vmatprep.subr.mxu0 0.0
    %3723 = vmatpush2.msra.mxu0 0.0
    %3724 = vmatprep.subr.mxu0 0.0
    %3725 = vmatpush2.msra.mxu0 0.0
    %3726 = vmatprep.subr.mxu0 0.0
    %3727 = vmatpush2.msra.mxu0 0.0
    %3728 = vmatprep.subr.mxu0 0.0
    %3729 = vmatpush2.msra.mxu0 0.0
    %3730 = vmatprep.subr.mxu0 0.0
    %3731 = vmatpush2.msra.mxu0 0.0
    %3732 = vmatprep.subr.mxu0 0.0
    %3733 = vmatpush2.msra.mxu0 0.0
    %3734 = vmatprep.mubr.f32.mxu0 0.0
    %3735 = vmatmul.mubr.f32.gmra.mxu0 %v3665
    %v3736 = vpop.f32.mrf.mxu0
    %v3737 = vadd.f32 0.0, %v3736
    %v3738 = vpop.f32.mrf.mxu0
    %3739 = vmatprep.mubr.f32.mxu0 0.0
    %3740 = vmatmul.mubr.f32.gmra.mxu0 %v3668
    %v3741 = vpop.f32.mrf.mxu0
    %v3742 = vadd.f32 0.0, %v3741
    %v3743 = vpop.f32.mrf.mxu0
    %3744 = vdwg.mxu0
    %s3745 = scalar_lea.vmem %s6, 160
    %v3746 = vld [vmem:[%s3745] sm:$0xff]
    %v3747 = vld [vmem:[%s3745 + $0x8] sm:$0xff]
    %v3748 = vld [vmem:[%s3745 + $0x10] sm:$0xff]
    %v3749 = vld [vmem:[%s3745 + $0x18] sm:$0xff]
    %3750 = vrot.lane.b32.xlu0 %v209, 64
    %v3751 = vpop.permute.xlu0 %3750
    %3752 = vrot.lane.b32.xlu0 %v214, 64
    %v3753 = vpop.permute.xlu0 %3752
    %v3755 = vsel %vm313, %v3737, 0
    %v3758 = vsel %vm313, %v3742, 0
    %v3760 = vsel %vm313, %v3751, 0
    %v3762 = vsel %vm313, %v3753, 0
    %3764 = vmatprep.subr.mxu0 0.0
    %3765 = vmatpush1.xpose.msra.mxu0 0.0
    %3766 = vmatprep.subr.mxu0 0.0
    %3767 = vmatpush1.xpose.msra.mxu0 0.0
    %3768 = vmatprep.subr.mxu0 0.0
    %3769 = vmatpush1.xpose.msra.mxu0 0.0
    %3770 = vmatprep.subr.mxu0 0.0
    %3771 = vmatpush1.xpose.msra.mxu0 0.0
    %3772 = vmatprep.subr.mxu0 0.0
    %3773 = vmatpush1.xpose.msra.mxu0 0.0
    %3774 = vmatprep.subr.mxu0 0.0
    %3775 = vmatpush1.xpose.msra.mxu0 0.0
    %3776 = vmatprep.subr.mxu0 0.0
    %3777 = vmatpush1.xpose.msra.mxu0 0.0
    %3778 = vmatprep.subr.mxu0 0.0
    %3779 = vmatpush1.xpose.msra.mxu0 0.0
    %3780 = vmatprep.subr.mxu0 0.0
    %3781 = vmatpush1.xpose.msra.mxu0 0.0
    %3782 = vmatprep.subr.mxu0 0.0
    %3783 = vmatpush1.xpose.msra.mxu0 0.0
    %3784 = vmatprep.subr.mxu0 0.0
    %3785 = vmatpush1.xpose.msra.mxu0 0.0
    %3786 = vmatprep.subr.mxu0 0.0
    %3787 = vmatpush1.xpose.msra.mxu0 0.0
    %3788 = vmatprep.subr.mxu0 0.0
    %3789 = vmatpush1.xpose.msra.mxu0 0.0
    %3790 = vmatprep.subr.mxu0 0.0
    %3791 = vmatpush1.xpose.msra.mxu0 0.0
    %3792 = vmatprep.subr.mxu0 0.0
    %3793 = vmatpush1.xpose.msra.mxu0 %v3762
    %3794 = vmatprep.subr.mxu0 0.0
    %3795 = vmatpush1.xpose.msra.mxu0 %v3760
    %3796 = vmatprep.subr.mxu0 0.0
    %3797 = vmatpush2.xpose.msra.mxu0 0.0
    %3798 = vmatprep.subr.mxu0 0.0
    %3799 = vmatpush2.xpose.msra.mxu0 0.0
    %3800 = vmatprep.subr.mxu0 0.0
    %3801 = vmatpush2.xpose.msra.mxu0 0.0
    %3802 = vmatprep.subr.mxu0 0.0
    %3803 = vmatpush2.xpose.msra.mxu0 0.0
    %3804 = vmatprep.subr.mxu0 0.0
    %3805 = vmatpush2.xpose.msra.mxu0 0.0
    %3806 = vmatprep.subr.mxu0 0.0
    %3807 = vmatpush2.xpose.msra.mxu0 0.0
    %3808 = vmatprep.subr.mxu0 0.0
    %3809 = vmatpush2.xpose.msra.mxu0 0.0
    %3810 = vmatprep.subr.mxu0 0.0
    %3811 = vmatpush2.xpose.msra.mxu0 0.0
    %3812 = vmatprep.subr.mxu0 0.0
    %3813 = vmatpush2.xpose.msra.mxu0 0.0
    %3814 = vmatprep.subr.mxu0 0.0
    %3815 = vmatpush2.xpose.msra.mxu0 0.0
    %3816 = vmatprep.subr.mxu0 0.0
    %3817 = vmatpush2.xpose.msra.mxu0 0.0
    %3818 = vmatprep.subr.mxu0 0.0
    %3819 = vmatpush2.xpose.msra.mxu0 0.0
    %3820 = vmatprep.subr.mxu0 0.0
    %3821 = vmatpush2.xpose.msra.mxu0 0.0
    %3822 = vmatprep.subr.mxu0 0.0
    %3823 = vmatpush2.xpose.msra.mxu0 0.0
    %3824 = vmatprep.subr.mxu0 0.0
    %3825 = vmatpush2.xpose.msra.mxu0 0.0
    %3826 = vmatprep.subr.mxu0 0.0
    %3827 = vmatpush2.xpose.msra.mxu0 0.0
    %3828 = vmatprep.mubr.f32.mxu0 0.0
    %3829 = vmatmul.mubr.f32.gmra.mxu0 %v3755
    %v3830 = vpop.f32.mrf.mxu0
    %v3831 = vadd.f32 %v121, %v3830
    %v3832 = vpop.f32.mrf.mxu0
    %3833 = vmatprep.mubr.f32.mxu0 0.0
    %3834 = vmatmul.mubr.f32.gmra.mxu0 %v3758
    %v3835 = vpop.f32.mrf.mxu0
    %v3836 = vadd.f32 %v122, %v3835
    %v3837 = vpop.f32.mrf.mxu0
    %3838 = vdwg.mxu0
    %v3839 = vsel %vm397, %v3831, -inf
    %3840 = vmax.xlane.f32.xlu0 %v3839
    %v3841 = vpop.xlane.xlu0 %3840
    %v3842 = vsel %vm397, %v3836, -inf
    %3843 = vmax.xlane.f32.xlu0 %v3842
    %v3844 = vpop.xlane.xlu0 %3843
    %v3845 = vsub.f32 %v3831, %v3841
    %v3846 = vsub.f32 %v3836, %v3844
    %v3847 = vmul.f32 %v3845, 1.442695
    %v3848 = vpow.pop %v3847
    %v3849 = vmul.f32 %v3846, 1.442695
    %v3850 = vpow.pop %v3849
    %v3851 = vsel %vm397, %v3848, 0.0
    %3852 = vadd.xlane.f32.xlu0 %v3851
    %v3853 = vpop.xlane.xlu0 %3852
    %v3854 = vsel %vm397, %v3850, 0.0
    %3855 = vadd.xlane.f32.xlu0 %v3854
    %v3856 = vpop.xlane.xlu0 %3855
    %v3857 = vrcp.pop %v3853
    %v3858 = vrcp.pop %v3856
    %3859 = vrot.lane.b32.xlu0 %v209, 32
    %v3860 = vpop.permute.xlu0 %3859
    %3861 = vrot.lane.b32.xlu0 %v214, 32
    %v3862 = vpop.permute.xlu0 %3861
    %v3866 = vsel %vm397, %v3848, 0
    %v3869 = vsel %vm397, %v3850, 0
    %3871 = vmatprep.subr.mxu0 0.0
    %3872 = vmatpush1.msra.mxu0 0.0
    %3873 = vmatprep.subr.mxu0 0.0
    %3874 = vmatpush1.msra.mxu0 0.0
    %3875 = vmatprep.subr.mxu0 0.0
    %3876 = vmatpush1.msra.mxu0 0.0
    %3877 = vmatprep.subr.mxu0 0.0
    %3878 = vmatpush1.msra.mxu0 0.0
    %3879 = vmatprep.subr.mxu0 0.0
    %3880 = vmatpush1.msra.mxu0 0.0
    %3881 = vmatprep.subr.mxu0 0.0
    %3882 = vmatpush1.msra.mxu0 0.0
    %3883 = vmatprep.subr.mxu0 0.0
    %3884 = vmatpush1.msra.mxu0 0.0
    %3885 = vmatprep.subr.mxu0 0.0
    %3886 = vmatpush1.msra.mxu0 0.0
    %3887 = vmatprep.subr.mxu0 0.0
    %3888 = vmatpush1.msra.mxu0 0.0
    %3889 = vmatprep.subr.mxu0 0.0
    %3890 = vmatpush1.msra.mxu0 0.0
    %3891 = vmatprep.subr.mxu0 0.0
    %3892 = vmatpush1.msra.mxu0 0.0
    %3893 = vmatprep.subr.mxu0 0.0
    %3894 = vmatpush1.msra.mxu0 0.0
    %3895 = vmatprep.subr.mxu0 0.0
    %3896 = vmatpush1.msra.mxu0 0.0
    %3897 = vmatprep.subr.mxu0 0.0
    %3898 = vmatpush1.msra.mxu0 0.0
    %3899 = vmatprep.subr.mxu0 0.0
    %3900 = vmatpush1.msra.mxu0 %v3862
    %3901 = vmatprep.subr.mxu0 0.0
    %3902 = vmatpush1.msra.mxu0 %v3860
    %3903 = vmatprep.subr.mxu0 0.0
    %3904 = vmatpush2.msra.mxu0 0.0
    %3905 = vmatprep.subr.mxu0 0.0
    %3906 = vmatpush2.msra.mxu0 0.0
    %3907 = vmatprep.subr.mxu0 0.0
    %3908 = vmatpush2.msra.mxu0 0.0
    %3909 = vmatprep.subr.mxu0 0.0
    %3910 = vmatpush2.msra.mxu0 0.0
    %3911 = vmatprep.subr.mxu0 0.0
    %3912 = vmatpush2.msra.mxu0 0.0
    %3913 = vmatprep.subr.mxu0 0.0
    %3914 = vmatpush2.msra.mxu0 0.0
    %3915 = vmatprep.subr.mxu0 0.0
    %3916 = vmatpush2.msra.mxu0 0.0
    %3917 = vmatprep.subr.mxu0 0.0
    %3918 = vmatpush2.msra.mxu0 0.0
    %3919 = vmatprep.subr.mxu0 0.0
    %3920 = vmatpush2.msra.mxu0 0.0
    %3921 = vmatprep.subr.mxu0 0.0
    %3922 = vmatpush2.msra.mxu0 0.0
    %3923 = vmatprep.subr.mxu0 0.0
    %3924 = vmatpush2.msra.mxu0 0.0
    %3925 = vmatprep.subr.mxu0 0.0
    %3926 = vmatpush2.msra.mxu0 0.0
    %3927 = vmatprep.subr.mxu0 0.0
    %3928 = vmatpush2.msra.mxu0 0.0
    %3929 = vmatprep.subr.mxu0 0.0
    %3930 = vmatpush2.msra.mxu0 0.0
    %3931 = vmatprep.subr.mxu0 0.0
    %3932 = vmatpush2.msra.mxu0 0.0
    %3933 = vmatprep.subr.mxu0 0.0
    %3934 = vmatpush2.msra.mxu0 0.0
    %3935 = vmatprep.mubr.f32.mxu0 0.0
    %3936 = vmatmul.mubr.f32.gmra.mxu0 %v3866
    %v3937 = vpop.f32.mrf.mxu0
    %v3938 = vadd.f32 0.0, %v3937
    %v3939 = vpop.f32.mrf.mxu0
    %3940 = vmatprep.mubr.f32.mxu0 0.0
    %3941 = vmatmul.mubr.f32.gmra.mxu0 %v3869
    %v3942 = vpop.f32.mrf.mxu0
    %v3943 = vadd.f32 0.0, %v3942
    %v3944 = vpop.f32.mrf.mxu0
    %3945 = vdwg.mxu0
    %v3946 = vmul.f32 %v3938, %v3857
    %v3947 = vmul.f32 %v3943, %v3858
    %3948 = vrot.lane.b32.xlu0 %v3737, 120
    %v3949 = vpop.permute.xlu0 %3948
    %3950 = vrot.lane.b32.xlu0 %v3742, 120
    %v3951 = vpop.permute.xlu0 %3950
    %3952 = vrot.lane.b32.xlu0 %v209, 56
    %v3953 = vpop.permute.xlu0 %3952
    %3954 = vrot.lane.b32.xlu0 %v214, 56
    %v3955 = vpop.permute.xlu0 %3954
    %v3956 = vsel %vm313, %v3949, 0
    %v3958 = vsel %vm313, %v3951, 0
    %v3960 = vsel %vm313, %v3953, 0
    %v3962 = vsel %vm313, %v3955, 0
    %3964 = vmatprep.subr.mxu0 0.0
    %3965 = vmatpush1.xpose.msra.mxu0 0.0
    %3966 = vmatprep.subr.mxu0 0.0
    %3967 = vmatpush1.xpose.msra.mxu0 0.0
    %3968 = vmatprep.subr.mxu0 0.0
    %3969 = vmatpush1.xpose.msra.mxu0 0.0
    %3970 = vmatprep.subr.mxu0 0.0
    %3971 = vmatpush1.xpose.msra.mxu0 0.0
    %3972 = vmatprep.subr.mxu0 0.0
    %3973 = vmatpush1.xpose.msra.mxu0 0.0
    %3974 = vmatprep.subr.mxu0 0.0
    %3975 = vmatpush1.xpose.msra.mxu0 0.0
    %3976 = vmatprep.subr.mxu0 0.0
    %3977 = vmatpush1.xpose.msra.mxu0 0.0
    %3978 = vmatprep.subr.mxu0 0.0
    %3979 = vmatpush1.xpose.msra.mxu0 0.0
    %3980 = vmatprep.subr.mxu0 0.0
    %3981 = vmatpush1.xpose.msra.mxu0 0.0
    %3982 = vmatprep.subr.mxu0 0.0
    %3983 = vmatpush1.xpose.msra.mxu0 0.0
    %3984 = vmatprep.subr.mxu0 0.0
    %3985 = vmatpush1.xpose.msra.mxu0 0.0
    %3986 = vmatprep.subr.mxu0 0.0
    %3987 = vmatpush1.xpose.msra.mxu0 0.0
    %3988 = vmatprep.subr.mxu0 0.0
    %3989 = vmatpush1.xpose.msra.mxu0 0.0
    %3990 = vmatprep.subr.mxu0 0.0
    %3991 = vmatpush1.xpose.msra.mxu0 0.0
    %3992 = vmatprep.subr.mxu0 0.0
    %3993 = vmatpush1.xpose.msra.mxu0 %v3962
    %3994 = vmatprep.subr.mxu0 0.0
    %3995 = vmatpush1.xpose.msra.mxu0 %v3960
    %3996 = vmatprep.subr.mxu0 0.0
    %3997 = vmatpush2.xpose.msra.mxu0 0.0
    %3998 = vmatprep.subr.mxu0 0.0
    %3999 = vmatpush2.xpose.msra.mxu0 0.0
    %4000 = vmatprep.subr.mxu0 0.0
    %4001 = vmatpush2.xpose.msra.mxu0 0.0
    %4002 = vmatprep.subr.mxu0 0.0
    %4003 = vmatpush2.xpose.msra.mxu0 0.0
    %4004 = vmatprep.subr.mxu0 0.0
    %4005 = vmatpush2.xpose.msra.mxu0 0.0
    %4006 = vmatprep.subr.mxu0 0.0
    %4007 = vmatpush2.xpose.msra.mxu0 0.0
    %4008 = vmatprep.subr.mxu0 0.0
    %4009 = vmatpush2.xpose.msra.mxu0 0.0
    %4010 = vmatprep.subr.mxu0 0.0
    %4011 = vmatpush2.xpose.msra.mxu0 0.0
    %4012 = vmatprep.subr.mxu0 0.0
    %4013 = vmatpush2.xpose.msra.mxu0 0.0
    %4014 = vmatprep.subr.mxu0 0.0
    %4015 = vmatpush2.xpose.msra.mxu0 0.0
    %4016 = vmatprep.subr.mxu0 0.0
    %4017 = vmatpush2.xpose.msra.mxu0 0.0
    %4018 = vmatprep.subr.mxu0 0.0
    %4019 = vmatpush2.xpose.msra.mxu0 0.0
    %4020 = vmatprep.subr.mxu0 0.0
    %4021 = vmatpush2.xpose.msra.mxu0 0.0
    %4022 = vmatprep.subr.mxu0 0.0
    %4023 = vmatpush2.xpose.msra.mxu0 0.0
    %4024 = vmatprep.subr.mxu0 0.0
    %4025 = vmatpush2.xpose.msra.mxu0 0.0
    %4026 = vmatprep.subr.mxu0 0.0
    %4027 = vmatpush2.xpose.msra.mxu0 0.0
    %4028 = vmatprep.mubr.f32.mxu0 0.0
    %4029 = vmatmul.mubr.f32.gmra.mxu0 %v3956
    %v4030 = vpop.f32.mrf.mxu0
    %v4031 = vadd.f32 %v121, %v4030
    %v4032 = vpop.f32.mrf.mxu0
    %4033 = vmatprep.mubr.f32.mxu0 0.0
    %4034 = vmatmul.mubr.f32.gmra.mxu0 %v3958
    %v4035 = vpop.f32.mrf.mxu0
    %v4036 = vadd.f32 %v122, %v4035
    %v4037 = vpop.f32.mrf.mxu0
    %4038 = vdwg.mxu0
    %v4039 = vsel %vm397, %v4031, -inf
    %4040 = vmax.xlane.f32.xlu0 %v4039
    %v4041 = vpop.xlane.xlu0 %4040
    %v4042 = vsel %vm397, %v4036, -inf
    %4043 = vmax.xlane.f32.xlu0 %v4042
    %v4044 = vpop.xlane.xlu0 %4043
    %v4045 = vsub.f32 %v4031, %v4041
    %v4046 = vsub.f32 %v4036, %v4044
    %v4047 = vmul.f32 %v4045, 1.442695
    %v4048 = vpow.pop %v4047
    %v4049 = vmul.f32 %v4046, 1.442695
    %v4050 = vpow.pop %v4049
    %v4051 = vsel %vm397, %v4048, 0.0
    %4052 = vadd.xlane.f32.xlu0 %v4051
    %v4053 = vpop.xlane.xlu0 %4052
    %v4054 = vsel %vm397, %v4050, 0.0
    %4055 = vadd.xlane.f32.xlu0 %v4054
    %v4056 = vpop.xlane.xlu0 %4055
    %v4057 = vrcp.pop %v4053
    %v4058 = vrcp.pop %v4056
    %4059 = vrot.lane.b32.xlu0 %v209, 24
    %v4060 = vpop.permute.xlu0 %4059
    %4061 = vrot.lane.b32.xlu0 %v214, 24
    %v4062 = vpop.permute.xlu0 %4061
    %v4066 = vsel %vm397, %v4048, 0
    %v4069 = vsel %vm397, %v4050, 0
    %4071 = vmatprep.subr.mxu0 0.0
    %4072 = vmatpush1.msra.mxu0 0.0
    %4073 = vmatprep.subr.mxu0 0.0
    %4074 = vmatpush1.msra.mxu0 0.0
    %4075 = vmatprep.subr.mxu0 0.0
    %4076 = vmatpush1.msra.mxu0 0.0
    %4077 = vmatprep.subr.mxu0 0.0
    %4078 = vmatpush1.msra.mxu0 0.0
    %4079 = vmatprep.subr.mxu0 0.0
    %4080 = vmatpush1.msra.mxu0 0.0
    %4081 = vmatprep.subr.mxu0 0.0
    %4082 = vmatpush1.msra.mxu0 0.0
    %4083 = vmatprep.subr.mxu0 0.0
    %4084 = vmatpush1.msra.mxu0 0.0
    %4085 = vmatprep.subr.mxu0 0.0
    %4086 = vmatpush1.msra.mxu0 0.0
    %4087 = vmatprep.subr.mxu0 0.0
    %4088 = vmatpush1.msra.mxu0 0.0
    %4089 = vmatprep.subr.mxu0 0.0
    %4090 = vmatpush1.msra.mxu0 0.0
    %4091 = vmatprep.subr.mxu0 0.0
    %4092 = vmatpush1.msra.mxu0 0.0
    %4093 = vmatprep.subr.mxu0 0.0
    %4094 = vmatpush1.msra.mxu0 0.0
    %4095 = vmatprep.subr.mxu0 0.0
    %4096 = vmatpush1.msra.mxu0 0.0
    %4097 = vmatprep.subr.mxu0 0.0
    %4098 = vmatpush1.msra.mxu0 0.0
    %4099 = vmatprep.subr.mxu0 0.0
    %4100 = vmatpush1.msra.mxu0 %v4062
    %4101 = vmatprep.subr.mxu0 0.0
    %4102 = vmatpush1.msra.mxu0 %v4060
    %4103 = vmatprep.subr.mxu0 0.0
    %4104 = vmatpush2.msra.mxu0 0.0
    %4105 = vmatprep.subr.mxu0 0.0
    %4106 = vmatpush2.msra.mxu0 0.0
    %4107 = vmatprep.subr.mxu0 0.0
    %4108 = vmatpush2.msra.mxu0 0.0
    %4109 = vmatprep.subr.mxu0 0.0
    %4110 = vmatpush2.msra.mxu0 0.0
    %4111 = vmatprep.subr.mxu0 0.0
    %4112 = vmatpush2.msra.mxu0 0.0
    %4113 = vmatprep.subr.mxu0 0.0
    %4114 = vmatpush2.msra.mxu0 0.0
    %4115 = vmatprep.subr.mxu0 0.0
    %4116 = vmatpush2.msra.mxu0 0.0
    %4117 = vmatprep.subr.mxu0 0.0
    %4118 = vmatpush2.msra.mxu0 0.0
    %4119 = vmatprep.subr.mxu0 0.0
    %4120 = vmatpush2.msra.mxu0 0.0
    %4121 = vmatprep.subr.mxu0 0.0
    %4122 = vmatpush2.msra.mxu0 0.0
    %4123 = vmatprep.subr.mxu0 0.0
    %4124 = vmatpush2.msra.mxu0 0.0
    %4125 = vmatprep.subr.mxu0 0.0
    %4126 = vmatpush2.msra.mxu0 0.0
    %4127 = vmatprep.subr.mxu0 0.0
    %4128 = vmatpush2.msra.mxu0 0.0
    %4129 = vmatprep.subr.mxu0 0.0
    %4130 = vmatpush2.msra.mxu0 0.0
    %4131 = vmatprep.subr.mxu0 0.0
    %4132 = vmatpush2.msra.mxu0 0.0
    %4133 = vmatprep.subr.mxu0 0.0
    %4134 = vmatpush2.msra.mxu0 0.0
    %4135 = vmatprep.mubr.f32.mxu0 0.0
    %4136 = vmatmul.mubr.f32.gmra.mxu0 %v4066
    %v4137 = vpop.f32.mrf.mxu0
    %v4138 = vadd.f32 0.0, %v4137
    %v4139 = vpop.f32.mrf.mxu0
    %4140 = vmatprep.mubr.f32.mxu0 0.0
    %4141 = vmatmul.mubr.f32.gmra.mxu0 %v4069
    %v4142 = vpop.f32.mrf.mxu0
    %v4143 = vadd.f32 0.0, %v4142
    %v4144 = vpop.f32.mrf.mxu0
    %4145 = vdwg.mxu0
    %v4146 = vmul.f32 %v4138, %v4057
    %v4147 = vmul.f32 %v4143, %v4058
    %4148 = vrot.lane.b32.xlu0 %v3737, 112
    %v4149 = vpop.permute.xlu0 %4148
    %4150 = vrot.lane.b32.xlu0 %v3742, 112
    %v4151 = vpop.permute.xlu0 %4150
    %4152 = vrot.lane.b32.xlu0 %v209, 48
    %v4153 = vpop.permute.xlu0 %4152
    %4154 = vrot.lane.b32.xlu0 %v214, 48
    %v4155 = vpop.permute.xlu0 %4154
    %v4156 = vsel %vm313, %v4149, 0
    %v4158 = vsel %vm313, %v4151, 0
    %v4160 = vsel %vm313, %v4153, 0
    %v4162 = vsel %vm313, %v4155, 0
    %4164 = vmatprep.subr.mxu0 0.0
    %4165 = vmatpush1.xpose.msra.mxu0 0.0
    %4166 = vmatprep.subr.mxu0 0.0
    %4167 = vmatpush1.xpose.msra.mxu0 0.0
    %4168 = vmatprep.subr.mxu0 0.0
    %4169 = vmatpush1.xpose.msra.mxu0 0.0
    %4170 = vmatprep.subr.mxu0 0.0
    %4171 = vmatpush1.xpose.msra.mxu0 0.0
    %4172 = vmatprep.subr.mxu0 0.0
    %4173 = vmatpush1.xpose.msra.mxu0 0.0
    %4174 = vmatprep.subr.mxu0 0.0
    %4175 = vmatpush1.xpose.msra.mxu0 0.0
    %4176 = vmatprep.subr.mxu0 0.0
    %4177 = vmatpush1.xpose.msra.mxu0 0.0
    %4178 = vmatprep.subr.mxu0 0.0
    %4179 = vmatpush1.xpose.msra.mxu0 0.0
    %4180 = vmatprep.subr.mxu0 0.0
    %4181 = vmatpush1.xpose.msra.mxu0 0.0
    %4182 = vmatprep.subr.mxu0 0.0
    %4183 = vmatpush1.xpose.msra.mxu0 0.0
    %4184 = vmatprep.subr.mxu0 0.0
    %4185 = vmatpush1.xpose.msra.mxu0 0.0
    %4186 = vmatprep.subr.mxu0 0.0
    %4187 = vmatpush1.xpose.msra.mxu0 0.0
    %4188 = vmatprep.subr.mxu0 0.0
    %4189 = vmatpush1.xpose.msra.mxu0 0.0
    %4190 = vmatprep.subr.mxu0 0.0
    %4191 = vmatpush1.xpose.msra.mxu0 0.0
    %4192 = vmatprep.subr.mxu0 0.0
    %4193 = vmatpush1.xpose.msra.mxu0 %v4162
    %4194 = vmatprep.subr.mxu0 0.0
    %4195 = vmatpush1.xpose.msra.mxu0 %v4160
    %4196 = vmatprep.subr.mxu0 0.0
    %4197 = vmatpush2.xpose.msra.mxu0 0.0
    %4198 = vmatprep.subr.mxu0 0.0
    %4199 = vmatpush2.xpose.msra.mxu0 0.0
    %4200 = vmatprep.subr.mxu0 0.0
    %4201 = vmatpush2.xpose.msra.mxu0 0.0
    %4202 = vmatprep.subr.mxu0 0.0
    %4203 = vmatpush2.xpose.msra.mxu0 0.0
    %4204 = vmatprep.subr.mxu0 0.0
    %4205 = vmatpush2.xpose.msra.mxu0 0.0
    %4206 = vmatprep.subr.mxu0 0.0
    %4207 = vmatpush2.xpose.msra.mxu0 0.0
    %4208 = vmatprep.subr.mxu0 0.0
    %4209 = vmatpush2.xpose.msra.mxu0 0.0
    %4210 = vmatprep.subr.mxu0 0.0
    %4211 = vmatpush2.xpose.msra.mxu0 0.0
    %4212 = vmatprep.subr.mxu0 0.0
    %4213 = vmatpush2.xpose.msra.mxu0 0.0
    %4214 = vmatprep.subr.mxu0 0.0
    %4215 = vmatpush2.xpose.msra.mxu0 0.0
    %4216 = vmatprep.subr.mxu0 0.0
    %4217 = vmatpush2.xpose.msra.mxu0 0.0
    %4218 = vmatprep.subr.mxu0 0.0
    %4219 = vmatpush2.xpose.msra.mxu0 0.0
    %4220 = vmatprep.subr.mxu0 0.0
    %4221 = vmatpush2.xpose.msra.mxu0 0.0
    %4222 = vmatprep.subr.mxu0 0.0
    %4223 = vmatpush2.xpose.msra.mxu0 0.0
    %4224 = vmatprep.subr.mxu0 0.0
    %4225 = vmatpush2.xpose.msra.mxu0 0.0
    %4226 = vmatprep.subr.mxu0 0.0
    %4227 = vmatpush2.xpose.msra.mxu0 0.0
    %4228 = vmatprep.mubr.f32.mxu0 0.0
    %4229 = vmatmul.mubr.f32.gmra.mxu0 %v4156
    %v4230 = vpop.f32.mrf.mxu0
    %v4231 = vadd.f32 %v121, %v4230
    %v4232 = vpop.f32.mrf.mxu0
    %4233 = vmatprep.mubr.f32.mxu0 0.0
    %4234 = vmatmul.mubr.f32.gmra.mxu0 %v4158
    %v4235 = vpop.f32.mrf.mxu0
    %v4236 = vadd.f32 %v122, %v4235
    %v4237 = vpop.f32.mrf.mxu0
    %4238 = vdwg.mxu0
    %v4239 = vsel %vm397, %v4231, -inf
    %4240 = vmax.xlane.f32.xlu0 %v4239
    %v4241 = vpop.xlane.xlu0 %4240
    %v4242 = vsel %vm397, %v4236, -inf
    %4243 = vmax.xlane.f32.xlu0 %v4242
    %v4244 = vpop.xlane.xlu0 %4243
    %v4245 = vsub.f32 %v4231, %v4241
    %v4246 = vsub.f32 %v4236, %v4244
    %v4247 = vmul.f32 %v4245, 1.442695
    %v4248 = vpow.pop %v4247
    %v4249 = vmul.f32 %v4246, 1.442695
    %v4250 = vpow.pop %v4249
    %v4251 = vsel %vm397, %v4248, 0.0
    %4252 = vadd.xlane.f32.xlu0 %v4251
    %v4253 = vpop.xlane.xlu0 %4252
    %v4254 = vsel %vm397, %v4250, 0.0
    %4255 = vadd.xlane.f32.xlu0 %v4254
    %v4256 = vpop.xlane.xlu0 %4255
    %v4257 = vrcp.pop %v4253
    %v4258 = vrcp.pop %v4256
    %4259 = vrot.lane.b32.xlu0 %v209, 16
    %v4260 = vpop.permute.xlu0 %4259
    %4261 = vrot.lane.b32.xlu0 %v214, 16
    %v4262 = vpop.permute.xlu0 %4261
    %v4266 = vsel %vm397, %v4248, 0
    %v4269 = vsel %vm397, %v4250, 0
    %4271 = vmatprep.subr.mxu0 0.0
    %4272 = vmatpush1.msra.mxu0 0.0
    %4273 = vmatprep.subr.mxu0 0.0
    %4274 = vmatpush1.msra.mxu0 0.0
    %4275 = vmatprep.subr.mxu0 0.0
    %4276 = vmatpush1.msra.mxu0 0.0
    %4277 = vmatprep.subr.mxu0 0.0
    %4278 = vmatpush1.msra.mxu0 0.0
    %4279 = vmatprep.subr.mxu0 0.0
    %4280 = vmatpush1.msra.mxu0 0.0
    %4281 = vmatprep.subr.mxu0 0.0
    %4282 = vmatpush1.msra.mxu0 0.0
    %4283 = vmatprep.subr.mxu0 0.0
    %4284 = vmatpush1.msra.mxu0 0.0
    %4285 = vmatprep.subr.mxu0 0.0
    %4286 = vmatpush1.msra.mxu0 0.0
    %4287 = vmatprep.subr.mxu0 0.0
    %4288 = vmatpush1.msra.mxu0 0.0
    %4289 = vmatprep.subr.mxu0 0.0
    %4290 = vmatpush1.msra.mxu0 0.0
    %4291 = vmatprep.subr.mxu0 0.0
    %4292 = vmatpush1.msra.mxu0 0.0
    %4293 = vmatprep.subr.mxu0 0.0
    %4294 = vmatpush1.msra.mxu0 0.0
    %4295 = vmatprep.subr.mxu0 0.0
    %4296 = vmatpush1.msra.mxu0 0.0
    %4297 = vmatprep.subr.mxu0 0.0
    %4298 = vmatpush1.msra.mxu0 0.0
    %4299 = vmatprep.subr.mxu0 0.0
    %4300 = vmatpush1.msra.mxu0 %v4262
    %4301 = vmatprep.subr.mxu0 0.0
    %4302 = vmatpush1.msra.mxu0 %v4260
    %4303 = vmatprep.subr.mxu0 0.0
    %4304 = vmatpush2.msra.mxu0 0.0
    %4305 = vmatprep.subr.mxu0 0.0
    %4306 = vmatpush2.msra.mxu0 0.0
    %4307 = vmatprep.subr.mxu0 0.0
    %4308 = vmatpush2.msra.mxu0 0.0
    %4309 = vmatprep.subr.mxu0 0.0
    %4310 = vmatpush2.msra.mxu0 0.0
    %4311 = vmatprep.subr.mxu0 0.0
    %4312 = vmatpush2.msra.mxu0 0.0
    %4313 = vmatprep.subr.mxu0 0.0
    %4314 = vmatpush2.msra.mxu0 0.0
    %4315 = vmatprep.subr.mxu0 0.0
    %4316 = vmatpush2.msra.mxu0 0.0
    %4317 = vmatprep.subr.mxu0 0.0
    %4318 = vmatpush2.msra.mxu0 0.0
    %4319 = vmatprep.subr.mxu0 0.0
    %4320 = vmatpush2.msra.mxu0 0.0
    %4321 = vmatprep.subr.mxu0 0.0
    %4322 = vmatpush2.msra.mxu0 0.0
    %4323 = vmatprep.subr.mxu0 0.0
    %4324 = vmatpush2.msra.mxu0 0.0
    %4325 = vmatprep.subr.mxu0 0.0
    %4326 = vmatpush2.msra.mxu0 0.0
    %4327 = vmatprep.subr.mxu0 0.0
    %4328 = vmatpush2.msra.mxu0 0.0
    %4329 = vmatprep.subr.mxu0 0.0
    %4330 = vmatpush2.msra.mxu0 0.0
    %4331 = vmatprep.subr.mxu0 0.0
    %4332 = vmatpush2.msra.mxu0 0.0
    %4333 = vmatprep.subr.mxu0 0.0
    %4334 = vmatpush2.msra.mxu0 0.0
    %4335 = vmatprep.mubr.f32.mxu0 0.0
    %4336 = vmatmul.mubr.f32.gmra.mxu0 %v4266
    %v4337 = vpop.f32.mrf.mxu0
    %v4338 = vadd.f32 0.0, %v4337
    %v4339 = vpop.f32.mrf.mxu0
    %4340 = vmatprep.mubr.f32.mxu0 0.0
    %4341 = vmatmul.mubr.f32.gmra.mxu0 %v4269
    %v4342 = vpop.f32.mrf.mxu0
    %v4343 = vadd.f32 0.0, %v4342
    %v4344 = vpop.f32.mrf.mxu0
    %4345 = vdwg.mxu0
    %v4346 = vmul.f32 %v4338, %v4257
    %v4347 = vmul.f32 %v4343, %v4258
    %4348 = vrot.lane.b32.xlu0 %v3737, 104
    %v4349 = vpop.permute.xlu0 %4348
    %4350 = vrot.lane.b32.xlu0 %v3742, 104
    %v4351 = vpop.permute.xlu0 %4350
    %4352 = vrot.lane.b32.xlu0 %v209, 40
    %v4353 = vpop.permute.xlu0 %4352
    %4354 = vrot.lane.b32.xlu0 %v214, 40
    %v4355 = vpop.permute.xlu0 %4354
    %v4356 = vsel %vm313, %v4349, 0
    %v4358 = vsel %vm313, %v4351, 0
    %v4360 = vsel %vm313, %v4353, 0
    %v4362 = vsel %vm313, %v4355, 0
    %4364 = vmatprep.subr.mxu0 0.0
    %4365 = vmatpush1.xpose.msra.mxu0 0.0
    %4366 = vmatprep.subr.mxu0 0.0
    %4367 = vmatpush1.xpose.msra.mxu0 0.0
    %4368 = vmatprep.subr.mxu0 0.0
    %4369 = vmatpush1.xpose.msra.mxu0 0.0
    %4370 = vmatprep.subr.mxu0 0.0
    %4371 = vmatpush1.xpose.msra.mxu0 0.0
    %4372 = vmatprep.subr.mxu0 0.0
    %4373 = vmatpush1.xpose.msra.mxu0 0.0
    %4374 = vmatprep.subr.mxu0 0.0
    %4375 = vmatpush1.xpose.msra.mxu0 0.0
    %4376 = vmatprep.subr.mxu0 0.0
    %4377 = vmatpush1.xpose.msra.mxu0 0.0
    %4378 = vmatprep.subr.mxu0 0.0
    %4379 = vmatpush1.xpose.msra.mxu0 0.0
    %4380 = vmatprep.subr.mxu0 0.0
    %4381 = vmatpush1.xpose.msra.mxu0 0.0
    %4382 = vmatprep.subr.mxu0 0.0
    %4383 = vmatpush1.xpose.msra.mxu0 0.0
    %4384 = vmatprep.subr.mxu0 0.0
    %4385 = vmatpush1.xpose.msra.mxu0 0.0
    %4386 = vmatprep.subr.mxu0 0.0
    %4387 = vmatpush1.xpose.msra.mxu0 0.0
    %4388 = vmatprep.subr.mxu0 0.0
    %4389 = vmatpush1.xpose.msra.mxu0 0.0
    %4390 = vmatprep.subr.mxu0 0.0
    %4391 = vmatpush1.xpose.msra.mxu0 0.0
    %4392 = vmatprep.subr.mxu0 0.0
    %4393 = vmatpush1.xpose.msra.mxu0 %v4362
    %4394 = vmatprep.subr.mxu0 0.0
    %4395 = vmatpush1.xpose.msra.mxu0 %v4360
    %4396 = vmatprep.subr.mxu0 0.0
    %4397 = vmatpush2.xpose.msra.mxu0 0.0
    %4398 = vmatprep.subr.mxu0 0.0
    %4399 = vmatpush2.xpose.msra.mxu0 0.0
    %4400 = vmatprep.subr.mxu0 0.0
    %4401 = vmatpush2.xpose.msra.mxu0 0.0
    %4402 = vmatprep.subr.mxu0 0.0
    %4403 = vmatpush2.xpose.msra.mxu0 0.0
    %4404 = vmatprep.subr.mxu0 0.0
    %4405 = vmatpush2.xpose.msra.mxu0 0.0
    %4406 = vmatprep.subr.mxu0 0.0
    %4407 = vmatpush2.xpose.msra.mxu0 0.0
    %4408 = vmatprep.subr.mxu0 0.0
    %4409 = vmatpush2.xpose.msra.mxu0 0.0
    %4410 = vmatprep.subr.mxu0 0.0
    %4411 = vmatpush2.xpose.msra.mxu0 0.0
    %4412 = vmatprep.subr.mxu0 0.0
    %4413 = vmatpush2.xpose.msra.mxu0 0.0
    %4414 = vmatprep.subr.mxu0 0.0
    %4415 = vmatpush2.xpose.msra.mxu0 0.0
    %4416 = vmatprep.subr.mxu0 0.0
    %4417 = vmatpush2.xpose.msra.mxu0 0.0
    %4418 = vmatprep.subr.mxu0 0.0
    %4419 = vmatpush2.xpose.msra.mxu0 0.0
    %4420 = vmatprep.subr.mxu0 0.0
    %4421 = vmatpush2.xpose.msra.mxu0 0.0
    %4422 = vmatprep.subr.mxu0 0.0
    %4423 = vmatpush2.xpose.msra.mxu0 0.0
    %4424 = vmatprep.subr.mxu0 0.0
    %4425 = vmatpush2.xpose.msra.mxu0 0.0
    %4426 = vmatprep.subr.mxu0 0.0
    %4427 = vmatpush2.xpose.msra.mxu0 0.0
    %4428 = vmatprep.mubr.f32.mxu0 0.0
    %4429 = vmatmul.mubr.f32.gmra.mxu0 %v4356
    %v4430 = vpop.f32.mrf.mxu0
    %v4431 = vadd.f32 %v121, %v4430
    %v4432 = vpop.f32.mrf.mxu0
    %4433 = vmatprep.mubr.f32.mxu0 0.0
    %4434 = vmatmul.mubr.f32.gmra.mxu0 %v4358
    %v4435 = vpop.f32.mrf.mxu0
    %v4436 = vadd.f32 %v122, %v4435
    %v4437 = vpop.f32.mrf.mxu0
    %4438 = vdwg.mxu0
    %v4439 = vsel %vm397, %v4431, -inf
    %4440 = vmax.xlane.f32.xlu0 %v4439
    %v4441 = vpop.xlane.xlu0 %4440
    %v4442 = vsel %vm397, %v4436, -inf
    %4443 = vmax.xlane.f32.xlu0 %v4442
    %v4444 = vpop.xlane.xlu0 %4443
    %v4445 = vsub.f32 %v4431, %v4441
    %v4446 = vsub.f32 %v4436, %v4444
    %v4447 = vmul.f32 %v4445, 1.442695
    %v4448 = vpow.pop %v4447
    %v4449 = vmul.f32 %v4446, 1.442695
    %v4450 = vpow.pop %v4449
    %v4451 = vsel %vm397, %v4448, 0.0
    %4452 = vadd.xlane.f32.xlu0 %v4451
    %v4453 = vpop.xlane.xlu0 %4452
    %v4454 = vsel %vm397, %v4450, 0.0
    %4455 = vadd.xlane.f32.xlu0 %v4454
    %v4456 = vpop.xlane.xlu0 %4455
    %v4457 = vrcp.pop %v4453
    %v4458 = vrcp.pop %v4456
    %4459 = vrot.lane.b32.xlu0 %v209, 8
    %v4460 = vpop.permute.xlu0 %4459
    %4461 = vrot.lane.b32.xlu0 %v214, 8
    %v4462 = vpop.permute.xlu0 %4461
    %v4466 = vsel %vm397, %v4448, 0
    %v4469 = vsel %vm397, %v4450, 0
    %4471 = vmatprep.subr.mxu0 0.0
    %4472 = vmatpush1.msra.mxu0 0.0
    %4473 = vmatprep.subr.mxu0 0.0
    %4474 = vmatpush1.msra.mxu0 0.0
    %4475 = vmatprep.subr.mxu0 0.0
    %4476 = vmatpush1.msra.mxu0 0.0
    %4477 = vmatprep.subr.mxu0 0.0
    %4478 = vmatpush1.msra.mxu0 0.0
    %4479 = vmatprep.subr.mxu0 0.0
    %4480 = vmatpush1.msra.mxu0 0.0
    %4481 = vmatprep.subr.mxu0 0.0
    %4482 = vmatpush1.msra.mxu0 0.0
    %4483 = vmatprep.subr.mxu0 0.0
    %4484 = vmatpush1.msra.mxu0 0.0
    %4485 = vmatprep.subr.mxu0 0.0
    %4486 = vmatpush1.msra.mxu0 0.0
    %4487 = vmatprep.subr.mxu0 0.0
    %4488 = vmatpush1.msra.mxu0 0.0
    %4489 = vmatprep.subr.mxu0 0.0
    %4490 = vmatpush1.msra.mxu0 0.0
    %4491 = vmatprep.subr.mxu0 0.0
    %4492 = vmatpush1.msra.mxu0 0.0
    %4493 = vmatprep.subr.mxu0 0.0
    %4494 = vmatpush1.msra.mxu0 0.0
    %4495 = vmatprep.subr.mxu0 0.0
    %4496 = vmatpush1.msra.mxu0 0.0
    %4497 = vmatprep.subr.mxu0 0.0
    %4498 = vmatpush1.msra.mxu0 0.0
    %4499 = vmatprep.subr.mxu0 0.0
    %4500 = vmatpush1.msra.mxu0 %v4462
    %4501 = vmatprep.subr.mxu0 0.0
    %4502 = vmatpush1.msra.mxu0 %v4460
    %4503 = vmatprep.subr.mxu0 0.0
    %4504 = vmatpush2.msra.mxu0 0.0
    %4505 = vmatprep.subr.mxu0 0.0
    %4506 = vmatpush2.msra.mxu0 0.0
    %4507 = vmatprep.subr.mxu0 0.0
    %4508 = vmatpush2.msra.mxu0 0.0
    %4509 = vmatprep.subr.mxu0 0.0
    %4510 = vmatpush2.msra.mxu0 0.0
    %4511 = vmatprep.subr.mxu0 0.0
    %4512 = vmatpush2.msra.mxu0 0.0
    %4513 = vmatprep.subr.mxu0 0.0
    %4514 = vmatpush2.msra.mxu0 0.0
    %4515 = vmatprep.subr.mxu0 0.0
    %4516 = vmatpush2.msra.mxu0 0.0
    %4517 = vmatprep.subr.mxu0 0.0
    %4518 = vmatpush2.msra.mxu0 0.0
    %4519 = vmatprep.subr.mxu0 0.0
    %4520 = vmatpush2.msra.mxu0 0.0
    %4521 = vmatprep.subr.mxu0 0.0
    %4522 = vmatpush2.msra.mxu0 0.0
    %4523 = vmatprep.subr.mxu0 0.0
    %4524 = vmatpush2.msra.mxu0 0.0
    %4525 = vmatprep.subr.mxu0 0.0
    %4526 = vmatpush2.msra.mxu0 0.0
    %4527 = vmatprep.subr.mxu0 0.0
    %4528 = vmatpush2.msra.mxu0 0.0
    %4529 = vmatprep.subr.mxu0 0.0
    %4530 = vmatpush2.msra.mxu0 0.0
    %4531 = vmatprep.subr.mxu0 0.0
    %4532 = vmatpush2.msra.mxu0 0.0
    %4533 = vmatprep.subr.mxu0 0.0
    %4534 = vmatpush2.msra.mxu0 0.0
    %4535 = vmatprep.mubr.f32.mxu0 0.0
    %4536 = vmatmul.mubr.f32.gmra.mxu0 %v4466
    %v4537 = vpop.f32.mrf.mxu0
    %v4538 = vadd.f32 0.0, %v4537
    %v4539 = vpop.f32.mrf.mxu0
    %4540 = vmatprep.mubr.f32.mxu0 0.0
    %4541 = vmatmul.mubr.f32.gmra.mxu0 %v4469
    %v4542 = vpop.f32.mrf.mxu0
    %v4543 = vadd.f32 0.0, %v4542
    %v4544 = vpop.f32.mrf.mxu0
    %4545 = vdwg.mxu0
    %v4546 = vmul.f32 %v4538, %v4457
    %v4547 = vmul.f32 %v4543, %v4458
    %4550 = vrot.lane.b32.xlu0 %v4146, 8
    %v4551 = vpop.permute.xlu0 %4550
    %4552 = vrot.lane.b32.xlu0 %v4147, 8
    %v4553 = vpop.permute.xlu0 %4552
    %4558 = vrot.lane.b32.xlu0 %v4346, 16
    %v4559 = vpop.permute.xlu0 %4558
    %4560 = vrot.lane.b32.xlu0 %v4347, 16
    %v4561 = vpop.permute.xlu0 %4560
    %4566 = vrot.lane.b32.xlu0 %v4546, 24
    %v4567 = vpop.permute.xlu0 %4566
    %4568 = vrot.lane.b32.xlu0 %v4547, 24
    %v4569 = vpop.permute.xlu0 %4568
    %v4572 = vsel %vm313, %v3946, %v4551
    %v4573 = vsel %vm313, %v3947, %v4553
    %v4574 = vsel %vm397, %v4572, %v4559
    %v4575 = vsel %vm397, %v4573, %v4561
    %v4576 = vsel %vm1135, %v4574, %v4567
    %v4577 = vsel %vm1135, %v4575, %v4569
    %v4579 = vsel %vm135, %v4576, 0
    %v4582 = vsel %vm135, %v4577, 0
    %4584 = vmatprep.subr.mxu0 0.0
    %4585 = vmatpush1.msra.mxu0 0.0
    %4586 = vmatprep.subr.mxu0 0.0
    %4587 = vmatpush1.msra.mxu0 0.0
    %4588 = vmatprep.subr.mxu0 0.0
    %4589 = vmatpush1.msra.mxu0 0.0
    %4590 = vmatprep.subr.mxu0 0.0
    %4591 = vmatpush1.msra.mxu0 0.0
    %4592 = vmatprep.subr.mxu0 0.0
    %4593 = vmatpush1.msra.mxu0 0.0
    %4594 = vmatprep.subr.mxu0 0.0
    %4595 = vmatpush1.msra.mxu0 0.0
    %4596 = vmatprep.subr.mxu0 0.0
    %4597 = vmatpush1.msra.mxu0 0.0
    %4598 = vmatprep.subr.mxu0 0.0
    %4599 = vmatpush1.msra.mxu0 0.0
    %4600 = vmatprep.subr.mxu0 0.0
    %4601 = vmatpush1.msra.mxu0 0.0
    %4602 = vmatprep.subr.mxu0 0.0
    %4603 = vmatpush1.msra.mxu0 0.0
    %4604 = vmatprep.subr.mxu0 0.0
    %4605 = vmatpush1.msra.mxu0 0.0
    %4606 = vmatprep.subr.mxu0 0.0
    %4607 = vmatpush1.msra.mxu0 0.0
    %4608 = vmatprep.subr.mxu0 0.0
    %4609 = vmatpush1.msra.mxu0 %v3749
    %4610 = vmatprep.subr.mxu0 0.0
    %4611 = vmatpush1.msra.mxu0 %v3748
    %4612 = vmatprep.subr.mxu0 0.0
    %4613 = vmatpush1.msra.mxu0 %v3747
    %4614 = vmatprep.subr.mxu0 0.0
    %4615 = vmatpush1.msra.mxu0 %v3746
    %4616 = vmatprep.subr.mxu0 0.0
    %4617 = vmatpush2.msra.mxu0 0.0
    %4618 = vmatprep.subr.mxu0 0.0
    %4619 = vmatpush2.msra.mxu0 0.0
    %4620 = vmatprep.subr.mxu0 0.0
    %4621 = vmatpush2.msra.mxu0 0.0
    %4622 = vmatprep.subr.mxu0 0.0
    %4623 = vmatpush2.msra.mxu0 0.0
    %4624 = vmatprep.subr.mxu0 0.0
    %4625 = vmatpush2.msra.mxu0 0.0
    %4626 = vmatprep.subr.mxu0 0.0
    %4627 = vmatpush2.msra.mxu0 0.0
    %4628 = vmatprep.subr.mxu0 0.0
    %4629 = vmatpush2.msra.mxu0 0.0
    %4630 = vmatprep.subr.mxu0 0.0
    %4631 = vmatpush2.msra.mxu0 0.0
    %4632 = vmatprep.subr.mxu0 0.0
    %4633 = vmatpush2.msra.mxu0 0.0
    %4634 = vmatprep.subr.mxu0 0.0
    %4635 = vmatpush2.msra.mxu0 0.0
    %4636 = vmatprep.subr.mxu0 0.0
    %4637 = vmatpush2.msra.mxu0 0.0
    %4638 = vmatprep.subr.mxu0 0.0
    %4639 = vmatpush2.msra.mxu0 0.0
    %4640 = vmatprep.subr.mxu0 0.0
    %4641 = vmatpush2.msra.mxu0 0.0
    %4642 = vmatprep.subr.mxu0 0.0
    %4643 = vmatpush2.msra.mxu0 0.0
    %4644 = vmatprep.subr.mxu0 0.0
    %4645 = vmatpush2.msra.mxu0 0.0
    %4646 = vmatprep.subr.mxu0 0.0
    %4647 = vmatpush2.msra.mxu0 0.0
    %4648 = vmatprep.mubr.f32.mxu0 0.0
    %4649 = vmatmul.mubr.f32.gmra.mxu0 %v4579
    %v4650 = vpop.f32.mrf.mxu0
    %v4651 = vadd.f32 0.0, %v4650
    %v4652 = vpop.f32.mrf.mxu0
    %4653 = vmatprep.mubr.f32.mxu0 0.0
    %4654 = vmatmul.mubr.f32.gmra.mxu0 %v4582
    %v4655 = vpop.f32.mrf.mxu0
    %v4656 = vadd.f32 0.0, %v4655
    %v4657 = vpop.f32.mrf.mxu0
    %4658 = vdwg.mxu0
    %v4659 = vadd.f32 %v3657, %v4651
    %v4660 = vadd.f32 %v3658, %v4656
    %s4661 = scalar_lea.vmem %s9, 64
    %v4662 = vld [vmem:[%s4661] sm:$0xff]
    %s4663 = scalar_lea.vmem %s9, 72
    %v4664 = vld [vmem:[%s4663] sm:$0xff]
    %v4665 = vmul.f32 %v4659, %v4659
    %v4666 = vmul.f32 %v4660, %v4660
    %v4667 = vsel %vm135, %v4659, 0.0
    %4668 = vadd.xlane.f32.xlu0 %v4667
    %v4669 = vpop.xlane.xlu0 %4668
    %v4670 = vsel %vm135, %v4660, 0.0
    %4671 = vadd.xlane.f32.xlu0 %v4670
    %v4672 = vpop.xlane.xlu0 %4671
    %v4673 = vsel %vm135, %v4665, 0.0
    %4674 = vadd.xlane.f32.xlu0 %v4673
    %v4675 = vpop.xlane.xlu0 %4674
    %v4676 = vsel %vm135, %v4666, 0.0
    %4677 = vadd.xlane.f32.xlu0 %v4676
    %v4678 = vpop.xlane.xlu0 %4677
    %v4679 = vrot.slane %v4669, 4
    %v4680 = vadd.f32 %v4669, %v4679
    %v4681 = vrot.slane %v4680, 2
    %v4682 = vadd.f32 %v4680, %v4681
    %v4683 = vrot.slane %v4682, 1
    %v4684 = vadd.f32 %v4682, %v4683
    %v4685 = vrot.slane %v4672, 4
    %v4686 = vadd.f32 %v4672, %v4685
    %v4687 = vrot.slane %v4686, 2
    %v4688 = vadd.f32 %v4686, %v4687
    %v4689 = vrot.slane %v4688, 1
    %v4690 = vadd.f32 %v4688, %v4689
    %v4691 = vrot.slane %v4675, 4
    %v4692 = vadd.f32 %v4675, %v4691
    %v4693 = vrot.slane %v4692, 2
    %v4694 = vadd.f32 %v4692, %v4693
    %v4695 = vrot.slane %v4694, 1
    %v4696 = vadd.f32 %v4694, %v4695
    %v4697 = vrot.slane %v4678, 4
    %v4698 = vadd.f32 %v4678, %v4697
    %v4699 = vrot.slane %v4698, 2
    %v4700 = vadd.f32 %v4698, %v4699
    %v4701 = vrot.slane %v4700, 1
    %v4702 = vadd.f32 %v4700, %v4701
    %v4703 = vmul.f32 %v4684, %v1262
    %v4704 = vmul.f32 %v4690, %v1262
    %v4705 = vmul.f32 %v4703, 256.0
    %v4706 = vmul.f32 %v4704, 256.0
    %v4707 = vmul.f32 %v4705, %v4703
    %v4708 = vmul.f32 %v4706, %v4704
    %v4709 = vsub.f32 %v4696, %v4707
    %v4710 = vsub.f32 %v4702, %v4708
    %v4711 = vmul.f32 %v4709, %v1271
    %v4712 = vmul.f32 %v4710, %v1271
    %v4713 = vadd.f32 %v4711, 1e-05
    %v4714 = vadd.f32 %v4712, 1e-05
    %v4715 = vrsqrt.pop %v4713
    %v4716 = vrsqrt.pop %v4714
    %v4717 = vsub.f32 %v4659, %v4703
    %v4718 = vsub.f32 %v4660, %v4704
    %v4719 = vmul.f32 %v4717, %v4715
    %v4720 = vmul.f32 %v4718, %v4716
    %v4721 = vmul.f32 %v4719, %v4662
    %v4722 = vmul.f32 %v4720, %v4662
    %v4723 = vadd.f32 %v4721, %v4664
    %v4724 = vadd.f32 %v4722, %v4664
    %s4725 = scalar_lea.vmem [#allocation11], 32
    %v4726 = vld [vmem:[%s4725] sm:$0xff]
    %v4727 = vld [vmem:[%s4725 + $0x8] sm:$0xff]
    %v4728 = vld [vmem:[%s4725 + $0x10] sm:$0xff]
    %v4729 = vld [vmem:[%s4725 + $0x18] sm:$0xff]
    %v4731 = vsel %vm135, %v4723, 0
    %v4734 = vsel %vm135, %v4724, 0
    %4736 = vmatprep.subr.mxu0 0.0
    %4737 = vmatpush1.msra.mxu0 0.0
    %4738 = vmatprep.subr.mxu0 0.0
    %4739 = vmatpush1.msra.mxu0 0.0
    %4740 = vmatprep.subr.mxu0 0.0
    %4741 = vmatpush1.msra.mxu0 0.0
    %4742 = vmatprep.subr.mxu0 0.0
    %4743 = vmatpush1.msra.mxu0 0.0
    %4744 = vmatprep.subr.mxu0 0.0
    %4745 = vmatpush1.msra.mxu0 0.0
    %4746 = vmatprep.subr.mxu0 0.0
    %4747 = vmatpush1.msra.mxu0 0.0
    %4748 = vmatprep.subr.mxu0 0.0
    %4749 = vmatpush1.msra.mxu0 0.0
    %4750 = vmatprep.subr.mxu0 0.0
    %4751 = vmatpush1.msra.mxu0 0.0
    %4752 = vmatprep.subr.mxu0 0.0
    %4753 = vmatpush1.msra.mxu0 0.0
    %4754 = vmatprep.subr.mxu0 0.0
    %4755 = vmatpush1.msra.mxu0 0.0
    %4756 = vmatprep.subr.mxu0 0.0
    %4757 = vmatpush1.msra.mxu0 0.0
    %4758 = vmatprep.subr.mxu0 0.0
    %4759 = vmatpush1.msra.mxu0 0.0
    %4760 = vmatprep.subr.mxu0 0.0
    %4761 = vmatpush1.msra.mxu0 %v4729
    %4762 = vmatprep.subr.mxu0 0.0
    %4763 = vmatpush1.msra.mxu0 %v4728
    %4764 = vmatprep.subr.mxu0 0.0
    %4765 = vmatpush1.msra.mxu0 %v4727
    %4766 = vmatprep.subr.mxu0 0.0
    %4767 = vmatpush1.msra.mxu0 %v4726
    %4768 = vmatprep.subr.mxu0 0.0
    %4769 = vmatpush2.msra.mxu0 0.0
    %4770 = vmatprep.subr.mxu0 0.0
    %4771 = vmatpush2.msra.mxu0 0.0
    %4772 = vmatprep.subr.mxu0 0.0
    %4773 = vmatpush2.msra.mxu0 0.0
    %4774 = vmatprep.subr.mxu0 0.0
    %4775 = vmatpush2.msra.mxu0 0.0
    %4776 = vmatprep.subr.mxu0 0.0
    %4777 = vmatpush2.msra.mxu0 0.0
    %4778 = vmatprep.subr.mxu0 0.0
    %4779 = vmatpush2.msra.mxu0 0.0
    %4780 = vmatprep.subr.mxu0 0.0
    %4781 = vmatpush2.msra.mxu0 0.0
    %4782 = vmatprep.subr.mxu0 0.0
    %4783 = vmatpush2.msra.mxu0 0.0
    %4784 = vmatprep.subr.mxu0 0.0
    %4785 = vmatpush2.msra.mxu0 0.0
    %4786 = vmatprep.subr.mxu0 0.0
    %4787 = vmatpush2.msra.mxu0 0.0
    %4788 = vmatprep.subr.mxu0 0.0
    %4789 = vmatpush2.msra.mxu0 0.0
    %4790 = vmatprep.subr.mxu0 0.0
    %4791 = vmatpush2.msra.mxu0 0.0
    %4792 = vmatprep.subr.mxu0 0.0
    %4793 = vmatpush2.msra.mxu0 0.0
    %4794 = vmatprep.subr.mxu0 0.0
    %4795 = vmatpush2.msra.mxu0 0.0
    %4796 = vmatprep.subr.mxu0 0.0
    %4797 = vmatpush2.msra.mxu0 0.0
    %4798 = vmatprep.subr.mxu0 0.0
    %4799 = vmatpush2.msra.mxu0 0.0
    %4800 = vmatprep.mubr.f32.mxu0 0.0
    %4801 = vmatmul.mubr.f32.gmra.mxu0 %v4731
    %v4802 = vpop.f32.mrf.mxu0
    %v4803 = vadd.f32 0.0, %v4802
    %v4804 = vpop.f32.mrf.mxu0
    %4805 = vmatprep.mubr.f32.mxu0 0.0
    %4806 = vmatmul.mubr.f32.gmra.mxu0 %v4734
    %v4807 = vpop.f32.mrf.mxu0
    %v4808 = vadd.f32 0.0, %v4807
    %v4809 = vpop.f32.mrf.mxu0
    %4810 = vdwg.mxu0
    %v4811 = vmax.f32 %v4803, 0.0
    %v4812 = vmax.f32 %v4808, 0.0
    %s4813 = scalar_lea.vmem %s8, 128
    %v4814 = vld [vmem:[%s4813] sm:$0xff]
    %v4815 = vld [vmem:[%s4813 + $0x8] sm:$0xff]
    %v4816 = vld [vmem:[%s4813 + $0x10] sm:$0xff]
    %v4817 = vld [vmem:[%s4813 + $0x18] sm:$0xff]
    %v4818 = vld [vmem:[%s4813 + $0x20] sm:$0xff]
    %v4819 = vld [vmem:[%s4813 + $0x28] sm:$0xff]
    %v4820 = vld [vmem:[%s4813 + $0x30] sm:$0xff]
    %v4821 = vld [vmem:[%s4813 + $0x38] sm:$0xff]
    %v4822 = vld [vmem:[%s4813 + $0x40] sm:$0xff]
    %v4823 = vld [vmem:[%s4813 + $0x48] sm:$0xff]
    %v4824 = vld [vmem:[%s4813 + $0x50] sm:$0xff]
    %v4825 = vld [vmem:[%s4813 + $0x58] sm:$0xff]
    %v4826 = vld [vmem:[%s4813 + $0x60] sm:$0xff]
    %v4827 = vld [vmem:[%s4813 + $0x68] sm:$0xff]
    %v4828 = vld [vmem:[%s4813 + $0x70] sm:$0xff]
    %v4829 = vld [vmem:[%s4813 + $0x78] sm:$0xff]
    %4830 = vmatprep.subr.mxu0 0.0
    %4831 = vmatpush1.msra.mxu0 %v4829
    %4832 = vmatprep.subr.mxu0 0.0
    %4833 = vmatpush1.msra.mxu0 %v4828
    %4834 = vmatprep.subr.mxu0 0.0
    %4835 = vmatpush1.msra.mxu0 %v4827
    %4836 = vmatprep.subr.mxu0 0.0
    %4837 = vmatpush1.msra.mxu0 %v4826
    %4838 = vmatprep.subr.mxu0 0.0
    %4839 = vmatpush1.msra.mxu0 %v4825
    %4840 = vmatprep.subr.mxu0 0.0
    %4841 = vmatpush1.msra.mxu0 %v4824
    %4842 = vmatprep.subr.mxu0 0.0
    %4843 = vmatpush1.msra.mxu0 %v4823
    %4844 = vmatprep.subr.mxu0 0.0
    %4845 = vmatpush1.msra.mxu0 %v4822
    %4846 = vmatprep.subr.mxu0 0.0
    %4847 = vmatpush1.msra.mxu0 %v4821
    %4848 = vmatprep.subr.mxu0 0.0
    %4849 = vmatpush1.msra.mxu0 %v4820
    %4850 = vmatprep.subr.mxu0 0.0
    %4851 = vmatpush1.msra.mxu0 %v4819
    %4852 = vmatprep.subr.mxu0 0.0
    %4853 = vmatpush1.msra.mxu0 %v4818
    %4854 = vmatprep.subr.mxu0 0.0
    %4855 = vmatpush1.msra.mxu0 %v4817
    %4856 = vmatprep.subr.mxu0 0.0
    %4857 = vmatpush1.msra.mxu0 %v4816
    %4858 = vmatprep.subr.mxu0 0.0
    %4859 = vmatpush1.msra.mxu0 %v4815
    %4860 = vmatprep.subr.mxu0 0.0
    %4861 = vmatpush1.msra.mxu0 %v4814
    %4862 = vmatprep.subr.mxu0 0.0
    %4863 = vmatpush2.msra.mxu0 0.0
    %4864 = vmatprep.subr.mxu0 0.0
    %4865 = vmatpush2.msra.mxu0 0.0
    %4866 = vmatprep.subr.mxu0 0.0
    %4867 = vmatpush2.msra.mxu0 0.0
    %4868 = vmatprep.subr.mxu0 0.0
    %4869 = vmatpush2.msra.mxu0 0.0
    %4870 = vmatprep.subr.mxu0 0.0
    %4871 = vmatpush2.msra.mxu0 0.0
    %4872 = vmatprep.subr.mxu0 0.0
    %4873 = vmatpush2.msra.mxu0 0.0
    %4874 = vmatprep.subr.mxu0 0.0
    %4875 = vmatpush2.msra.mxu0 0.0
    %4876 = vmatprep.subr.mxu0 0.0
    %4877 = vmatpush2.msra.mxu0 0.0
    %4878 = vmatprep.subr.mxu0 0.0
    %4879 = vmatpush2.msra.mxu0 0.0
    %4880 = vmatprep.subr.mxu0 0.0
    %4881 = vmatpush2.msra.mxu0 0.0
    %4882 = vmatprep.subr.mxu0 0.0
    %4883 = vmatpush2.msra.mxu0 0.0
    %4884 = vmatprep.subr.mxu0 0.0
    %4885 = vmatpush2.msra.mxu0 0.0
    %4886 = vmatprep.subr.mxu0 0.0
    %4887 = vmatpush2.msra.mxu0 0.0
    %4888 = vmatprep.subr.mxu0 0.0
    %4889 = vmatpush2.msra.mxu0 0.0
    %4890 = vmatprep.subr.mxu0 0.0
    %4891 = vmatpush2.msra.mxu0 0.0
    %4892 = vmatprep.subr.mxu0 0.0
    %4893 = vmatpush2.msra.mxu0 0.0
    %4894 = vmatprep.mubr.f32.mxu0 0.0
    %4895 = vmatmul.mubr.f32.gmra.mxu0 %v4811
    %v4896 = vpop.f32.mrf.mxu0
    %v4897 = vadd.f32 0.0, %v4896
    %v4898 = vpop.f32.mrf.mxu0
    %4899 = vmatprep.mubr.f32.mxu0 0.0
    %4900 = vmatmul.mubr.f32.gmra.mxu0 %v4812
    %v4901 = vpop.f32.mrf.mxu0
    %v4902 = vadd.f32 0.0, %v4901
    %v4903 = vpop.f32.mrf.mxu0
    %4904 = vdwg.mxu0
    %v4905 = vadd.f32 %v4723, %v4897
    %v4906 = vadd.f32 %v4724, %v4902
    %s4907 = scalar_lea.vmem %s9, 80
    %v4908 = vld [vmem:[%s4907] sm:$0xff]
    %s4909 = scalar_lea.vmem %s9, 88
    %v4910 = vld [vmem:[%s4909] sm:$0xff]
    %v4911 = vmul.f32 %v4905, %v4905
    %v4912 = vmul.f32 %v4906, %v4906
    %v4913 = vsel %vm135, %v4905, 0.0
    %4914 = vadd.xlane.f32.xlu0 %v4913
    %v4915 = vpop.xlane.xlu0 %4914
    %v4916 = vsel %vm135, %v4906, 0.0
    %4917 = vadd.xlane.f32.xlu0 %v4916
    %v4918 = vpop.xlane.xlu0 %4917
    %v4919 = vsel %vm135, %v4911, 0.0
    %4920 = vadd.xlane.f32.xlu0 %v4919
    %v4921 = vpop.xlane.xlu0 %4920
    %v4922 = vsel %vm135, %v4912, 0.0
    %4923 = vadd.xlane.f32.xlu0 %v4922
    %v4924 = vpop.xlane.xlu0 %4923
    %v4925 = vrot.slane %v4915, 4
    %v4926 = vadd.f32 %v4915, %v4925
    %v4927 = vrot.slane %v4926, 2
    %v4928 = vadd.f32 %v4926, %v4927
    %v4929 = vrot.slane %v4928, 1
    %v4930 = vadd.f32 %v4928, %v4929
    %v4931 = vrot.slane %v4918, 4
    %v4932 = vadd.f32 %v4918, %v4931
    %v4933 = vrot.slane %v4932, 2
    %v4934 = vadd.f32 %v4932, %v4933
    %v4935 = vrot.slane %v4934, 1
    %v4936 = vadd.f32 %v4934, %v4935
    %v4937 = vrot.slane %v4921, 4
    %v4938 = vadd.f32 %v4921, %v4937
    %v4939 = vrot.slane %v4938, 2
    %v4940 = vadd.f32 %v4938, %v4939
    %v4941 = vrot.slane %v4940, 1
    %v4942 = vadd.f32 %v4940, %v4941
    %v4943 = vrot.slane %v4924, 4
    %v4944 = vadd.f32 %v4924, %v4943
    %v4945 = vrot.slane %v4944, 2
    %v4946 = vadd.f32 %v4944, %v4945
    %v4947 = vrot.slane %v4946, 1
    %v4948 = vadd.f32 %v4946, %v4947
    %v4949 = vmul.f32 %v4930, %v1262
    %v4950 = vmul.f32 %v4936, %v1262
    %v4951 = vmul.f32 %v4949, 256.0
    %v4952 = vmul.f32 %v4950, 256.0
    %v4953 = vmul.f32 %v4951, %v4949
    %v4954 = vmul.f32 %v4952, %v4950
    %v4955 = vsub.f32 %v4942, %v4953
    %v4956 = vsub.f32 %v4948, %v4954
    %v4957 = vmul.f32 %v4955, %v1271
    %v4958 = vmul.f32 %v4956, %v1271
    %v4959 = vadd.f32 %v4957, 1e-05
    %v4960 = vadd.f32 %v4958, 1e-05
    %v4961 = vrsqrt.pop %v4959
    %v4962 = vrsqrt.pop %v4960
    %v4963 = vsub.f32 %v4905, %v4949
    %v4964 = vsub.f32 %v4906, %v4950
    %v4965 = vmul.f32 %v4963, %v4961
    %v4966 = vmul.f32 %v4964, %v4962
    %v4967 = vmul.f32 %v4965, %v4908
    %v4968 = vmul.f32 %v4966, %v4908
    %v4969 = vadd.f32 %v4967, %v4910
    %v4970 = vadd.f32 %v4968, %v4910
    %4971 = vst.msk [vmem:[#allocation13] sm:$0xff] %vm135, %v4969
    %4972 = vst.msk [vmem:[#allocation13 + $0x8] sm:$0xff] %vm135, %v4970
    // Predicated region
    $region66: #{tpu_custom_call.1} parent=1 // pred_check
      _
    $region67: #{tpu_custom_call.1} parent=1 // pred_check_branch
      %4974 = sbr.rel (0) target = $region69
    $region68: #{tpu_custom_call.1} parent=1 // pred_region
      %s4976 = ssub.s32 256, 256
      %4977 = vsyncadd [#allocation4], %s4976
      %s4978 = sshll.u32 [#allocation13], 4
      %s4979 = int_to_ptr.vmem [resolvable:$true] %s4978
      %4984 = dma.vmem_to_hbm [thread:$0]  %s4979, 256, %s10, [#allocation4], 128, 128, 8
    $region69: #{tpu_custom_call.1} parent=1 // pred_fallthru
      _
    // Predicated region
    $region70: #{tpu_custom_call.1} parent=1 // pred_check
      _
    $region71: #{tpu_custom_call.1} parent=1 // pred_check_branch
      %4986 = sbr.rel (0) target = $region73
    $region72: #{tpu_custom_call.1} parent=1 // pred_region
      %4987 = dma.done [#allocation4], 256
    $region73: #{tpu_custom_call.1} parent=1 // pred_fallthru
      _
    %4988 = vsyncpa [#allocation3], 1
    %4989 = vsyncpa [#allocation6], 1
    %4990 = vsyncpa [#allocation9], 1
    %4991 = vsyncpa [#allocation12], 1
    %4992 = vsyncpa [#allocation4], 1

</llo_original>
